<compile_context>
chip_gen: v5e
topology: v5e:2x2
jax: 0.10.0
libtpu: 0.0.40
codegen_flags: <defaults>
</compile_context>

<pallas_src>
import functools

import jax
import jax.numpy as jnp
from jax.experimental import pallas as pl
from jax.experimental.pallas import tpu as pltpu

EMBED_DIM = 768
NUM_HEADS = 4            # head_dim = 192; seq_len == 1 -> softmax is identity
SENT_DIM = 32            # sentence_embedding_dim
MANUAL_DIM = 0           # manual_feature_dim
MANUAL_IN = SENT_DIM + MANUAL_DIM            # 32
FC1_IN = EMBED_DIM + MANUAL_IN               # 800
NUM_CLASSES = 4

_MAX_BLOCK_B = 256       # batch-tile cap: keeps worst-case VMEM well under 16 MiB
_COMPILER_PARAMS = pltpu.CompilerParams(
    dimension_semantics=("parallel",),       # batch tiles independent (v7x: 2 TCs)
    vmem_limit_bytes=16 * 1024 * 1024)


def _round_up(x, m):
    return (x + m - 1) // m * m


# ----------------------------------------------------------------------------
# Fused kernel (one batch tile per grid step):
#   in-kernel gather        -> cls_buf[i] = tok_emb[ids[i], :]   (row DMAs)
#   BERT pooler             -> bert_embedding = tanh(cls @ Wp + bp)
#   fc1 + MHA(L=1) folded   -> h = bert @ Wf_bert + manual @ Wf_manual + bf
#   ReLU, Dropout(eval=id)  -> x = max(h, 0)
#   fc2                     -> scores = x @ W2 + b2
# ----------------------------------------------------------------------------
def fused_kernel(cls_ids_ref,                     # SMEM prefetch: (Bp,) int32
                 tok_emb_ref,                     # HBM (pl.ANY): (vocab, 768) f32
                 manual_ref,                      # VMEM: (block_b, 32) f32
                 wp_ref, bp_ref,                  # pooler dense (bf16 / f32 bias)
                 wfb_ref, wfm_ref, bf_ref,        # folded fc1->v_proj->out_proj
                 w2_ref, b2_ref,                  # fc2
                 bert_out_ref, scores_out_ref,    # outputs
                 cls_buf, dma_sem):               # scratch: (block_b,768) f32, DMA sem
    block_b = cls_buf.shape[0]
    b0 = pl.program_id(0) * block_b

    # --- In-kernel [CLS] embedding gather: block_b row DMAs HBM -> VMEM. ---
    @pl.loop(0, block_b)
    def _(i):
        tok = cls_ids_ref[b0 + i]
        pltpu.make_async_copy(tok_emb_ref.at[tok], cls_buf.at[i], dma_sem).start()

    @pl.loop(0, block_b)
    def _(i):
        # All row copies have identical size -> one matching wait per start.
        pltpu.make_async_copy(tok_emb_ref.at[0], cls_buf.at[0], dma_sem).wait()

    # --- BERT pooler: outputs[1] = tanh(Linear(last_hidden[:, 0])) ---
    cls_bf = cls_buf[...].astype(jnp.bfloat16)
    pooled = jnp.dot(cls_bf, wp_ref[...], preferred_element_type=jnp.float32)
    bert_emb = jnp.tanh(pooled + bp_ref[...])                  # (block_b, 768) f32
    bert_out_ref[...] = bert_emb

    # --- fc1 -> MultiheadAttention(embed_dim=768, num_heads=4) on a length-1
    #     sequence -> out_proj(v_proj(fc1(x))): folded into one weight at init.
    #     The concat with manual_features is realized as a K-split matmul. ---
    h = (jnp.dot(bert_emb.astype(jnp.bfloat16), wfb_ref[...],
                 preferred_element_type=jnp.float32)
         + jnp.dot(manual_ref[...].astype(jnp.bfloat16), wfm_ref[...],
                   preferred_element_type=jnp.float32)
         + bf_ref[...])                                        # (block_b, 768) f32

    x = jnp.maximum(h, 0.0)          # ReLU; Dropout(p=0.3) is identity in eval

    scores_out_ref[...] = (jnp.dot(x.astype(jnp.bfloat16), w2_ref[...],
                                   preferred_element_type=jnp.float32)
                           + b2_ref[...])                      # (block_b, 4) f32


def fused_forward(cls_ids, manual_features, p, *, block_b):
    Bp = cls_ids.shape[0]
    weights = (p["wp_t"], p["bp"], p["wf_bert"], p["wf_manual"], p["bf"],
               p["w2_t"], p["b2"])
    # Constant index_map -> each weight is DMA'd once and stays VMEM-resident
    # across all batch tiles.
    weight_specs = [pl.BlockSpec(w.shape, lambda b, ids: (0, 0)) for w in weights]

    grid_spec = pltpu.PrefetchScalarGridSpec(
        num_scalar_prefetch=1,
        grid=(Bp // block_b,),
        in_specs=[pl.BlockSpec(memory_space=pl.ANY),              # tok_emb (HBM)
                  pl.BlockSpec((block_b, MANUAL_IN), lambda b, ids: (b, 0)),
                  *weight_specs],
        out_specs=(pl.BlockSpec((block_b, EMBED_DIM), lambda b, ids: (b, 0)),
                   pl.BlockSpec((block_b, NUM_CLASSES), lambda b, ids: (b, 0))),
        scratch_shapes=[pltpu.VMEM((block_b, EMBED_DIM), jnp.float32),
                        pltpu.SemaphoreType.DMA],
    )

    bert_emb, scores = pl.pallas_call(
        fused_kernel,
        out_shape=(jax.ShapeDtypeStruct((Bp, EMBED_DIM), jnp.float32),
                   jax.ShapeDtypeStruct((Bp, NUM_CLASSES), jnp.float32)),
        grid_spec=grid_spec,
        compiler_params=_COMPILER_PARAMS,
    )(cls_ids, p["tok_emb"], manual_features, *weights)
    return scores, bert_emb


# ----------------------------------------------------------------------------
# Full forward
# ----------------------------------------------------------------------------
def essay_model_forward(ids, mask, manual_features, params):
    del mask  # TODO(synk): attention_mask is only consumed by the omitted encoder.
    B = ids.shape[0]
    block_b = _round_up(B, 8) if B <= _MAX_BLOCK_B else _MAX_BLOCK_B
    Bp = _round_up(B, block_b)

    cls_ids = ids[:, 0].astype(jnp.int32)
    mf = manual_features
    if Bp != B:
        cls_ids = jnp.pad(cls_ids, (0, Bp - B))
        mf = jnp.pad(mf, ((0, Bp - B), (0, 0)))

    scores, bert_embedding = fused_forward(cls_ids, mf, params, block_b=block_b)
    if Bp != B:
        scores, bert_embedding = scores[:B], bert_embedding[:B]
    return scores, bert_embedding


# ----------------------------------------------------------------------------
# Deterministic parameter init (PyTorch nn.Linear-style uniform bounds),
# followed by the exact algebraic fold fc1 -> v_proj -> out_proj (f32).
# ----------------------------------------------------------------------------
def _linear(key, out_dim, in_dim):
    kw, kb = jax.random.split(key)
    bound = 1.0 / (in_dim ** 0.5)
    w = jax.random.uniform(kw, (out_dim, in_dim), jnp.float32, -bound, bound)
    b = jax.random.uniform(kb, (1, out_dim), jnp.float32, -bound, bound)
    return w.T, b          # store transposed: (in, out)


def init_params(key, vocab_size):
    ks = jax.random.split(key, 6)
    tok_emb = 0.02 * jax.random.normal(ks[0], (vocab_size, EMBED_DIM), jnp.float32)
    wp_t, bp = _linear(ks[1], EMBED_DIM, EMBED_DIM)   # BERT pooler dense
    w1_t, b1 = _linear(ks[2], EMBED_DIM, FC1_IN)      # fc1
    wv_t, bv = _linear(ks[3], EMBED_DIM, EMBED_DIM)   # MHA v_proj (in_proj rows 1536:2304)
    wo_t, bo = _linear(ks[4], EMBED_DIM, EMBED_DIM)   # MHA out_proj
    w2_t, b2 = _linear(ks[5], NUM_CLASSES, EMBED_DIM)  # fc2
    # NOTE: q_proj / k_proj are unused: softmax over one key is exactly 1.

    # Fold fc1 -> v_proj -> out_proj (exact for the L=1 attention path), f32.
    w_vo = wv_t @ wo_t                                # (768, 768)
    w_fused = w1_t @ w_vo                             # (800, 768)
    b_fused = b1 @ w_vo + bv @ wo_t + bo              # (1, 768)

    return dict(
        tok_emb=tok_emb,                                        # f32, stays in HBM
        wp_t=wp_t.astype(jnp.bfloat16), bp=bp,
        wf_bert=w_fused[:EMBED_DIM].astype(jnp.bfloat16),       # (768, 768)
        wf_manual=w_fused[EMBED_DIM:].astype(jnp.bfloat16),     # (32, 768)
        bf=b_fused,
        w2_t=w2_t.astype(jnp.bfloat16), b2=b2,
    )


if __name__ == "__main__":
    key = jax.random.PRNGKey(0)
    kparam, kid, kmf = jax.random.split(key, 3)

    B, S, VOCAB = 8, 16, 64
    params = init_params(kparam, VOCAB)
    ids = jax.random.randint(kid, (B, S), 0, VOCAB, dtype=jnp.int32)
    mask = jnp.ones((B, S), dtype=jnp.int32)
    manual_features = jax.random.normal(kmf, (B, MANUAL_IN), jnp.float32)

    fwd = jax.jit(functools.partial(essay_model_forward, params=params))
    scores, bert_emb = fwd(ids, mask, manual_features)
    jax.block_until_ready((scores, bert_emb))

    assert scores.shape == (B, NUM_CLASSES), scores.shape
    assert bert_emb.shape == (B, EMBED_DIM), bert_emb.shape
    assert scores.dtype == jnp.float32 and bert_emb.dtype == jnp.float32
    assert bool(jnp.all(jnp.isfinite(scores))) and bool(jnp.all(jnp.isfinite(bert_emb)))
    print("KERNEL_OK")
</pallas_src>

<mosaic_0001>
module attributes {stable_mosaic.version = 11 : i64} {
  func.func @fused_kernel(%arg0: i32, %arg1: memref<8xi32, #tpu.memory_space<smem>>, %arg2: memref<64x768xf32, #tpu.memory_space<any>>, %arg3: memref<8x32xf32, #tpu.memory_space<vmem>>, %arg4: memref<768x768xbf16, #tpu.memory_space<vmem>>, %arg5: memref<1x768xf32, #tpu.memory_space<vmem>>, %arg6: memref<768x768xbf16, #tpu.memory_space<vmem>>, %arg7: memref<32x768xbf16, #tpu.memory_space<vmem>>, %arg8: memref<1x768xf32, #tpu.memory_space<vmem>>, %arg9: memref<768x4xbf16, #tpu.memory_space<vmem>>, %arg10: memref<1x4xf32, #tpu.memory_space<vmem>>, %arg11: memref<8x768xf32, #tpu.memory_space<vmem>>, %arg12: memref<8x4xf32, #tpu.memory_space<vmem>>, %arg13: memref<8x768xf32, #tpu.memory_space<vmem>>, %arg14: memref<!tpu.dma_semaphore, #tpu.memory_space<semaphore_mem>>) attributes {dimension_semantics = [#tpu.dimension_semantics<parallel>], iteration_bounds = array<i64: 1>, scalar_prefetch = 1 : i64, scratch_operands = 2 : i64, tpu.core_type = #tpu.core_type<tc>, window_params = [{}, {transform_indices = @transform_1, window_bounds = array<i64: 8, 32>}, {pipeline_mode = #tpu.pipeline_mode<synchronous>, transform_indices = @transform_2, window_bounds = array<i64: 768, 768>}, {pipeline_mode = #tpu.pipeline_mode<synchronous>, transform_indices = @transform_3, window_bounds = array<i64: 1, 768>}, {pipeline_mode = #tpu.pipeline_mode<synchronous>, transform_indices = @transform_4, window_bounds = array<i64: 768, 768>}, {pipeline_mode = #tpu.pipeline_mode<synchronous>, transform_indices = @transform_5, window_bounds = array<i64: 32, 768>}, {pipeline_mode = #tpu.pipeline_mode<synchronous>, transform_indices = @transform_6, window_bounds = array<i64: 1, 768>}, {pipeline_mode = #tpu.pipeline_mode<synchronous>, transform_indices = @transform_7, window_bounds = array<i64: 768, 4>}, {pipeline_mode = #tpu.pipeline_mode<synchronous>, transform_indices = @transform_8, window_bounds = array<i64: 1, 4>}, {transform_indices = @transform_9, window_bounds = array<i64: 8, 768>}, {transform_indices = @transform_10, window_bounds = array<i64: 8, 4>}]} {
    %c8_i32 = arith.constant 8 : i32
    %0 = arith.muli %arg0, %c8_i32 : i32
    %c0_i32 = arith.constant 0 : i32
    %c8_i32_0 = arith.constant 8 : i32
    %1 = arith.addi %c0_i32, %c8_i32_0 : i32
    %c1_i32 = arith.constant 1 : i32
    scf.for %arg15 = %c0_i32 to %1 step %c1_i32  : i32 {
      %c1_i32_30 = arith.constant 1 : i32
      %32 = arith.muli %arg15, %c1_i32_30 : i32
      %c0_i32_31 = arith.constant 0 : i32
      %33 = arith.addi %c0_i32_31, %32 : i32
      %34 = arith.addi %0, %33 : i32
      %35 = arith.index_cast %34 : i32 to index
      %36 = memref.load %arg1[%35] : memref<8xi32, #tpu.memory_space<smem>>
      %c0_i32_32 = arith.constant 0 : i32
      %37 = tpu.memref_slice %arg2[%36, %c0_i32_32] : memref<64x768xf32, #tpu.memory_space<any>> -> memref<1x768xf32, #tpu.memory_space<any>>
      %38 = tpu.memref_squeeze %37 : memref<1x768xf32, #tpu.memory_space<any>> -> memref<768xf32, #tpu.memory_space<any>>
      %c0_i32_33 = arith.constant 0 : i32
      %39 = tpu.memref_slice %arg13[%33, %c0_i32_33] : memref<8x768xf32, #tpu.memory_space<vmem>> -> memref<1x768xf32, #tpu.memory_space<vmem>>
      %40 = tpu.memref_squeeze %39 : memref<1x768xf32, #tpu.memory_space<vmem>> -> memref<768xf32, #tpu.memory_space<vmem>>
      tpu.enqueue_dma source(%38 : memref<768xf32, #tpu.memory_space<any>>) target(%40 : memref<768xf32, #tpu.memory_space<vmem>>) target_semaphore(%arg14 : memref<!tpu.dma_semaphore, #tpu.memory_space<semaphore_mem>>)
    }
    %c8_i32_1 = arith.constant 8 : i32
    %c0_i32_2 = arith.constant 0 : i32
    %c8_i32_3 = arith.constant 8 : i32
    %2 = arith.addi %c0_i32_2, %c8_i32_3 : i32
    %c1_i32_4 = arith.constant 1 : i32
    scf.for %arg15 = %c0_i32_2 to %2 step %c1_i32_4  : i32 {
      %c0_i32_30 = arith.constant 0 : i32
      %c0_i32_31 = arith.constant 0 : i32
      %c0_i32_32 = arith.constant 0 : i32
      %32 = tpu.memref_slice %arg2[%c0_i32_30, %c0_i32_32] : memref<64x768xf32, #tpu.memory_space<any>> -> memref<1x768xf32, #tpu.memory_space<any>>
      %33 = tpu.memref_squeeze %32 : memref<1x768xf32, #tpu.memory_space<any>> -> memref<768xf32, #tpu.memory_space<any>>
      %c0_i32_33 = arith.constant 0 : i32
      %34 = tpu.memref_slice %arg13[%c0_i32_31, %c0_i32_33] : memref<8x768xf32, #tpu.memory_space<vmem>> -> memref<1x768xf32, #tpu.memory_space<vmem>>
      %35 = tpu.memref_squeeze %34 : memref<1x768xf32, #tpu.memory_space<vmem>> -> memref<768xf32, #tpu.memory_space<vmem>>
      tpu.wait_dma2 semaphore(%arg14 : memref<!tpu.dma_semaphore, #tpu.memory_space<semaphore_mem>>) src(%33 : memref<768xf32, #tpu.memory_space<any>>) dst(%35 : memref<768xf32, #tpu.memory_space<vmem>>)
    }
    %c0 = arith.constant 0 : index
    %c0_5 = arith.constant 0 : index
    %3 = vector.load %arg13[%c0, %c0_5] : memref<8x768xf32, #tpu.memory_space<vmem>>, vector<8x768xf32>
    %4 = arith.truncf %3 : vector<8x768xf32> to vector<8x768xbf16>
    %c0_6 = arith.constant 0 : index
    %c0_7 = arith.constant 0 : index
    %5 = vector.load %arg4[%c0_6, %c0_7] : memref<768x768xbf16, #tpu.memory_space<vmem>>, vector<768x768xbf16>
    %cst = arith.constant dense<0.000000e+00> : vector<8x768xf32>
    %6 = tpu.matmul %4, %5, %cst {dimension_numbers = #tpu.dot_dimension_numbers<[1], [0], [0], [1], [0, 0, 1, 1], [], []>} : vector<8x768xbf16>, vector<768x768xbf16>, vector<8x768xf32> -> vector<8x768xf32>
    %c0_8 = arith.constant 0 : index
    %c0_9 = arith.constant 0 : index
    %7 = vector.load %arg5[%c0_8, %c0_9] : memref<1x768xf32, #tpu.memory_space<vmem>>, vector<1x768xf32>
    %8 = vector.broadcast %7 : vector<1x768xf32> to vector<8x768xf32>
    %9 = arith.addf %6, %8 : vector<8x768xf32>
    %10 = math.tanh %9 : vector<8x768xf32>
    %c0_10 = arith.constant 0 : index
    %c0_11 = arith.constant 0 : index
    %11 = vector.load %arg11[%c0_10, %c0_11] : memref<8x768xf32, #tpu.memory_space<vmem>>, vector<8x768xf32>
    tpu.vector_store %arg11[%c0_10, %c0_11], %10 {strides = array<i32>} : memref<8x768xf32, #tpu.memory_space<vmem>>, vector<8x768xf32>,
    %12 = arith.truncf %10 : vector<8x768xf32> to vector<8x768xbf16>
    %c0_12 = arith.constant 0 : index
    %c0_13 = arith.constant 0 : index
    %13 = vector.load %arg6[%c0_12, %c0_13] : memref<768x768xbf16, #tpu.memory_space<vmem>>, vector<768x768xbf16>
    %cst_14 = arith.constant dense<0.000000e+00> : vector<8x768xf32>
    %14 = tpu.matmul %12, %13, %cst_14 {dimension_numbers = #tpu.dot_dimension_numbers<[1], [0], [0], [1], [0, 0, 1, 1], [], []>} : vector<8x768xbf16>, vector<768x768xbf16>, vector<8x768xf32> -> vector<8x768xf32>
    %c0_15 = arith.constant 0 : index
    %c0_16 = arith.constant 0 : index
    %15 = vector.load %arg3[%c0_15, %c0_16] : memref<8x32xf32, #tpu.memory_space<vmem>>, vector<8x32xf32>
    %16 = arith.truncf %15 : vector<8x32xf32> to vector<8x32xbf16>
    %c0_17 = arith.constant 0 : index
    %c0_18 = arith.constant 0 : index
    %17 = vector.load %arg7[%c0_17, %c0_18] : memref<32x768xbf16, #tpu.memory_space<vmem>>, vector<32x768xbf16>
    %cst_19 = arith.constant dense<0.000000e+00> : vector<8x768xf32>
    %18 = tpu.matmul %16, %17, %cst_19 {dimension_numbers = #tpu.dot_dimension_numbers<[1], [0], [0], [1], [0, 0, 1, 1], [], []>} : vector<8x32xbf16>, vector<32x768xbf16>, vector<8x768xf32> -> vector<8x768xf32>
    %19 = arith.addf %14, %18 : vector<8x768xf32>
    %c0_20 = arith.constant 0 : index
    %c0_21 = arith.constant 0 : index
    %20 = vector.load %arg8[%c0_20, %c0_21] : memref<1x768xf32, #tpu.memory_space<vmem>>, vector<1x768xf32>
    %21 = vector.broadcast %20 : vector<1x768xf32> to vector<8x768xf32>
    %22 = arith.addf %19, %21 : vector<8x768xf32>
    %cst_22 = arith.constant 0.000000e+00 : f32
    %23 = vector.broadcast %cst_22 : f32 to vector<8x768xf32>
    %24 = arith.maximumf %22, %23 : vector<8x768xf32>
    %25 = arith.truncf %24 : vector<8x768xf32> to vector<8x768xbf16>
    %c0_23 = arith.constant 0 : index
    %c0_24 = arith.constant 0 : index
    %26 = vector.load %arg9[%c0_23, %c0_24] : memref<768x4xbf16, #tpu.memory_space<vmem>>, vector<768x4xbf16>
    %cst_25 = arith.constant dense<0.000000e+00> : vector<8x4xf32>
    %27 = tpu.matmul %25, %26, %cst_25 {dimension_numbers = #tpu.dot_dimension_numbers<[1], [0], [0], [1], [0, 0, 1, 1], [], []>} : vector<8x768xbf16>, vector<768x4xbf16>, vector<8x4xf32> -> vector<8x4xf32>
    %c0_26 = arith.constant 0 : index
    %c0_27 = arith.constant 0 : index
    %28 = vector.load %arg10[%c0_26, %c0_27] : memref<1x4xf32, #tpu.memory_space<vmem>>, vector<1x4xf32>
    %29 = vector.broadcast %28 : vector<1x4xf32> to vector<8x4xf32>
    %30 = arith.addf %27, %29 : vector<8x4xf32>
    %c0_28 = arith.constant 0 : index
    %c0_29 = arith.constant 0 : index
    %31 = vector.load %arg12[%c0_28, %c0_29] : memref<8x4xf32, #tpu.memory_space<vmem>>, vector<8x4xf32>
    tpu.vector_store %arg12[%c0_28, %c0_29], %30 {strides = array<i32>} : memref<8x4xf32, #tpu.memory_space<vmem>>, vector<8x4xf32>,
    return
  }
  func.func @transform_1(%arg0: i32, %arg1: memref<8xi32, #tpu.memory_space<smem>>) -> (i32, i32) {
    %c0_i32 = arith.constant 0 : i32
    %c0_i32_0 = arith.constant 0 : i32
    return %arg0, %c0_i32 : i32, i32
  }
  func.func @transform_2(%arg0: i32, %arg1: memref<8xi32, #tpu.memory_space<smem>>) -> (i32, i32) {
    %c0_i32 = arith.constant 0 : i32
    %c0_i32_0 = arith.constant 0 : i32
    %c0_i32_1 = arith.constant 0 : i32
    return %c0_i32, %c0_i32_0 : i32, i32
  }
  func.func @transform_3(%arg0: i32, %arg1: memref<8xi32, #tpu.memory_space<smem>>) -> (i32, i32) {
    %c0_i32 = arith.constant 0 : i32
    %c0_i32_0 = arith.constant 0 : i32
    %c0_i32_1 = arith.constant 0 : i32
    return %c0_i32, %c0_i32_0 : i32, i32
  }
  func.func @transform_4(%arg0: i32, %arg1: memref<8xi32, #tpu.memory_space<smem>>) -> (i32, i32) {
    %c0_i32 = arith.constant 0 : i32
    %c0_i32_0 = arith.constant 0 : i32
    %c0_i32_1 = arith.constant 0 : i32
    return %c0_i32, %c0_i32_0 : i32, i32
  }
  func.func @transform_5(%arg0: i32, %arg1: memref<8xi32, #tpu.memory_space<smem>>) -> (i32, i32) {
    %c0_i32 = arith.constant 0 : i32
    %c0_i32_0 = arith.constant 0 : i32
    %c0_i32_1 = arith.constant 0 : i32
    return %c0_i32, %c0_i32_0 : i32, i32
  }
  func.func @transform_6(%arg0: i32, %arg1: memref<8xi32, #tpu.memory_space<smem>>) -> (i32, i32) {
    %c0_i32 = arith.constant 0 : i32
    %c0_i32_0 = arith.constant 0 : i32
    %c0_i32_1 = arith.constant 0 : i32
    return %c0_i32, %c0_i32_0 : i32, i32
  }
  func.func @transform_7(%arg0: i32, %arg1: memref<8xi32, #tpu.memory_space<smem>>) -> (i32, i32) {
    %c0_i32 = arith.constant 0 : i32
    %c0_i32_0 = arith.constant 0 : i32
    %c0_i32_1 = arith.constant 0 : i32
    return %c0_i32, %c0_i32_0 : i32, i32
  }
  func.func @transform_8(%arg0: i32, %arg1: memref<8xi32, #tpu.memory_space<smem>>) -> (i32, i32) {
    %c0_i32 = arith.constant 0 : i32
    %c0_i32_0 = arith.constant 0 : i32
    %c0_i32_1 = arith.constant 0 : i32
    return %c0_i32, %c0_i32_0 : i32, i32
  }
  func.func @transform_9(%arg0: i32, %arg1: memref<8xi32, #tpu.memory_space<smem>>) -> (i32, i32) {
    %c0_i32 = arith.constant 0 : i32
    %c0_i32_0 = arith.constant 0 : i32
    return %arg0, %c0_i32 : i32, i32
  }
  func.func @transform_10(%arg0: i32, %arg1: memref<8xi32, #tpu.memory_space<smem>>) -> (i32, i32) {
    %c0_i32 = arith.constant 0 : i32
    %c0_i32_0 = arith.constant 0 : i32
    return %arg0, %c0_i32 : i32, i32
  }
}

</mosaic_0001>

<llo_original>
// kernel: essay_model_forward.1
$region0: #{essay_model_forward.1}
  #allocation0 [shape = 'u32[]', space=smem, size = 0x4, offset = 0x4, fixed_abs, tag = 'smem constant byte address 0x4 - core index']
  #allocation1 [shape = 'u32[72,128]{1,0:T(1,128)}', space=vmem, size = 0x9000, scoped, tag = 'internal scratch']
  #allocation2 [shape = 'f32[8,768]{1,0:T(8,128)}', space=vmem, size = 0x6000, scoped, tag = 'scratch operand']
  #allocation3 [shape = 's32[1]{0}', space=sflag, size = 0x4, scoped, tag = 'scratch operand']
  #allocation4 [shape = 's32[1]{0}', space=sflag, size = 0x4, scoped, tag = 'scoped memory for essay_model_forward.1']
  #allocation5 [shape = 'u8[512]{0}', space=smem, size = 0x200, scoped, tag = 'prefetched SMEM operand 0']
  #allocation21 [shape = 's32[]', space=sflag, size = 0x4, offset = 0, fixed_abs, tag = 'sflag constant byte address 0x0 - dummy sync flag']
  %s0 = inlined_call_operand.vmem [shape: s32[8], index: 0, kind: input, shape index: {}]
  %s1 = inlined_call_operand.hbm [shape: f32[64,768], index: 1, kind: input, shape index: {}]
  %s2 = inlined_call_operand.hbm [shape: f32[8,32], index: 2, kind: input, shape index: {}]
  %s3 = inlined_call_operand.hbm [shape: bf16[768,768], index: 3, kind: input, shape index: {}]
  %s4 = inlined_call_operand.hbm [shape: f32[1,768], index: 4, kind: input, shape index: {}]
  %s5 = inlined_call_operand.hbm [shape: bf16[768,768], index: 5, kind: input, shape index: {}]
  %s6 = inlined_call_operand.hbm [shape: bf16[32,768], index: 6, kind: input, shape index: {}]
  %s7 = inlined_call_operand.hbm [shape: f32[1,768], index: 7, kind: input, shape index: {}]
  %s8 = inlined_call_operand.hbm [shape: bf16[768,4], index: 8, kind: input, shape index: {}]
  %s9 = inlined_call_operand.hbm [shape: f32[1,4], index: 9, kind: input, shape index: {}]
  %s10 = inlined_call_operand.hbm [shape: f32[8,768], index: 10, kind: output, shape index: {0}]
  %s11 = inlined_call_operand.vmem [shape: f32[8,4], index: 11, kind: output, shape index: {1}]
  %12 = xla_tuple %s10, %s11
  %s13 = sld [smem:[#allocation0]]
  $region96: #{essay_model_forward.1} parent=0
    _
  %s15 = ssub.s32 1, %s13
  %s16 = scalar_select 0, %s15, %s13
  %s18 = sshll.u32 %s0, 4
  %s19 = int_to_ptr.vmem [resolvable:$true] %s18
  %21 = dma.vmem_to_smem %s19, 16, [#allocation5], [#allocation4]
  %23 = dma.done [#allocation4], 16
  %24 = sfence
  $region1: #{essay_model_forward.1} parent=0
    #allocation6 [shape = 'u8[4096]{0}', space=vmem, size = 0x1000, scoped, tag = 'input window, operand 2, single buffered']
    #allocation7 [shape = 's32[1]{0}', space=sflag, size = 0x4, scoped, tag = 'scoped memory for essay_model_forward.1']
    #allocation8 [shape = 's32[1]{0}', space=sflag, size = 0x4, scoped, tag = 'scoped memory for essay_model_forward.1']
    #allocation9 [shape = 'u8[1179648]{0}', space=vmem, size = 0x120000, scoped, tag = 'input window, operand 3, single buffered']
    #allocation10 [shape = 's32[1]{0}', space=sflag, size = 0x4, scoped, tag = 'scoped memory for essay_model_forward.1']
    #allocation11 [shape = 'u8[3072]{0}', space=vmem, size = 0xc00, scoped, tag = 'input window, operand 4, single buffered']
    #allocation12 [shape = 'u8[1179648]{0}', space=vmem, size = 0x120000, scoped, tag = 'input window, operand 5, single buffered']
    #allocation13 [shape = 's32[1]{0}', space=sflag, size = 0x4, scoped, tag = 'scoped memory for essay_model_forward.1']
    #allocation14 [shape = 'u8[49152]{0}', space=vmem, size = 0xc000, scoped, tag = 'input window, operand 6, single buffered']
    #allocation15 [shape = 'u8[3072]{0}', space=vmem, size = 0xc00, scoped, tag = 'input window, operand 7, single buffered']
    #allocation16 [shape = 's32[1]{0}', space=sflag, size = 0x4, scoped, tag = 'scoped memory for essay_model_forward.1']
    #allocation17 [shape = 'u8[196608]{0}', space=vmem, size = 0x30000, scoped, tag = 'input window, operand 8, single buffered']
    #allocation18 [shape = 'u8[512]{0}', space=vmem, size = 0x400, scoped, tag = 'input window, operand 9, single buffered']
    #allocation19 [shape = 's32[1]{0}', space=sflag, size = 0x4, scoped, tag = 'scoped memory for essay_model_forward.1']
    #allocation20 [shape = 'u8[24576]{0}', space=vmem, size = 0x6000, scoped, tag = 'output window, operand 0, single buffered']
    %25 = vsyncpa [#allocation7], 0
    %26 = vsyncpa [#allocation10], 0
    %27 = vsyncpa [#allocation13], 0
    %28 = vsyncpa [#allocation16], 0
    %29 = vsyncpa [#allocation19], 0
    %30 = vsyncpa [#allocation8], 0
    // Predicated region
    $region2: #{essay_model_forward.1} parent=1 // pred_check
      _
    $region3: #{essay_model_forward.1} parent=1 // pred_check_branch
      %32 = sbr.rel (0) target = $region5
    $region4: #{essay_model_forward.1} parent=1 // pred_region
      %34 = vsyncadd [#allocation7], 0
      %s36 = sshll.u32 %s2, 4
      %s37 = int_to_ptr.hbm [resolvable:$true] %s36
      %s38 = sshll.u32 [#allocation6], 4
      %s39 = int_to_ptr.vmem [resolvable:$true] %s38
      %41 = dma.hbm_to_vmem [thread:$0]  %s37, 128, %s39, [#allocation7]
    $region5: #{essay_model_forward.1} parent=1 // pred_fallthru
      _
    // Predicated region
    $region6: #{essay_model_forward.1} parent=1 // pred_check
      _
    $region7: #{essay_model_forward.1} parent=1 // pred_check_branch
      %43 = sbr.rel (0) target = $region9
    $region8: #{essay_model_forward.1} parent=1 // pred_region
      %45 = vsyncadd [#allocation10], 0
      %s46 = sshll.u32 %s3, 4
      %s47 = int_to_ptr.hbm [resolvable:$true] %s46
      %s48 = sshll.u32 [#allocation9], 4
      %s49 = int_to_ptr.vmem [resolvable:$true] %s48
      %54 = dma.hbm_to_vmem [thread:$0]  %s47, 36864, %s49, [#allocation10], 384, 384, 24
    $region9: #{essay_model_forward.1} parent=1 // pred_fallthru
      _
    // Predicated region
    $region10: #{essay_model_forward.1} parent=1 // pred_check
      _
    $region11: #{essay_model_forward.1} parent=1 // pred_check_branch
      %56 = sbr.rel (0) target = $region13
    $region12: #{essay_model_forward.1} parent=1 // pred_region
      %58 = vsyncadd [#allocation10], 0
      %s60 = sshll.u32 %s4, 4
      %s61 = int_to_ptr.hbm [resolvable:$true] %s60
      %s62 = sshll.u32 [#allocation11], 4
      %s63 = int_to_ptr.vmem [resolvable:$true] %s62
      %65 = dma.hbm_to_vmem [thread:$0]  %s61, 96, %s63, [#allocation10]
    $region13: #{essay_model_forward.1} parent=1 // pred_fallthru
      _
    // Predicated region
    $region14: #{essay_model_forward.1} parent=1 // pred_check
      _
    $region15: #{essay_model_forward.1} parent=1 // pred_check_branch
      %67 = sbr.rel (0) target = $region17
    $region16: #{essay_model_forward.1} parent=1 // pred_region
      %69 = vsyncadd [#allocation13], 0
      %s70 = sshll.u32 %s5, 4
      %s71 = int_to_ptr.hbm [resolvable:$true] %s70
      %s72 = sshll.u32 [#allocation12], 4
      %s73 = int_to_ptr.vmem [resolvable:$true] %s72
      %78 = dma.hbm_to_vmem [thread:$0]  %s71, 36864, %s73, [#allocation13], 384, 384, 24
    $region17: #{essay_model_forward.1} parent=1 // pred_fallthru
      _
    // Predicated region
    $region18: #{essay_model_forward.1} parent=1 // pred_check
      _
    $region19: #{essay_model_forward.1} parent=1 // pred_check_branch
      %80 = sbr.rel (0) target = $region21
    $region20: #{essay_model_forward.1} parent=1 // pred_region
      %82 = vsyncadd [#allocation13], 0
      %s83 = sshll.u32 %s6, 4
      %s84 = int_to_ptr.hbm [resolvable:$true] %s83
      %s85 = sshll.u32 [#allocation14], 4
      %s86 = int_to_ptr.vmem [resolvable:$true] %s85
      %91 = dma.hbm_to_vmem [thread:$0]  %s84, 1536, %s86, [#allocation13], 384, 384, 24
    $region21: #{essay_model_forward.1} parent=1 // pred_fallthru
      _
    // Predicated region
    $region22: #{essay_model_forward.1} parent=1 // pred_check
      _
    $region23: #{essay_model_forward.1} parent=1 // pred_check_branch
      %93 = sbr.rel (0) target = $region25
    $region24: #{essay_model_forward.1} parent=1 // pred_region
      %95 = vsyncadd [#allocation16], 0
      %s97 = sshll.u32 %s7, 4
      %s98 = int_to_ptr.hbm [resolvable:$true] %s97
      %s99 = sshll.u32 [#allocation15], 4
      %s100 = int_to_ptr.vmem [resolvable:$true] %s99
      %102 = dma.hbm_to_vmem [thread:$0]  %s98, 96, %s100, [#allocation16]
    $region25: #{essay_model_forward.1} parent=1 // pred_fallthru
      _
    // Predicated region
    $region26: #{essay_model_forward.1} parent=1 // pred_check
      _
    $region27: #{essay_model_forward.1} parent=1 // pred_check_branch
      %104 = sbr.rel (0) target = $region29
    $region28: #{essay_model_forward.1} parent=1 // pred_region
      %106 = vsyncadd [#allocation16], 0
      %s107 = sshll.u32 %s8, 4
      %s108 = int_to_ptr.hbm [resolvable:$true] %s107
      %s109 = sshll.u32 [#allocation17], 4
      %s110 = int_to_ptr.vmem [resolvable:$true] %s109
      %115 = dma.hbm_to_vmem [thread:$0]  %s108, 6144, %s110, [#allocation16], 64, 64, 4
    $region29: #{essay_model_forward.1} parent=1 // pred_fallthru
      _
    // Predicated region
    $region30: #{essay_model_forward.1} parent=1 // pred_check
      _
    $region31: #{essay_model_forward.1} parent=1 // pred_check_branch
      %117 = sbr.rel (0) target = $region33
    $region32: #{essay_model_forward.1} parent=1 // pred_region
      %119 = vsyncadd [#allocation19], 0
      %s121 = sshll.u32 %s9, 4
      %s122 = int_to_ptr.hbm [resolvable:$true] %s121
      %s123 = sshll.u32 [#allocation18], 4
      %s124 = int_to_ptr.vmem [resolvable:$true] %s123
      %126 = dma.hbm_to_vmem [thread:$0]  %s122, 16, %s124, [#allocation19]
    $region33: #{essay_model_forward.1} parent=1 // pred_fallthru
      _
    // Predicated region
    $region34: #{essay_model_forward.1} parent=1 // pred_check
      _
    $region35: #{essay_model_forward.1} parent=1 // pred_check_branch
      %128 = sbr.rel (0) target = $region37
    $region36: #{essay_model_forward.1} parent=1 // pred_region
      %130 = dma.done [#allocation7], 128
    $region37: #{essay_model_forward.1} parent=1 // pred_fallthru
      _
    // Predicated region
    $region38: #{essay_model_forward.1} parent=1 // pred_check
      _
    $region39: #{essay_model_forward.1} parent=1 // pred_check_branch
      %132 = sbr.rel (0) target = $region41
    $region40: #{essay_model_forward.1} parent=1 // pred_region
      %134 = dma.done [#allocation10], 36864
    $region41: #{essay_model_forward.1} parent=1 // pred_fallthru
      _
    // Predicated region
    $region42: #{essay_model_forward.1} parent=1 // pred_check
      _
    $region43: #{essay_model_forward.1} parent=1 // pred_check_branch
      %136 = sbr.rel (0) target = $region45
    $region44: #{essay_model_forward.1} parent=1 // pred_region
      %138 = dma.done [#allocation10], 96
    $region45: #{essay_model_forward.1} parent=1 // pred_fallthru
      _
    // Predicated region
    $region46: #{essay_model_forward.1} parent=1 // pred_check
      _
    $region47: #{essay_model_forward.1} parent=1 // pred_check_branch
      %140 = sbr.rel (0) target = $region49
    $region48: #{essay_model_forward.1} parent=1 // pred_region
      %142 = dma.done [#allocation13], 36864
    $region49: #{essay_model_forward.1} parent=1 // pred_fallthru
      _
    // Predicated region
    $region50: #{essay_model_forward.1} parent=1 // pred_check
      _
    $region51: #{essay_model_forward.1} parent=1 // pred_check_branch
      %144 = sbr.rel (0) target = $region53
    $region52: #{essay_model_forward.1} parent=1 // pred_region
      %146 = dma.done [#allocation13], 1536
    $region53: #{essay_model_forward.1} parent=1 // pred_fallthru
      _
    // Predicated region
    $region54: #{essay_model_forward.1} parent=1 // pred_check
      _
    $region55: #{essay_model_forward.1} parent=1 // pred_check_branch
      %148 = sbr.rel (0) target = $region57
    $region56: #{essay_model_forward.1} parent=1 // pred_region
      %150 = dma.done [#allocation16], 96
    $region57: #{essay_model_forward.1} parent=1 // pred_fallthru
      _
    // Predicated region
    $region58: #{essay_model_forward.1} parent=1 // pred_check
      _
    $region59: #{essay_model_forward.1} parent=1 // pred_check_branch
      %152 = sbr.rel (0) target = $region61
    $region60: #{essay_model_forward.1} parent=1 // pred_region
      %154 = dma.done [#allocation16], 6144
    $region61: #{essay_model_forward.1} parent=1 // pred_fallthru
      _
    // Predicated region
    $region62: #{essay_model_forward.1} parent=1 // pred_check
      _
    $region63: #{essay_model_forward.1} parent=1 // pred_check_branch
      %156 = sbr.rel (0) target = $region65
    $region64: #{essay_model_forward.1} parent=1 // pred_region
      %158 = dma.done [#allocation19], 16
    $region65: #{essay_model_forward.1} parent=1 // pred_fallthru
      _
    %s160 = smul.u32 0, 8
    loop: start=0, step=1, limit=8
    $region66: #{essay_model_forward.1} parent=1 // loop_pre_header
      _
    $region67: #{essay_model_forward.1} parent=1 // loop_header
      %s162 = sphi 0, %s166
      %p163 = scmp.ge.s32.totalorder %s162, 8
    $region68: #{essay_model_forward.1} parent=1 // loop_header_branch
      %165 = sbr.rel (%p163) target = $region72
    $region69: #{essay_model_forward.1} parent=1 // loop_body
      %s167 = sadd.s32 %s160, %s162
      %s168 = sld [smem:[#allocation5 + %s167]]
      %s169 = sshrl.u32 %s168, 3
      %s170 = sand.u32 %s168, 7
      %s171 = smul.u32 %s169, 48
      %s172 = sadd.s32 %s170, %s171
      %s173 = scalar_lea.hbm %s1, %s172
      %s174 = sshrl.u32 %s162, 3
      %s175 = sand.u32 %s162, 7
      %s176 = smul.u32 %s174, 48
      %s177 = sadd.s32 %s175, %s176
      %s178 = scalar_lea.vmem [#allocation2], %s177
      %s179 = sshll.u32 %s173, 4
      %s180 = int_to_ptr.hbm [resolvable:$true] %s179
      %s181 = sshll.u32 %s178, 4
      %s182 = int_to_ptr.vmem [resolvable:$true] %s181
      %186 = dma.hbm_to_vmem [thread:$0]  %s180, 96, %s182, [#allocation3], 128, 128, 1
    $region70: #{essay_model_forward.1} parent=1 // loop_footer
      %s166 = sadd.s32 1, %s162
    $region71: #{essay_model_forward.1} parent=1 // loop_footer_branch
      %161 = sbr.rel target = $region67
    $region72: #{essay_model_forward.1} parent=1 // loop_exit
      _
    loop: start=0, step=1, limit=8
    $region73: #{essay_model_forward.1} parent=1 // loop_pre_header
      _
    $region74: #{essay_model_forward.1} parent=1 // loop_header
      %s188 = sphi 0, %s192
      %p189 = scmp.ge.s32.totalorder %s188, 8
    $region75: #{essay_model_forward.1} parent=1 // loop_header_branch
      %191 = sbr.rel (%p189) target = $region79
    $region76: #{essay_model_forward.1} parent=1 // loop_body
      %194 = dma.done [#allocation3], 96
    $region77: #{essay_model_forward.1} parent=1 // loop_footer
      %s192 = sadd.s32 1, %s188
    $region78: #{essay_model_forward.1} parent=1 // loop_footer_branch
      %187 = sbr.rel target = $region74
    $region79: #{essay_model_forward.1} parent=1 // loop_exit
      _
    %v195 = vld [vmem:[#allocation2] sm:$0xff]
    %v196 = vld [vmem:[#allocation2 + $0x8] sm:$0xff]
    %v197 = vld [vmem:[#allocation2 + $0x10] sm:$0xff]
    %v198 = vld [vmem:[#allocation2 + $0x18] sm:$0xff]
    %v199 = vld [vmem:[#allocation2 + $0x20] sm:$0xff]
    %v200 = vld [vmem:[#allocation2 + $0x28] sm:$0xff]
    %v201 = vpack.c.bf16 %v195, %v195
    %v202 = vpack.c.bf16 %v196, %v196
    %v203 = vpack.c.bf16 %v197, %v197
    %v204 = vpack.c.bf16 %v198, %v198
    %v205 = vpack.c.bf16 %v199, %v199
    %v206 = vpack.c.bf16 %v200, %v200
    %v207 = vld [vmem:[#allocation9] sm:$0xff]
    %v208 = vld [vmem:[#allocation9 + $0x8] sm:$0xff]
    %v209 = vld [vmem:[#allocation9 + $0x10] sm:$0xff]
    %v210 = vld [vmem:[#allocation9 + $0x18] sm:$0xff]
    %v211 = vld [vmem:[#allocation9 + $0x20] sm:$0xff]
    %v212 = vld [vmem:[#allocation9 + $0x28] sm:$0xff]
    %v213 = vld [vmem:[#allocation9 + $0x30] sm:$0xff]
    %v214 = vld [vmem:[#allocation9 + $0x38] sm:$0xff]
    %v215 = vld [vmem:[#allocation9 + $0x40] sm:$0xff]
    %v216 = vld [vmem:[#allocation9 + $0x48] sm:$0xff]
    %v217 = vld [vmem:[#allocation9 + $0x50] sm:$0xff]
    %v218 = vld [vmem:[#allocation9 + $0x58] sm:$0xff]
    %v219 = vld [vmem:[#allocation9 + $0x60] sm:$0xff]
    %v220 = vld [vmem:[#allocation9 + $0x68] sm:$0xff]
    %v221 = vld [vmem:[#allocation9 + $0x70] sm:$0xff]
    %v222 = vld [vmem:[#allocation9 + $0x78] sm:$0xff]
    %v223 = vld [vmem:[#allocation9 + $0x80] sm:$0xff]
    %v224 = vld [vmem:[#allocation9 + $0x88] sm:$0xff]
    %v225 = vld [vmem:[#allocation9 + $0x90] sm:$0xff]
    %v226 = vld [vmem:[#allocation9 + $0x98] sm:$0xff]
    %v227 = vld [vmem:[#allocation9 + $0xa0] sm:$0xff]
    %v228 = vld [vmem:[#allocation9 + $0xa8] sm:$0xff]
    %v229 = vld [vmem:[#allocation9 + $0xb0] sm:$0xff]
    %v230 = vld [vmem:[#allocation9 + $0xb8] sm:$0xff]
    %v231 = vld [vmem:[#allocation9 + $0xc0] sm:$0xff]
    %v232 = vld [vmem:[#allocation9 + $0xc8] sm:$0xff]
    %v233 = vld [vmem:[#allocation9 + $0xd0] sm:$0xff]
    %v234 = vld [vmem:[#allocation9 + $0xd8] sm:$0xff]
    %v235 = vld [vmem:[#allocation9 + $0xe0] sm:$0xff]
    %v236 = vld [vmem:[#allocation9 + $0xe8] sm:$0xff]
    %v237 = vld [vmem:[#allocation9 + $0xf0] sm:$0xff]
    %v238 = vld [vmem:[#allocation9 + $0xf8] sm:$0xff]
    %v239 = vld [vmem:[#allocation9 + $0x100] sm:$0xff]
    %v240 = vld [vmem:[#allocation9 + $0x108] sm:$0xff]
    %v241 = vld [vmem:[#allocation9 + $0x110] sm:$0xff]
    %v242 = vld [vmem:[#allocation9 + $0x118] sm:$0xff]
    %v243 = vld [vmem:[#allocation9 + $0x120] sm:$0xff]
    %v244 = vld [vmem:[#allocation9 + $0x128] sm:$0xff]
    %v245 = vld [vmem:[#allocation9 + $0x130] sm:$0xff]
    %v246 = vld [vmem:[#allocation9 + $0x138] sm:$0xff]
    %v247 = vld [vmem:[#allocation9 + $0x140] sm:$0xff]
    %v248 = vld [vmem:[#allocation9 + $0x148] sm:$0xff]
    %v249 = vld [vmem:[#allocation9 + $0x150] sm:$0xff]
    %v250 = vld [vmem:[#allocation9 + $0x158] sm:$0xff]
    %v251 = vld [vmem:[#allocation9 + $0x160] sm:$0xff]
    %v252 = vld [vmem:[#allocation9 + $0x168] sm:$0xff]
    %v253 = vld [vmem:[#allocation9 + $0x170] sm:$0xff]
    %v254 = vld [vmem:[#allocation9 + $0x178] sm:$0xff]
    %v255 = vld [vmem:[#allocation9 + $0x180] sm:$0xff]
    %v256 = vld [vmem:[#allocation9 + $0x188] sm:$0xff]
    %v257 = vld [vmem:[#allocation9 + $0x190] sm:$0xff]
    %v258 = vld [vmem:[#allocation9 + $0x198] sm:$0xff]
    %v259 = vld [vmem:[#allocation9 + $0x1a0] sm:$0xff]
    %v260 = vld [vmem:[#allocation9 + $0x1a8] sm:$0xff]
    %v261 = vld [vmem:[#allocation9 + $0x1b0] sm:$0xff]
    %v262 = vld [vmem:[#allocation9 + $0x1b8] sm:$0xff]
    %v263 = vld [vmem:[#allocation9 + $0x1c0] sm:$0xff]
    %v264 = vld [vmem:[#allocation9 + $0x1c8] sm:$0xff]
    %v265 = vld [vmem:[#allocation9 + $0x1d0] sm:$0xff]
    %v266 = vld [vmem:[#allocation9 + $0x1d8] sm:$0xff]
    %v267 = vld [vmem:[#allocation9 + $0x1e0] sm:$0xff]
    %v268 = vld [vmem:[#allocation9 + $0x1e8] sm:$0xff]
    %v269 = vld [vmem:[#allocation9 + $0x1f0] sm:$0xff]
    %v270 = vld [vmem:[#allocation9 + $0x1f8] sm:$0xff]
    %v271 = vld [vmem:[#allocation9 + $0x200] sm:$0xff]
    %v272 = vld [vmem:[#allocation9 + $0x208] sm:$0xff]
    %v273 = vld [vmem:[#allocation9 + $0x210] sm:$0xff]
    %v274 = vld [vmem:[#allocation9 + $0x218] sm:$0xff]
    %v275 = vld [vmem:[#allocation9 + $0x220] sm:$0xff]
    %v276 = vld [vmem:[#allocation9 + $0x228] sm:$0xff]
    %v277 = vld [vmem:[#allocation9 + $0x230] sm:$0xff]
    %v278 = vld [vmem:[#allocation9 + $0x238] sm:$0xff]
    %v279 = vld [vmem:[#allocation9 + $0x240] sm:$0xff]
    %v280 = vld [vmem:[#allocation9 + $0x248] sm:$0xff]
    %v281 = vld [vmem:[#allocation9 + $0x250] sm:$0xff]
    %v282 = vld [vmem:[#allocation9 + $0x258] sm:$0xff]
    %v283 = vld [vmem:[#allocation9 + $0x260] sm:$0xff]
    %v284 = vld [vmem:[#allocation9 + $0x268] sm:$0xff]
    %v285 = vld [vmem:[#allocation9 + $0x270] sm:$0xff]
    %v286 = vld [vmem:[#allocation9 + $0x278] sm:$0xff]
    %v287 = vld [vmem:[#allocation9 + $0x280] sm:$0xff]
    %v288 = vld [vmem:[#allocation9 + $0x288] sm:$0xff]
    %v289 = vld [vmem:[#allocation9 + $0x290] sm:$0xff]
    %v290 = vld [vmem:[#allocation9 + $0x298] sm:$0xff]
    %v291 = vld [vmem:[#allocation9 + $0x2a0] sm:$0xff]
    %v292 = vld [vmem:[#allocation9 + $0x2a8] sm:$0xff]
    %v293 = vld [vmem:[#allocation9 + $0x2b0] sm:$0xff]
    %v294 = vld [vmem:[#allocation9 + $0x2b8] sm:$0xff]
    %v295 = vld [vmem:[#allocation9 + $0x2c0] sm:$0xff]
    %v296 = vld [vmem:[#allocation9 + $0x2c8] sm:$0xff]
    %v297 = vld [vmem:[#allocation9 + $0x2d0] sm:$0xff]
    %v298 = vld [vmem:[#allocation9 + $0x2d8] sm:$0xff]
    %v299 = vld [vmem:[#allocation9 + $0x2e0] sm:$0xff]
    %v300 = vld [vmem:[#allocation9 + $0x2e8] sm:$0xff]
    %v301 = vld [vmem:[#allocation9 + $0x2f0] sm:$0xff]
    %v302 = vld [vmem:[#allocation9 + $0x2f8] sm:$0xff]
    %v303 = vld [vmem:[#allocation9 + $0x300] sm:$0xff]
    %v304 = vld [vmem:[#allocation9 + $0x308] sm:$0xff]
    %v305 = vld [vmem:[#allocation9 + $0x310] sm:$0xff]
    %v306 = vld [vmem:[#allocation9 + $0x318] sm:$0xff]
    %v307 = vld [vmem:[#allocation9 + $0x320] sm:$0xff]
    %v308 = vld [vmem:[#allocation9 + $0x328] sm:$0xff]
    %v309 = vld [vmem:[#allocation9 + $0x330] sm:$0xff]
    %v310 = vld [vmem:[#allocation9 + $0x338] sm:$0xff]
    %v311 = vld [vmem:[#allocation9 + $0x340] sm:$0xff]
    %v312 = vld [vmem:[#allocation9 + $0x348] sm:$0xff]
    %v313 = vld [vmem:[#allocation9 + $0x350] sm:$0xff]
    %v314 = vld [vmem:[#allocation9 + $0x358] sm:$0xff]
    %v315 = vld [vmem:[#allocation9 + $0x360] sm:$0xff]
    %v316 = vld [vmem:[#allocation9 + $0x368] sm:$0xff]
    %v317 = vld [vmem:[#allocation9 + $0x370] sm:$0xff]
    %v318 = vld [vmem:[#allocation9 + $0x378] sm:$0xff]
    %v319 = vld [vmem:[#allocation9 + $0x380] sm:$0xff]
    %v320 = vld [vmem:[#allocation9 + $0x388] sm:$0xff]
    %v321 = vld [vmem:[#allocation9 + $0x390] sm:$0xff]
    %v322 = vld [vmem:[#allocation9 + $0x398] sm:$0xff]
    %v323 = vld [vmem:[#allocation9 + $0x3a0] sm:$0xff]
    %v324 = vld [vmem:[#allocation9 + $0x3a8] sm:$0xff]
    %v325 = vld [vmem:[#allocation9 + $0x3b0] sm:$0xff]
    %v326 = vld [vmem:[#allocation9 + $0x3b8] sm:$0xff]
    %v327 = vld [vmem:[#allocation9 + $0x3c0] sm:$0xff]
    %v328 = vld [vmem:[#allocation9 + $0x3c8] sm:$0xff]
    %v329 = vld [vmem:[#allocation9 + $0x3d0] sm:$0xff]
    %v330 = vld [vmem:[#allocation9 + $0x3d8] sm:$0xff]
    %v331 = vld [vmem:[#allocation9 + $0x3e0] sm:$0xff]
    %v332 = vld [vmem:[#allocation9 + $0x3e8] sm:$0xff]
    %v333 = vld [vmem:[#allocation9 + $0x3f0] sm:$0xff]
    %v334 = vld [vmem:[#allocation9 + $0x3f8] sm:$0xff]
    %v335 = vld [vmem:[#allocation9 + $0x400] sm:$0xff]
    %v336 = vld [vmem:[#allocation9 + $0x408] sm:$0xff]
    %v337 = vld [vmem:[#allocation9 + $0x410] sm:$0xff]
    %v338 = vld [vmem:[#allocation9 + $0x418] sm:$0xff]
    %v339 = vld [vmem:[#allocation9 + $0x420] sm:$0xff]
    %v340 = vld [vmem:[#allocation9 + $0x428] sm:$0xff]
    %v341 = vld [vmem:[#allocation9 + $0x430] sm:$0xff]
    %v342 = vld [vmem:[#allocation9 + $0x438] sm:$0xff]
    %v343 = vld [vmem:[#allocation9 + $0x440] sm:$0xff]
    %v344 = vld [vmem:[#allocation9 + $0x448] sm:$0xff]
    %v345 = vld [vmem:[#allocation9 + $0x450] sm:$0xff]
    %v346 = vld [vmem:[#allocation9 + $0x458] sm:$0xff]
    %v347 = vld [vmem:[#allocation9 + $0x460] sm:$0xff]
    %v348 = vld [vmem:[#allocation9 + $0x468] sm:$0xff]
    %v349 = vld [vmem:[#allocation9 + $0x470] sm:$0xff]
    %v350 = vld [vmem:[#allocation9 + $0x478] sm:$0xff]
    %v351 = vld [vmem:[#allocation9 + $0x480] sm:$0xff]
    %v352 = vld [vmem:[#allocation9 + $0x488] sm:$0xff]
    %v353 = vld [vmem:[#allocation9 + $0x490] sm:$0xff]
    %v354 = vld [vmem:[#allocation9 + $0x498] sm:$0xff]
    %v355 = vld [vmem:[#allocation9 + $0x4a0] sm:$0xff]
    %v356 = vld [vmem:[#allocation9 + $0x4a8] sm:$0xff]
    %v357 = vld [vmem:[#allocation9 + $0x4b0] sm:$0xff]
    %v358 = vld [vmem:[#allocation9 + $0x4b8] sm:$0xff]
    %v359 = vld [vmem:[#allocation9 + $0x4c0] sm:$0xff]
    %v360 = vld [vmem:[#allocation9 + $0x4c8] sm:$0xff]
    %v361 = vld [vmem:[#allocation9 + $0x4d0] sm:$0xff]
    %v362 = vld [vmem:[#allocation9 + $0x4d8] sm:$0xff]
    %v363 = vld [vmem:[#allocation9 + $0x4e0] sm:$0xff]
    %v364 = vld [vmem:[#allocation9 + $0x4e8] sm:$0xff]
    %v365 = vld [vmem:[#allocation9 + $0x4f0] sm:$0xff]
    %v366 = vld [vmem:[#allocation9 + $0x4f8] sm:$0xff]
    %v367 = vld [vmem:[#allocation9 + $0x500] sm:$0xff]
    %v368 = vld [vmem:[#allocation9 + $0x508] sm:$0xff]
    %v369 = vld [vmem:[#allocation9 + $0x510] sm:$0xff]
    %v370 = vld [vmem:[#allocation9 + $0x518] sm:$0xff]
    %v371 = vld [vmem:[#allocation9 + $0x520] sm:$0xff]
    %v372 = vld [vmem:[#allocation9 + $0x528] sm:$0xff]
    %v373 = vld [vmem:[#allocation9 + $0x530] sm:$0xff]
    %v374 = vld [vmem:[#allocation9 + $0x538] sm:$0xff]
    %v375 = vld [vmem:[#allocation9 + $0x540] sm:$0xff]
    %v376 = vld [vmem:[#allocation9 + $0x548] sm:$0xff]
    %v377 = vld [vmem:[#allocation9 + $0x550] sm:$0xff]
    %v378 = vld [vmem:[#allocation9 + $0x558] sm:$0xff]
    %v379 = vld [vmem:[#allocation9 + $0x560] sm:$0xff]
    %v380 = vld [vmem:[#allocation9 + $0x568] sm:$0xff]
    %v381 = vld [vmem:[#allocation9 + $0x570] sm:$0xff]
    %v382 = vld [vmem:[#allocation9 + $0x578] sm:$0xff]
    %v383 = vld [vmem:[#allocation9 + $0x580] sm:$0xff]
    %v384 = vld [vmem:[#allocation9 + $0x588] sm:$0xff]
    %v385 = vld [vmem:[#allocation9 + $0x590] sm:$0xff]
    %v386 = vld [vmem:[#allocation9 + $0x598] sm:$0xff]
    %v387 = vld [vmem:[#allocation9 + $0x5a0] sm:$0xff]
    %v388 = vld [vmem:[#allocation9 + $0x5a8] sm:$0xff]
    %v389 = vld [vmem:[#allocation9 + $0x5b0] sm:$0xff]
    %v390 = vld [vmem:[#allocation9 + $0x5b8] sm:$0xff]
    %v391 = vld [vmem:[#allocation9 + $0x5c0] sm:$0xff]
    %v392 = vld [vmem:[#allocation9 + $0x5c8] sm:$0xff]
    %v393 = vld [vmem:[#allocation9 + $0x5d0] sm:$0xff]
    %v394 = vld [vmem:[#allocation9 + $0x5d8] sm:$0xff]
    %v395 = vld [vmem:[#allocation9 + $0x5e0] sm:$0xff]
    %v396 = vld [vmem:[#allocation9 + $0x5e8] sm:$0xff]
    %v397 = vld [vmem:[#allocation9 + $0x5f0] sm:$0xff]
    %v398 = vld [vmem:[#allocation9 + $0x5f8] sm:$0xff]
    %v399 = vld [vmem:[#allocation9 + $0x600] sm:$0xff]
    %v400 = vld [vmem:[#allocation9 + $0x608] sm:$0xff]
    %v401 = vld [vmem:[#allocation9 + $0x610] sm:$0xff]
    %v402 = vld [vmem:[#allocation9 + $0x618] sm:$0xff]
    %v403 = vld [vmem:[#allocation9 + $0x620] sm:$0xff]
    %v404 = vld [vmem:[#allocation9 + $0x628] sm:$0xff]
    %v405 = vld [vmem:[#allocation9 + $0x630] sm:$0xff]
    %v406 = vld [vmem:[#allocation9 + $0x638] sm:$0xff]
    %v407 = vld [vmem:[#allocation9 + $0x640] sm:$0xff]
    %v408 = vld [vmem:[#allocation9 + $0x648] sm:$0xff]
    %v409 = vld [vmem:[#allocation9 + $0x650] sm:$0xff]
    %v410 = vld [vmem:[#allocation9 + $0x658] sm:$0xff]
    %v411 = vld [vmem:[#allocation9 + $0x660] sm:$0xff]
    %v412 = vld [vmem:[#allocation9 + $0x668] sm:$0xff]
    %v413 = vld [vmem:[#allocation9 + $0x670] sm:$0xff]
    %v414 = vld [vmem:[#allocation9 + $0x678] sm:$0xff]
    %v415 = vld [vmem:[#allocation9 + $0x680] sm:$0xff]
    %v416 = vld [vmem:[#allocation9 + $0x688] sm:$0xff]
    %v417 = vld [vmem:[#allocation9 + $0x690] sm:$0xff]
    %v418 = vld [vmem:[#allocation9 + $0x698] sm:$0xff]
    %v419 = vld [vmem:[#allocation9 + $0x6a0] sm:$0xff]
    %v420 = vld [vmem:[#allocation9 + $0x6a8] sm:$0xff]
    %v421 = vld [vmem:[#allocation9 + $0x6b0] sm:$0xff]
    %v422 = vld [vmem:[#allocation9 + $0x6b8] sm:$0xff]
    %v423 = vld [vmem:[#allocation9 + $0x6c0] sm:$0xff]
    %v424 = vld [vmem:[#allocation9 + $0x6c8] sm:$0xff]
    %v425 = vld [vmem:[#allocation9 + $0x6d0] sm:$0xff]
    %v426 = vld [vmem:[#allocation9 + $0x6d8] sm:$0xff]
    %v427 = vld [vmem:[#allocation9 + $0x6e0] sm:$0xff]
    %v428 = vld [vmem:[#allocation9 + $0x6e8] sm:$0xff]
    %v429 = vld [vmem:[#allocation9 + $0x6f0] sm:$0xff]
    %v430 = vld [vmem:[#allocation9 + $0x6f8] sm:$0xff]
    %v431 = vld [vmem:[#allocation9 + $0x700] sm:$0xff]
    %v432 = vld [vmem:[#allocation9 + $0x708] sm:$0xff]
    %v433 = vld [vmem:[#allocation9 + $0x710] sm:$0xff]
    %v434 = vld [vmem:[#allocation9 + $0x718] sm:$0xff]
    %v435 = vld [vmem:[#allocation9 + $0x720] sm:$0xff]
    %v436 = vld [vmem:[#allocation9 + $0x728] sm:$0xff]
    %v437 = vld [vmem:[#allocation9 + $0x730] sm:$0xff]
    %v438 = vld [vmem:[#allocation9 + $0x738] sm:$0xff]
    %v439 = vld [vmem:[#allocation9 + $0x740] sm:$0xff]
    %v440 = vld [vmem:[#allocation9 + $0x748] sm:$0xff]
    %v441 = vld [vmem:[#allocation9 + $0x750] sm:$0xff]
    %v442 = vld [vmem:[#allocation9 + $0x758] sm:$0xff]
    %v443 = vld [vmem:[#allocation9 + $0x760] sm:$0xff]
    %v444 = vld [vmem:[#allocation9 + $0x768] sm:$0xff]
    %v445 = vld [vmem:[#allocation9 + $0x770] sm:$0xff]
    %v446 = vld [vmem:[#allocation9 + $0x778] sm:$0xff]
    %v447 = vld [vmem:[#allocation9 + $0x780] sm:$0xff]
    %v448 = vld [vmem:[#allocation9 + $0x788] sm:$0xff]
    %v449 = vld [vmem:[#allocation9 + $0x790] sm:$0xff]
    %v450 = vld [vmem:[#allocation9 + $0x798] sm:$0xff]
    %v451 = vld [vmem:[#allocation9 + $0x7a0] sm:$0xff]
    %v452 = vld [vmem:[#allocation9 + $0x7a8] sm:$0xff]
    %v453 = vld [vmem:[#allocation9 + $0x7b0] sm:$0xff]
    %v454 = vld [vmem:[#allocation9 + $0x7b8] sm:$0xff]
    %v455 = vld [vmem:[#allocation9 + $0x7c0] sm:$0xff]
    %v456 = vld [vmem:[#allocation9 + $0x7c8] sm:$0xff]
    %v457 = vld [vmem:[#allocation9 + $0x7d0] sm:$0xff]
    %v458 = vld [vmem:[#allocation9 + $0x7d8] sm:$0xff]
    %v459 = vld [vmem:[#allocation9 + $0x7e0] sm:$0xff]
    %v460 = vld [vmem:[#allocation9 + $0x7e8] sm:$0xff]
    %v461 = vld [vmem:[#allocation9 + $0x7f0] sm:$0xff]
    %v462 = vld [vmem:[#allocation9 + $0x7f8] sm:$0xff]
    %v463 = vld [vmem:[#allocation9 + $0x800] sm:$0xff]
    %v464 = vld [vmem:[#allocation9 + $0x808] sm:$0xff]
    %v465 = vld [vmem:[#allocation9 + $0x810] sm:$0xff]
    %v466 = vld [vmem:[#allocation9 + $0x818] sm:$0xff]
    %v467 = vld [vmem:[#allocation9 + $0x820] sm:$0xff]
    %v468 = vld [vmem:[#allocation9 + $0x828] sm:$0xff]
    %v469 = vld [vmem:[#allocation9 + $0x830] sm:$0xff]
    %v470 = vld [vmem:[#allocation9 + $0x838] sm:$0xff]
    %v471 = vld [vmem:[#allocation9 + $0x840] sm:$0xff]
    %v472 = vld [vmem:[#allocation9 + $0x848] sm:$0xff]
    %v473 = vld [vmem:[#allocation9 + $0x850] sm:$0xff]
    %v474 = vld [vmem:[#allocation9 + $0x858] sm:$0xff]
    %v475 = vld [vmem:[#allocation9 + $0x860] sm:$0xff]
    %v476 = vld [vmem:[#allocation9 + $0x868] sm:$0xff]
    %v477 = vld [vmem:[#allocation9 + $0x870] sm:$0xff]
    %v478 = vld [vmem:[#allocation9 + $0x878] sm:$0xff]
    %v479 = vld [vmem:[#allocation9 + $0x880] sm:$0xff]
    %v480 = vld [vmem:[#allocation9 + $0x888] sm:$0xff]
    %v481 = vld [vmem:[#allocation9 + $0x890] sm:$0xff]
    %v482 = vld [vmem:[#allocation9 + $0x898] sm:$0xff]
    %v483 = vld [vmem:[#allocation9 + $0x8a0] sm:$0xff]
    %v484 = vld [vmem:[#allocation9 + $0x8a8] sm:$0xff]
    %v485 = vld [vmem:[#allocation9 + $0x8b0] sm:$0xff]
    %v486 = vld [vmem:[#allocation9 + $0x8b8] sm:$0xff]
    %v487 = vld [vmem:[#allocation9 + $0x8c0] sm:$0xff]
    %v488 = vld [vmem:[#allocation9 + $0x8c8] sm:$0xff]
    %v489 = vld [vmem:[#allocation9 + $0x8d0] sm:$0xff]
    %v490 = vld [vmem:[#allocation9 + $0x8d8] sm:$0xff]
    %v491 = vld [vmem:[#allocation9 + $0x8e0] sm:$0xff]
    %v492 = vld [vmem:[#allocation9 + $0x8e8] sm:$0xff]
    %v493 = vld [vmem:[#allocation9 + $0x8f0] sm:$0xff]
    %v494 = vld [vmem:[#allocation9 + $0x8f8] sm:$0xff]
    %v495 = vld [vmem:[#allocation11] sm:$0x3f]
    %v497 = vperm.slane %v495, 0
    %v498 = vperm.slane %v495, 1
    %v499 = vperm.slane %v495, 2
    %v500 = vperm.slane %v495, 3
    %v501 = vperm.slane %v495, 4
    %v502 = vperm.slane %v495, 5
    %v797 = vunpack.c.l.b16 %v207
    %v798 = vunpack.c.h.b16 %v207
    %v799 = vunpack.c.l.b16 %v208
    %v800 = vunpack.c.h.b16 %v208
    %v801 = vunpack.c.l.b16 %v209
    %v802 = vunpack.c.h.b16 %v209
    %v803 = vunpack.c.l.b16 %v210
    %v804 = vunpack.c.h.b16 %v210
    %v805 = vunpack.c.l.b16 %v211
    %v806 = vunpack.c.h.b16 %v211
    %v807 = vunpack.c.l.b16 %v212
    %v808 = vunpack.c.h.b16 %v212
    %v809 = vunpack.c.l.b16 %v213
    %v810 = vunpack.c.h.b16 %v213
    %v811 = vunpack.c.l.b16 %v214
    %v812 = vunpack.c.h.b16 %v214
    %v813 = vunpack.c.l.b16 %v215
    %v814 = vunpack.c.h.b16 %v215
    %v815 = vunpack.c.l.b16 %v216
    %v816 = vunpack.c.h.b16 %v216
    %v817 = vunpack.c.l.b16 %v217
    %v818 = vunpack.c.h.b16 %v217
    %v819 = vunpack.c.l.b16 %v218
    %v820 = vunpack.c.h.b16 %v218
    %v821 = vunpack.c.l.b16 %v219
    %v822 = vunpack.c.h.b16 %v219
    %v823 = vunpack.c.l.b16 %v220
    %v824 = vunpack.c.h.b16 %v220
    %v825 = vunpack.c.l.b16 %v221
    %v826 = vunpack.c.h.b16 %v221
    %v827 = vunpack.c.l.b16 %v222
    %v828 = vunpack.c.h.b16 %v222
    %v829 = vunpack.c.l.b16 %v223
    %v830 = vunpack.c.h.b16 %v223
    %v831 = vunpack.c.l.b16 %v224
    %v832 = vunpack.c.h.b16 %v224
    %v833 = vunpack.c.l.b16 %v225
    %v834 = vunpack.c.h.b16 %v225
    %v835 = vunpack.c.l.b16 %v226
    %v836 = vunpack.c.h.b16 %v226
    %v837 = vunpack.c.l.b16 %v227
    %v838 = vunpack.c.h.b16 %v227
    %v839 = vunpack.c.l.b16 %v228
    %v840 = vunpack.c.h.b16 %v228
    %v841 = vunpack.c.l.b16 %v229
    %v842 = vunpack.c.h.b16 %v229
    %v843 = vunpack.c.l.b16 %v230
    %v844 = vunpack.c.h.b16 %v230
    %v845 = vunpack.c.l.b16 %v231
    %v846 = vunpack.c.h.b16 %v231
    %v847 = vunpack.c.l.b16 %v232
    %v848 = vunpack.c.h.b16 %v232
    %v849 = vunpack.c.l.b16 %v233
    %v850 = vunpack.c.h.b16 %v233
    %v851 = vunpack.c.l.b16 %v234
    %v852 = vunpack.c.h.b16 %v234
    %v853 = vunpack.c.l.b16 %v235
    %v854 = vunpack.c.h.b16 %v235
    %v855 = vunpack.c.l.b16 %v236
    %v856 = vunpack.c.h.b16 %v236
    %v857 = vunpack.c.l.b16 %v237
    %v858 = vunpack.c.h.b16 %v237
    %v859 = vunpack.c.l.b16 %v238
    %v860 = vunpack.c.h.b16 %v238
    %v861 = vunpack.c.l.b16 %v239
    %v862 = vunpack.c.h.b16 %v239
    %v863 = vunpack.c.l.b16 %v240
    %v864 = vunpack.c.h.b16 %v240
    %v865 = vunpack.c.l.b16 %v241
    %v866 = vunpack.c.h.b16 %v241
    %v867 = vunpack.c.l.b16 %v242
    %v868 = vunpack.c.h.b16 %v242
    %v869 = vunpack.c.l.b16 %v243
    %v870 = vunpack.c.h.b16 %v243
    %v871 = vunpack.c.l.b16 %v244
    %v872 = vunpack.c.h.b16 %v244
    %v873 = vunpack.c.l.b16 %v245
    %v874 = vunpack.c.h.b16 %v245
    %v875 = vunpack.c.l.b16 %v246
    %v876 = vunpack.c.h.b16 %v246
    %v877 = vunpack.c.l.b16 %v247
    %v878 = vunpack.c.h.b16 %v247
    %v879 = vunpack.c.l.b16 %v248
    %v880 = vunpack.c.h.b16 %v248
    %v881 = vunpack.c.l.b16 %v249
    %v882 = vunpack.c.h.b16 %v249
    %v883 = vunpack.c.l.b16 %v250
    %v884 = vunpack.c.h.b16 %v250
    %v885 = vunpack.c.l.b16 %v251
    %v886 = vunpack.c.h.b16 %v251
    %v887 = vunpack.c.l.b16 %v252
    %v888 = vunpack.c.h.b16 %v252
    %v889 = vunpack.c.l.b16 %v253
    %v890 = vunpack.c.h.b16 %v253
    %v891 = vunpack.c.l.b16 %v254
    %v892 = vunpack.c.h.b16 %v254
    %v893 = vunpack.c.l.b16 %v255
    %v894 = vunpack.c.h.b16 %v255
    %v895 = vunpack.c.l.b16 %v256
    %v896 = vunpack.c.h.b16 %v256
    %v897 = vunpack.c.l.b16 %v257
    %v898 = vunpack.c.h.b16 %v257
    %v899 = vunpack.c.l.b16 %v258
    %v900 = vunpack.c.h.b16 %v258
    %v901 = vunpack.c.l.b16 %v259
    %v902 = vunpack.c.h.b16 %v259
    %v903 = vunpack.c.l.b16 %v260
    %v904 = vunpack.c.h.b16 %v260
    %v905 = vunpack.c.l.b16 %v261
    %v906 = vunpack.c.h.b16 %v261
    %v907 = vunpack.c.l.b16 %v262
    %v908 = vunpack.c.h.b16 %v262
    %v909 = vunpack.c.l.b16 %v263
    %v910 = vunpack.c.h.b16 %v263
    %v911 = vunpack.c.l.b16 %v264
    %v912 = vunpack.c.h.b16 %v264
    %v913 = vunpack.c.l.b16 %v265
    %v914 = vunpack.c.h.b16 %v265
    %v915 = vunpack.c.l.b16 %v266
    %v916 = vunpack.c.h.b16 %v266
    %v917 = vunpack.c.l.b16 %v267
    %v918 = vunpack.c.h.b16 %v267
    %v919 = vunpack.c.l.b16 %v268
    %v920 = vunpack.c.h.b16 %v268
    %v921 = vunpack.c.l.b16 %v269
    %v922 = vunpack.c.h.b16 %v269
    %v923 = vunpack.c.l.b16 %v270
    %v924 = vunpack.c.h.b16 %v270
    %v925 = vunpack.c.l.b16 %v271
    %v926 = vunpack.c.h.b16 %v271
    %v927 = vunpack.c.l.b16 %v272
    %v928 = vunpack.c.h.b16 %v272
    %v929 = vunpack.c.l.b16 %v273
    %v930 = vunpack.c.h.b16 %v273
    %v931 = vunpack.c.l.b16 %v274
    %v932 = vunpack.c.h.b16 %v274
    %v933 = vunpack.c.l.b16 %v275
    %v934 = vunpack.c.h.b16 %v275
    %v935 = vunpack.c.l.b16 %v276
    %v936 = vunpack.c.h.b16 %v276
    %v937 = vunpack.c.l.b16 %v277
    %v938 = vunpack.c.h.b16 %v277
    %v939 = vunpack.c.l.b16 %v278
    %v940 = vunpack.c.h.b16 %v278
    %v941 = vunpack.c.l.b16 %v279
    %v942 = vunpack.c.h.b16 %v279
    %v943 = vunpack.c.l.b16 %v280
    %v944 = vunpack.c.h.b16 %v280
    %v945 = vunpack.c.l.b16 %v281
    %v946 = vunpack.c.h.b16 %v281
    %v947 = vunpack.c.l.b16 %v282
    %v948 = vunpack.c.h.b16 %v282
    %v949 = vunpack.c.l.b16 %v283
    %v950 = vunpack.c.h.b16 %v283
    %v951 = vunpack.c.l.b16 %v284
    %v952 = vunpack.c.h.b16 %v284
    %v953 = vunpack.c.l.b16 %v285
    %v954 = vunpack.c.h.b16 %v285
    %v955 = vunpack.c.l.b16 %v286
    %v956 = vunpack.c.h.b16 %v286
    %v957 = vunpack.c.l.b16 %v287
    %v958 = vunpack.c.h.b16 %v287
    %v959 = vunpack.c.l.b16 %v288
    %v960 = vunpack.c.h.b16 %v288
    %v961 = vunpack.c.l.b16 %v289
    %v962 = vunpack.c.h.b16 %v289
    %v963 = vunpack.c.l.b16 %v290
    %v964 = vunpack.c.h.b16 %v290
    %v965 = vunpack.c.l.b16 %v291
    %v966 = vunpack.c.h.b16 %v291
    %v967 = vunpack.c.l.b16 %v292
    %v968 = vunpack.c.h.b16 %v292
    %v969 = vunpack.c.l.b16 %v293
    %v970 = vunpack.c.h.b16 %v293
    %v971 = vunpack.c.l.b16 %v294
    %v972 = vunpack.c.h.b16 %v294
    %v973 = vunpack.c.l.b16 %v295
    %v974 = vunpack.c.h.b16 %v295
    %v975 = vunpack.c.l.b16 %v296
    %v976 = vunpack.c.h.b16 %v296
    %v977 = vunpack.c.l.b16 %v297
    %v978 = vunpack.c.h.b16 %v297
    %v979 = vunpack.c.l.b16 %v298
    %v980 = vunpack.c.h.b16 %v298
    %v981 = vunpack.c.l.b16 %v299
    %v982 = vunpack.c.h.b16 %v299
    %v983 = vunpack.c.l.b16 %v300
    %v984 = vunpack.c.h.b16 %v300
    %v985 = vunpack.c.l.b16 %v301
    %v986 = vunpack.c.h.b16 %v301
    %v987 = vunpack.c.l.b16 %v302
    %v988 = vunpack.c.h.b16 %v302
    %v989 = vunpack.c.l.b16 %v303
    %v990 = vunpack.c.h.b16 %v303
    %v991 = vunpack.c.l.b16 %v304
    %v992 = vunpack.c.h.b16 %v304
    %v993 = vunpack.c.l.b16 %v305
    %v994 = vunpack.c.h.b16 %v305
    %v995 = vunpack.c.l.b16 %v306
    %v996 = vunpack.c.h.b16 %v306
    %v997 = vunpack.c.l.b16 %v307
    %v998 = vunpack.c.h.b16 %v307
    %v999 = vunpack.c.l.b16 %v308
    %v1000 = vunpack.c.h.b16 %v308
    %v1001 = vunpack.c.l.b16 %v309
    %v1002 = vunpack.c.h.b16 %v309
    %v1003 = vunpack.c.l.b16 %v310
    %v1004 = vunpack.c.h.b16 %v310
    %v1005 = vunpack.c.l.b16 %v311
    %v1006 = vunpack.c.h.b16 %v311
    %v1007 = vunpack.c.l.b16 %v312
    %v1008 = vunpack.c.h.b16 %v312
    %v1009 = vunpack.c.l.b16 %v313
    %v1010 = vunpack.c.h.b16 %v313
    %v1011 = vunpack.c.l.b16 %v314
    %v1012 = vunpack.c.h.b16 %v314
    %v1013 = vunpack.c.l.b16 %v315
    %v1014 = vunpack.c.h.b16 %v315
    %v1015 = vunpack.c.l.b16 %v316
    %v1016 = vunpack.c.h.b16 %v316
    %v1017 = vunpack.c.l.b16 %v317
    %v1018 = vunpack.c.h.b16 %v317
    %v1019 = vunpack.c.l.b16 %v318
    %v1020 = vunpack.c.h.b16 %v318
    %v1021 = vunpack.c.l.b16 %v319
    %v1022 = vunpack.c.h.b16 %v319
    %v1023 = vunpack.c.l.b16 %v320
    %v1024 = vunpack.c.h.b16 %v320
    %v1025 = vunpack.c.l.b16 %v321
    %v1026 = vunpack.c.h.b16 %v321
    %v1027 = vunpack.c.l.b16 %v322
    %v1028 = vunpack.c.h.b16 %v322
    %v1029 = vunpack.c.l.b16 %v323
    %v1030 = vunpack.c.h.b16 %v323
    %v1031 = vunpack.c.l.b16 %v324
    %v1032 = vunpack.c.h.b16 %v324
    %v1033 = vunpack.c.l.b16 %v325
    %v1034 = vunpack.c.h.b16 %v325
    %v1035 = vunpack.c.l.b16 %v326
    %v1036 = vunpack.c.h.b16 %v326
    %v1037 = vunpack.c.l.b16 %v327
    %v1038 = vunpack.c.h.b16 %v327
    %v1039 = vunpack.c.l.b16 %v328
    %v1040 = vunpack.c.h.b16 %v328
    %v1041 = vunpack.c.l.b16 %v329
    %v1042 = vunpack.c.h.b16 %v329
    %v1043 = vunpack.c.l.b16 %v330
    %v1044 = vunpack.c.h.b16 %v330
    %v1045 = vunpack.c.l.b16 %v331
    %v1046 = vunpack.c.h.b16 %v331
    %v1047 = vunpack.c.l.b16 %v332
    %v1048 = vunpack.c.h.b16 %v332
    %v1049 = vunpack.c.l.b16 %v333
    %v1050 = vunpack.c.h.b16 %v333
    %v1051 = vunpack.c.l.b16 %v334
    %v1052 = vunpack.c.h.b16 %v334
    %v1053 = vunpack.c.l.b16 %v335
    %v1054 = vunpack.c.h.b16 %v335
    %v1055 = vunpack.c.l.b16 %v336
    %v1056 = vunpack.c.h.b16 %v336
    %v1057 = vunpack.c.l.b16 %v337
    %v1058 = vunpack.c.h.b16 %v337
    %v1059 = vunpack.c.l.b16 %v338
    %v1060 = vunpack.c.h.b16 %v338
    %v1061 = vunpack.c.l.b16 %v339
    %v1062 = vunpack.c.h.b16 %v339
    %v1063 = vunpack.c.l.b16 %v340
    %v1064 = vunpack.c.h.b16 %v340
    %v1065 = vunpack.c.l.b16 %v341
    %v1066 = vunpack.c.h.b16 %v341
    %v1067 = vunpack.c.l.b16 %v342
    %v1068 = vunpack.c.h.b16 %v342
    %v1069 = vunpack.c.l.b16 %v343
    %v1070 = vunpack.c.h.b16 %v343
    %v1071 = vunpack.c.l.b16 %v344
    %v1072 = vunpack.c.h.b16 %v344
    %v1073 = vunpack.c.l.b16 %v345
    %v1074 = vunpack.c.h.b16 %v345
    %v1075 = vunpack.c.l.b16 %v346
    %v1076 = vunpack.c.h.b16 %v346
    %v1077 = vunpack.c.l.b16 %v347
    %v1078 = vunpack.c.h.b16 %v347
    %v1079 = vunpack.c.l.b16 %v348
    %v1080 = vunpack.c.h.b16 %v348
    %v1081 = vunpack.c.l.b16 %v349
    %v1082 = vunpack.c.h.b16 %v349
    %v1083 = vunpack.c.l.b16 %v350
    %v1084 = vunpack.c.h.b16 %v350
    %v1085 = vunpack.c.l.b16 %v351
    %v1086 = vunpack.c.h.b16 %v351
    %v1087 = vunpack.c.l.b16 %v352
    %v1088 = vunpack.c.h.b16 %v352
    %v1089 = vunpack.c.l.b16 %v353
    %v1090 = vunpack.c.h.b16 %v353
    %v1091 = vunpack.c.l.b16 %v354
    %v1092 = vunpack.c.h.b16 %v354
    %v1093 = vunpack.c.l.b16 %v355
    %v1094 = vunpack.c.h.b16 %v355
    %v1095 = vunpack.c.l.b16 %v356
    %v1096 = vunpack.c.h.b16 %v356
    %v1097 = vunpack.c.l.b16 %v357
    %v1098 = vunpack.c.h.b16 %v357
    %v1099 = vunpack.c.l.b16 %v358
    %v1100 = vunpack.c.h.b16 %v358
    %v1101 = vunpack.c.l.b16 %v359
    %v1102 = vunpack.c.h.b16 %v359
    %v1103 = vunpack.c.l.b16 %v360
    %v1104 = vunpack.c.h.b16 %v360
    %v1105 = vunpack.c.l.b16 %v361
    %v1106 = vunpack.c.h.b16 %v361
    %v1107 = vunpack.c.l.b16 %v362
    %v1108 = vunpack.c.h.b16 %v362
    %v1109 = vunpack.c.l.b16 %v363
    %v1110 = vunpack.c.h.b16 %v363
    %v1111 = vunpack.c.l.b16 %v364
    %v1112 = vunpack.c.h.b16 %v364
    %v1113 = vunpack.c.l.b16 %v365
    %v1114 = vunpack.c.h.b16 %v365
    %v1115 = vunpack.c.l.b16 %v366
    %v1116 = vunpack.c.h.b16 %v366
    %v1117 = vunpack.c.l.b16 %v367
    %v1118 = vunpack.c.h.b16 %v367
    %v1119 = vunpack.c.l.b16 %v368
    %v1120 = vunpack.c.h.b16 %v368
    %v1121 = vunpack.c.l.b16 %v369
    %v1122 = vunpack.c.h.b16 %v369
    %v1123 = vunpack.c.l.b16 %v370
    %v1124 = vunpack.c.h.b16 %v370
    %v1125 = vunpack.c.l.b16 %v371
    %v1126 = vunpack.c.h.b16 %v371
    %v1127 = vunpack.c.l.b16 %v372
    %v1128 = vunpack.c.h.b16 %v372
    %v1129 = vunpack.c.l.b16 %v373
    %v1130 = vunpack.c.h.b16 %v373
    %v1131 = vunpack.c.l.b16 %v374
    %v1132 = vunpack.c.h.b16 %v374
    %v1133 = vunpack.c.l.b16 %v375
    %v1134 = vunpack.c.h.b16 %v375
    %v1135 = vunpack.c.l.b16 %v376
    %v1136 = vunpack.c.h.b16 %v376
    %v1137 = vunpack.c.l.b16 %v377
    %v1138 = vunpack.c.h.b16 %v377
    %v1139 = vunpack.c.l.b16 %v378
    %v1140 = vunpack.c.h.b16 %v378
    %v1141 = vunpack.c.l.b16 %v379
    %v1142 = vunpack.c.h.b16 %v379
    %v1143 = vunpack.c.l.b16 %v380
    %v1144 = vunpack.c.h.b16 %v380
    %v1145 = vunpack.c.l.b16 %v381
    %v1146 = vunpack.c.h.b16 %v381
    %v1147 = vunpack.c.l.b16 %v382
    %v1148 = vunpack.c.h.b16 %v382
    %v1149 = vunpack.c.l.b16 %v383
    %v1150 = vunpack.c.h.b16 %v383
    %v1151 = vunpack.c.l.b16 %v384
    %v1152 = vunpack.c.h.b16 %v384
    %v1153 = vunpack.c.l.b16 %v385
    %v1154 = vunpack.c.h.b16 %v385
    %v1155 = vunpack.c.l.b16 %v386
    %v1156 = vunpack.c.h.b16 %v386
    %v1157 = vunpack.c.l.b16 %v387
    %v1158 = vunpack.c.h.b16 %v387
    %v1159 = vunpack.c.l.b16 %v388
    %v1160 = vunpack.c.h.b16 %v388
    %v1161 = vunpack.c.l.b16 %v389
    %v1162 = vunpack.c.h.b16 %v389
    %v1163 = vunpack.c.l.b16 %v390
    %v1164 = vunpack.c.h.b16 %v390
    %v1165 = vunpack.c.l.b16 %v391
    %v1166 = vunpack.c.h.b16 %v391
    %v1167 = vunpack.c.l.b16 %v392
    %v1168 = vunpack.c.h.b16 %v392
    %v1169 = vunpack.c.l.b16 %v393
    %v1170 = vunpack.c.h.b16 %v393
    %v1171 = vunpack.c.l.b16 %v394
    %v1172 = vunpack.c.h.b16 %v394
    %v1173 = vunpack.c.l.b16 %v395
    %v1174 = vunpack.c.h.b16 %v395
    %v1175 = vunpack.c.l.b16 %v396
    %v1176 = vunpack.c.h.b16 %v396
    %v1177 = vunpack.c.l.b16 %v397
    %v1178 = vunpack.c.h.b16 %v397
    %v1179 = vunpack.c.l.b16 %v398
    %v1180 = vunpack.c.h.b16 %v398
    %v1181 = vunpack.c.l.b16 %v399
    %v1182 = vunpack.c.h.b16 %v399
    %v1183 = vunpack.c.l.b16 %v400
    %v1184 = vunpack.c.h.b16 %v400
    %v1185 = vunpack.c.l.b16 %v401
    %v1186 = vunpack.c.h.b16 %v401
    %v1187 = vunpack.c.l.b16 %v402
    %v1188 = vunpack.c.h.b16 %v402
    %v1189 = vunpack.c.l.b16 %v403
    %v1190 = vunpack.c.h.b16 %v403
    %v1191 = vunpack.c.l.b16 %v404
    %v1192 = vunpack.c.h.b16 %v404
    %v1193 = vunpack.c.l.b16 %v405
    %v1194 = vunpack.c.h.b16 %v405
    %v1195 = vunpack.c.l.b16 %v406
    %v1196 = vunpack.c.h.b16 %v406
    %v1197 = vunpack.c.l.b16 %v407
    %v1198 = vunpack.c.h.b16 %v407
    %v1199 = vunpack.c.l.b16 %v408
    %v1200 = vunpack.c.h.b16 %v408
    %v1201 = vunpack.c.l.b16 %v409
    %v1202 = vunpack.c.h.b16 %v409
    %v1203 = vunpack.c.l.b16 %v410
    %v1204 = vunpack.c.h.b16 %v410
    %v1205 = vunpack.c.l.b16 %v411
    %v1206 = vunpack.c.h.b16 %v411
    %v1207 = vunpack.c.l.b16 %v412
    %v1208 = vunpack.c.h.b16 %v412
    %v1209 = vunpack.c.l.b16 %v413
    %v1210 = vunpack.c.h.b16 %v413
    %v1211 = vunpack.c.l.b16 %v414
    %v1212 = vunpack.c.h.b16 %v414
    %v1213 = vunpack.c.l.b16 %v415
    %v1214 = vunpack.c.h.b16 %v415
    %v1215 = vunpack.c.l.b16 %v416
    %v1216 = vunpack.c.h.b16 %v416
    %v1217 = vunpack.c.l.b16 %v417
    %v1218 = vunpack.c.h.b16 %v417
    %v1219 = vunpack.c.l.b16 %v418
    %v1220 = vunpack.c.h.b16 %v418
    %v1221 = vunpack.c.l.b16 %v419
    %v1222 = vunpack.c.h.b16 %v419
    %v1223 = vunpack.c.l.b16 %v420
    %v1224 = vunpack.c.h.b16 %v420
    %v1225 = vunpack.c.l.b16 %v421
    %v1226 = vunpack.c.h.b16 %v421
    %v1227 = vunpack.c.l.b16 %v422
    %v1228 = vunpack.c.h.b16 %v422
    %v1229 = vunpack.c.l.b16 %v423
    %v1230 = vunpack.c.h.b16 %v423
    %v1231 = vunpack.c.l.b16 %v424
    %v1232 = vunpack.c.h.b16 %v424
    %v1233 = vunpack.c.l.b16 %v425
    %v1234 = vunpack.c.h.b16 %v425
    %v1235 = vunpack.c.l.b16 %v426
    %v1236 = vunpack.c.h.b16 %v426
    %v1237 = vunpack.c.l.b16 %v427
    %v1238 = vunpack.c.h.b16 %v427
    %v1239 = vunpack.c.l.b16 %v428
    %v1240 = vunpack.c.h.b16 %v428
    %v1241 = vunpack.c.l.b16 %v429
    %v1242 = vunpack.c.h.b16 %v429
    %v1243 = vunpack.c.l.b16 %v430
    %v1244 = vunpack.c.h.b16 %v430
    %v1245 = vunpack.c.l.b16 %v431
    %v1246 = vunpack.c.h.b16 %v431
    %v1247 = vunpack.c.l.b16 %v432
    %v1248 = vunpack.c.h.b16 %v432
    %v1249 = vunpack.c.l.b16 %v433
    %v1250 = vunpack.c.h.b16 %v433
    %v1251 = vunpack.c.l.b16 %v434
    %v1252 = vunpack.c.h.b16 %v434
    %v1253 = vunpack.c.l.b16 %v435
    %v1254 = vunpack.c.h.b16 %v435
    %v1255 = vunpack.c.l.b16 %v436
    %v1256 = vunpack.c.h.b16 %v436
    %v1257 = vunpack.c.l.b16 %v437
    %v1258 = vunpack.c.h.b16 %v437
    %v1259 = vunpack.c.l.b16 %v438
    %v1260 = vunpack.c.h.b16 %v438
    %v1261 = vunpack.c.l.b16 %v439
    %v1262 = vunpack.c.h.b16 %v439
    %v1263 = vunpack.c.l.b16 %v440
    %v1264 = vunpack.c.h.b16 %v440
    %v1265 = vunpack.c.l.b16 %v441
    %v1266 = vunpack.c.h.b16 %v441
    %v1267 = vunpack.c.l.b16 %v442
    %v1268 = vunpack.c.h.b16 %v442
    %v1269 = vunpack.c.l.b16 %v443
    %v1270 = vunpack.c.h.b16 %v443
    %v1271 = vunpack.c.l.b16 %v444
    %v1272 = vunpack.c.h.b16 %v444
    %v1273 = vunpack.c.l.b16 %v445
    %v1274 = vunpack.c.h.b16 %v445
    %v1275 = vunpack.c.l.b16 %v446
    %v1276 = vunpack.c.h.b16 %v446
    %v1277 = vunpack.c.l.b16 %v447
    %v1278 = vunpack.c.h.b16 %v447
    %v1279 = vunpack.c.l.b16 %v448
    %v1280 = vunpack.c.h.b16 %v448
    %v1281 = vunpack.c.l.b16 %v449
    %v1282 = vunpack.c.h.b16 %v449
    %v1283 = vunpack.c.l.b16 %v450
    %v1284 = vunpack.c.h.b16 %v450
    %v1285 = vunpack.c.l.b16 %v451
    %v1286 = vunpack.c.h.b16 %v451
    %v1287 = vunpack.c.l.b16 %v452
    %v1288 = vunpack.c.h.b16 %v452
    %v1289 = vunpack.c.l.b16 %v453
    %v1290 = vunpack.c.h.b16 %v453
    %v1291 = vunpack.c.l.b16 %v454
    %v1292 = vunpack.c.h.b16 %v454
    %v1293 = vunpack.c.l.b16 %v455
    %v1294 = vunpack.c.h.b16 %v455
    %v1295 = vunpack.c.l.b16 %v456
    %v1296 = vunpack.c.h.b16 %v456
    %v1297 = vunpack.c.l.b16 %v457
    %v1298 = vunpack.c.h.b16 %v457
    %v1299 = vunpack.c.l.b16 %v458
    %v1300 = vunpack.c.h.b16 %v458
    %v1301 = vunpack.c.l.b16 %v459
    %v1302 = vunpack.c.h.b16 %v459
    %v1303 = vunpack.c.l.b16 %v460
    %v1304 = vunpack.c.h.b16 %v460
    %v1305 = vunpack.c.l.b16 %v461
    %v1306 = vunpack.c.h.b16 %v461
    %v1307 = vunpack.c.l.b16 %v462
    %v1308 = vunpack.c.h.b16 %v462
    %v1309 = vunpack.c.l.b16 %v463
    %v1310 = vunpack.c.h.b16 %v463
    %v1311 = vunpack.c.l.b16 %v464
    %v1312 = vunpack.c.h.b16 %v464
    %v1313 = vunpack.c.l.b16 %v465
    %v1314 = vunpack.c.h.b16 %v465
    %v1315 = vunpack.c.l.b16 %v466
    %v1316 = vunpack.c.h.b16 %v466
    %v1317 = vunpack.c.l.b16 %v467
    %v1318 = vunpack.c.h.b16 %v467
    %v1319 = vunpack.c.l.b16 %v468
    %v1320 = vunpack.c.h.b16 %v468
    %v1321 = vunpack.c.l.b16 %v469
    %v1322 = vunpack.c.h.b16 %v469
    %v1323 = vunpack.c.l.b16 %v470
    %v1324 = vunpack.c.h.b16 %v470
    %v1325 = vunpack.c.l.b16 %v471
    %v1326 = vunpack.c.h.b16 %v471
    %v1327 = vunpack.c.l.b16 %v472
    %v1328 = vunpack.c.h.b16 %v472
    %v1329 = vunpack.c.l.b16 %v473
    %v1330 = vunpack.c.h.b16 %v473
    %v1331 = vunpack.c.l.b16 %v474
    %v1332 = vunpack.c.h.b16 %v474
    %v1333 = vunpack.c.l.b16 %v475
    %v1334 = vunpack.c.h.b16 %v475
    %v1335 = vunpack.c.l.b16 %v476
    %v1336 = vunpack.c.h.b16 %v476
    %v1337 = vunpack.c.l.b16 %v477
    %v1338 = vunpack.c.h.b16 %v477
    %v1339 = vunpack.c.l.b16 %v478
    %v1340 = vunpack.c.h.b16 %v478
    %v1341 = vunpack.c.l.b16 %v479
    %v1342 = vunpack.c.h.b16 %v479
    %v1343 = vunpack.c.l.b16 %v480
    %v1344 = vunpack.c.h.b16 %v480
    %v1345 = vunpack.c.l.b16 %v481
    %v1346 = vunpack.c.h.b16 %v481
    %v1347 = vunpack.c.l.b16 %v482
    %v1348 = vunpack.c.h.b16 %v482
    %v1349 = vunpack.c.l.b16 %v483
    %v1350 = vunpack.c.h.b16 %v483
    %v1351 = vunpack.c.l.b16 %v484
    %v1352 = vunpack.c.h.b16 %v484
    %v1353 = vunpack.c.l.b16 %v485
    %v1354 = vunpack.c.h.b16 %v485
    %v1355 = vunpack.c.l.b16 %v486
    %v1356 = vunpack.c.h.b16 %v486
    %v1357 = vunpack.c.l.b16 %v487
    %v1358 = vunpack.c.h.b16 %v487
    %v1359 = vunpack.c.l.b16 %v488
    %v1360 = vunpack.c.h.b16 %v488
    %v1361 = vunpack.c.l.b16 %v489
    %v1362 = vunpack.c.h.b16 %v489
    %v1363 = vunpack.c.l.b16 %v490
    %v1364 = vunpack.c.h.b16 %v490
    %v1365 = vunpack.c.l.b16 %v491
    %v1366 = vunpack.c.h.b16 %v491
    %v1367 = vunpack.c.l.b16 %v492
    %v1368 = vunpack.c.h.b16 %v492
    %v1369 = vunpack.c.l.b16 %v493
    %v1370 = vunpack.c.h.b16 %v493
    %v1371 = vunpack.c.l.b16 %v494
    %v1372 = vunpack.c.h.b16 %v494
    %v1373 = vpack.c.b16 %v803, %v797
    %v1374 = vpack.c.b16 %v804, %v798
    %v1375 = vpack.c.b16 %v805, %v799
    %v1376 = vpack.c.b16 %v806, %v800
    %v1377 = vpack.c.b16 %v807, %v801
    %v1378 = vpack.c.b16 %v808, %v802
    %v1379 = vpack.c.b16 %v815, %v809
    %v1380 = vpack.c.b16 %v816, %v810
    %v1381 = vpack.c.b16 %v817, %v811
    %v1382 = vpack.c.b16 %v818, %v812
    %v1383 = vpack.c.b16 %v819, %v813
    %v1384 = vpack.c.b16 %v820, %v814
    %v1385 = vpack.c.b16 %v827, %v821
    %v1386 = vpack.c.b16 %v828, %v822
    %v1387 = vpack.c.b16 %v829, %v823
    %v1388 = vpack.c.b16 %v830, %v824
    %v1389 = vpack.c.b16 %v831, %v825
    %v1390 = vpack.c.b16 %v832, %v826
    %v1391 = vpack.c.b16 %v839, %v833
    %v1392 = vpack.c.b16 %v840, %v834
    %v1393 = vpack.c.b16 %v841, %v835
    %v1394 = vpack.c.b16 %v842, %v836
    %v1395 = vpack.c.b16 %v843, %v837
    %v1396 = vpack.c.b16 %v844, %v838
    %v1397 = vpack.c.b16 %v851, %v845
    %v1398 = vpack.c.b16 %v852, %v846
    %v1399 = vpack.c.b16 %v853, %v847
    %v1400 = vpack.c.b16 %v854, %v848
    %v1401 = vpack.c.b16 %v855, %v849
    %v1402 = vpack.c.b16 %v856, %v850
    %v1403 = vpack.c.b16 %v863, %v857
    %v1404 = vpack.c.b16 %v864, %v858
    %v1405 = vpack.c.b16 %v865, %v859
    %v1406 = vpack.c.b16 %v866, %v860
    %v1407 = vpack.c.b16 %v867, %v861
    %v1408 = vpack.c.b16 %v868, %v862
    %v1409 = vpack.c.b16 %v875, %v869
    %v1410 = vpack.c.b16 %v876, %v870
    %v1411 = vpack.c.b16 %v877, %v871
    %v1412 = vpack.c.b16 %v878, %v872
    %v1413 = vpack.c.b16 %v879, %v873
    %v1414 = vpack.c.b16 %v880, %v874
    %v1415 = vpack.c.b16 %v887, %v881
    %v1416 = vpack.c.b16 %v888, %v882
    %v1417 = vpack.c.b16 %v889, %v883
    %v1418 = vpack.c.b16 %v890, %v884
    %v1419 = vpack.c.b16 %v891, %v885
    %v1420 = vpack.c.b16 %v892, %v886
    %v1421 = vpack.c.b16 %v899, %v893
    %v1422 = vpack.c.b16 %v900, %v894
    %v1423 = vpack.c.b16 %v901, %v895
    %v1424 = vpack.c.b16 %v902, %v896
    %v1425 = vpack.c.b16 %v903, %v897
    %v1426 = vpack.c.b16 %v904, %v898
    %v1427 = vpack.c.b16 %v911, %v905
    %v1428 = vpack.c.b16 %v912, %v906
    %v1429 = vpack.c.b16 %v913, %v907
    %v1430 = vpack.c.b16 %v914, %v908
    %v1431 = vpack.c.b16 %v915, %v909
    %v1432 = vpack.c.b16 %v916, %v910
    %v1433 = vpack.c.b16 %v923, %v917
    %v1434 = vpack.c.b16 %v924, %v918
    %v1435 = vpack.c.b16 %v925, %v919
    %v1436 = vpack.c.b16 %v926, %v920
    %v1437 = vpack.c.b16 %v927, %v921
    %v1438 = vpack.c.b16 %v928, %v922
    %v1439 = vpack.c.b16 %v935, %v929
    %v1440 = vpack.c.b16 %v936, %v930
    %v1441 = vpack.c.b16 %v937, %v931
    %v1442 = vpack.c.b16 %v938, %v932
    %v1443 = vpack.c.b16 %v939, %v933
    %v1444 = vpack.c.b16 %v940, %v934
    %v1445 = vpack.c.b16 %v947, %v941
    %v1446 = vpack.c.b16 %v948, %v942
    %v1447 = vpack.c.b16 %v949, %v943
    %v1448 = vpack.c.b16 %v950, %v944
    %v1449 = vpack.c.b16 %v951, %v945
    %v1450 = vpack.c.b16 %v952, %v946
    %v1451 = vpack.c.b16 %v959, %v953
    %v1452 = vpack.c.b16 %v960, %v954
    %v1453 = vpack.c.b16 %v961, %v955
    %v1454 = vpack.c.b16 %v962, %v956
    %v1455 = vpack.c.b16 %v963, %v957
    %v1456 = vpack.c.b16 %v964, %v958
    %v1457 = vpack.c.b16 %v971, %v965
    %v1458 = vpack.c.b16 %v972, %v966
    %v1459 = vpack.c.b16 %v973, %v967
    %v1460 = vpack.c.b16 %v974, %v968
    %v1461 = vpack.c.b16 %v975, %v969
    %v1462 = vpack.c.b16 %v976, %v970
    %v1463 = vpack.c.b16 %v983, %v977
    %v1464 = vpack.c.b16 %v984, %v978
    %v1465 = vpack.c.b16 %v985, %v979
    %v1466 = vpack.c.b16 %v986, %v980
    %v1467 = vpack.c.b16 %v987, %v981
    %v1468 = vpack.c.b16 %v988, %v982
    %v1469 = vpack.c.b16 %v995, %v989
    %v1470 = vpack.c.b16 %v996, %v990
    %v1471 = vpack.c.b16 %v997, %v991
    %v1472 = vpack.c.b16 %v998, %v992
    %v1473 = vpack.c.b16 %v999, %v993
    %v1474 = vpack.c.b16 %v1000, %v994
    %v1475 = vpack.c.b16 %v1007, %v1001
    %v1476 = vpack.c.b16 %v1008, %v1002
    %v1477 = vpack.c.b16 %v1009, %v1003
    %v1478 = vpack.c.b16 %v1010, %v1004
    %v1479 = vpack.c.b16 %v1011, %v1005
    %v1480 = vpack.c.b16 %v1012, %v1006
    %v1481 = vpack.c.b16 %v1019, %v1013
    %v1482 = vpack.c.b16 %v1020, %v1014
    %v1483 = vpack.c.b16 %v1021, %v1015
    %v1484 = vpack.c.b16 %v1022, %v1016
    %v1485 = vpack.c.b16 %v1023, %v1017
    %v1486 = vpack.c.b16 %v1024, %v1018
    %v1487 = vpack.c.b16 %v1031, %v1025
    %v1488 = vpack.c.b16 %v1032, %v1026
    %v1489 = vpack.c.b16 %v1033, %v1027
    %v1490 = vpack.c.b16 %v1034, %v1028
    %v1491 = vpack.c.b16 %v1035, %v1029
    %v1492 = vpack.c.b16 %v1036, %v1030
    %v1493 = vpack.c.b16 %v1043, %v1037
    %v1494 = vpack.c.b16 %v1044, %v1038
    %v1495 = vpack.c.b16 %v1045, %v1039
    %v1496 = vpack.c.b16 %v1046, %v1040
    %v1497 = vpack.c.b16 %v1047, %v1041
    %v1498 = vpack.c.b16 %v1048, %v1042
    %v1499 = vpack.c.b16 %v1055, %v1049
    %v1500 = vpack.c.b16 %v1056, %v1050
    %v1501 = vpack.c.b16 %v1057, %v1051
    %v1502 = vpack.c.b16 %v1058, %v1052
    %v1503 = vpack.c.b16 %v1059, %v1053
    %v1504 = vpack.c.b16 %v1060, %v1054
    %v1505 = vpack.c.b16 %v1067, %v1061
    %v1506 = vpack.c.b16 %v1068, %v1062
    %v1507 = vpack.c.b16 %v1069, %v1063
    %v1508 = vpack.c.b16 %v1070, %v1064
    %v1509 = vpack.c.b16 %v1071, %v1065
    %v1510 = vpack.c.b16 %v1072, %v1066
    %v1511 = vpack.c.b16 %v1079, %v1073
    %v1512 = vpack.c.b16 %v1080, %v1074
    %v1513 = vpack.c.b16 %v1081, %v1075
    %v1514 = vpack.c.b16 %v1082, %v1076
    %v1515 = vpack.c.b16 %v1083, %v1077
    %v1516 = vpack.c.b16 %v1084, %v1078
    %v1517 = vpack.c.b16 %v1091, %v1085
    %v1518 = vpack.c.b16 %v1092, %v1086
    %v1519 = vpack.c.b16 %v1093, %v1087
    %v1520 = vpack.c.b16 %v1094, %v1088
    %v1521 = vpack.c.b16 %v1095, %v1089
    %v1522 = vpack.c.b16 %v1096, %v1090
    %v1523 = vpack.c.b16 %v1103, %v1097
    %v1524 = vpack.c.b16 %v1104, %v1098
    %v1525 = vpack.c.b16 %v1105, %v1099
    %v1526 = vpack.c.b16 %v1106, %v1100
    %v1527 = vpack.c.b16 %v1107, %v1101
    %v1528 = vpack.c.b16 %v1108, %v1102
    %v1529 = vpack.c.b16 %v1115, %v1109
    %v1530 = vpack.c.b16 %v1116, %v1110
    %v1531 = vpack.c.b16 %v1117, %v1111
    %v1532 = vpack.c.b16 %v1118, %v1112
    %v1533 = vpack.c.b16 %v1119, %v1113
    %v1534 = vpack.c.b16 %v1120, %v1114
    %v1535 = vpack.c.b16 %v1127, %v1121
    %v1536 = vpack.c.b16 %v1128, %v1122
    %v1537 = vpack.c.b16 %v1129, %v1123
    %v1538 = vpack.c.b16 %v1130, %v1124
    %v1539 = vpack.c.b16 %v1131, %v1125
    %v1540 = vpack.c.b16 %v1132, %v1126
    %v1541 = vpack.c.b16 %v1139, %v1133
    %v1542 = vpack.c.b16 %v1140, %v1134
    %v1543 = vpack.c.b16 %v1141, %v1135
    %v1544 = vpack.c.b16 %v1142, %v1136
    %v1545 = vpack.c.b16 %v1143, %v1137
    %v1546 = vpack.c.b16 %v1144, %v1138
    %v1547 = vpack.c.b16 %v1151, %v1145
    %v1548 = vpack.c.b16 %v1152, %v1146
    %v1549 = vpack.c.b16 %v1153, %v1147
    %v1550 = vpack.c.b16 %v1154, %v1148
    %v1551 = vpack.c.b16 %v1155, %v1149
    %v1552 = vpack.c.b16 %v1156, %v1150
    %v1553 = vpack.c.b16 %v1163, %v1157
    %v1554 = vpack.c.b16 %v1164, %v1158
    %v1555 = vpack.c.b16 %v1165, %v1159
    %v1556 = vpack.c.b16 %v1166, %v1160
    %v1557 = vpack.c.b16 %v1167, %v1161
    %v1558 = vpack.c.b16 %v1168, %v1162
    %v1559 = vpack.c.b16 %v1175, %v1169
    %v1560 = vpack.c.b16 %v1176, %v1170
    %v1561 = vpack.c.b16 %v1177, %v1171
    %v1562 = vpack.c.b16 %v1178, %v1172
    %v1563 = vpack.c.b16 %v1179, %v1173
    %v1564 = vpack.c.b16 %v1180, %v1174
    %v1565 = vpack.c.b16 %v1187, %v1181
    %v1566 = vpack.c.b16 %v1188, %v1182
    %v1567 = vpack.c.b16 %v1189, %v1183
    %v1568 = vpack.c.b16 %v1190, %v1184
    %v1569 = vpack.c.b16 %v1191, %v1185
    %v1570 = vpack.c.b16 %v1192, %v1186
    %v1571 = vpack.c.b16 %v1199, %v1193
    %v1572 = vpack.c.b16 %v1200, %v1194
    %v1573 = vpack.c.b16 %v1201, %v1195
    %v1574 = vpack.c.b16 %v1202, %v1196
    %v1575 = vpack.c.b16 %v1203, %v1197
    %v1576 = vpack.c.b16 %v1204, %v1198
    %v1577 = vpack.c.b16 %v1211, %v1205
    %v1578 = vpack.c.b16 %v1212, %v1206
    %v1579 = vpack.c.b16 %v1213, %v1207
    %v1580 = vpack.c.b16 %v1214, %v1208
    %v1581 = vpack.c.b16 %v1215, %v1209
    %v1582 = vpack.c.b16 %v1216, %v1210
    %v1583 = vpack.c.b16 %v1223, %v1217
    %v1584 = vpack.c.b16 %v1224, %v1218
    %v1585 = vpack.c.b16 %v1225, %v1219
    %v1586 = vpack.c.b16 %v1226, %v1220
    %v1587 = vpack.c.b16 %v1227, %v1221
    %v1588 = vpack.c.b16 %v1228, %v1222
    %v1589 = vpack.c.b16 %v1235, %v1229
    %v1590 = vpack.c.b16 %v1236, %v1230
    %v1591 = vpack.c.b16 %v1237, %v1231
    %v1592 = vpack.c.b16 %v1238, %v1232
    %v1593 = vpack.c.b16 %v1239, %v1233
    %v1594 = vpack.c.b16 %v1240, %v1234
    %v1595 = vpack.c.b16 %v1247, %v1241
    %v1596 = vpack.c.b16 %v1248, %v1242
    %v1597 = vpack.c.b16 %v1249, %v1243
    %v1598 = vpack.c.b16 %v1250, %v1244
    %v1599 = vpack.c.b16 %v1251, %v1245
    %v1600 = vpack.c.b16 %v1252, %v1246
    %v1601 = vpack.c.b16 %v1259, %v1253
    %v1602 = vpack.c.b16 %v1260, %v1254
    %v1603 = vpack.c.b16 %v1261, %v1255
    %v1604 = vpack.c.b16 %v1262, %v1256
    %v1605 = vpack.c.b16 %v1263, %v1257
    %v1606 = vpack.c.b16 %v1264, %v1258
    %v1607 = vpack.c.b16 %v1271, %v1265
    %v1608 = vpack.c.b16 %v1272, %v1266
    %v1609 = vpack.c.b16 %v1273, %v1267
    %v1610 = vpack.c.b16 %v1274, %v1268
    %v1611 = vpack.c.b16 %v1275, %v1269
    %v1612 = vpack.c.b16 %v1276, %v1270
    %v1613 = vpack.c.b16 %v1283, %v1277
    %v1614 = vpack.c.b16 %v1284, %v1278
    %v1615 = vpack.c.b16 %v1285, %v1279
    %v1616 = vpack.c.b16 %v1286, %v1280
    %v1617 = vpack.c.b16 %v1287, %v1281
    %v1618 = vpack.c.b16 %v1288, %v1282
    %v1619 = vpack.c.b16 %v1295, %v1289
    %v1620 = vpack.c.b16 %v1296, %v1290
    %v1621 = vpack.c.b16 %v1297, %v1291
    %v1622 = vpack.c.b16 %v1298, %v1292
    %v1623 = vpack.c.b16 %v1299, %v1293
    %v1624 = vpack.c.b16 %v1300, %v1294
    %v1625 = vpack.c.b16 %v1307, %v1301
    %v1626 = vpack.c.b16 %v1308, %v1302
    %v1627 = vpack.c.b16 %v1309, %v1303
    %v1628 = vpack.c.b16 %v1310, %v1304
    %v1629 = vpack.c.b16 %v1311, %v1305
    %v1630 = vpack.c.b16 %v1312, %v1306
    %v1631 = vpack.c.b16 %v1319, %v1313
    %v1632 = vpack.c.b16 %v1320, %v1314
    %v1633 = vpack.c.b16 %v1321, %v1315
    %v1634 = vpack.c.b16 %v1322, %v1316
    %v1635 = vpack.c.b16 %v1323, %v1317
    %v1636 = vpack.c.b16 %v1324, %v1318
    %v1637 = vpack.c.b16 %v1331, %v1325
    %v1638 = vpack.c.b16 %v1332, %v1326
    %v1639 = vpack.c.b16 %v1333, %v1327
    %v1640 = vpack.c.b16 %v1334, %v1328
    %v1641 = vpack.c.b16 %v1335, %v1329
    %v1642 = vpack.c.b16 %v1336, %v1330
    %v1643 = vpack.c.b16 %v1343, %v1337
    %v1644 = vpack.c.b16 %v1344, %v1338
    %v1645 = vpack.c.b16 %v1345, %v1339
    %v1646 = vpack.c.b16 %v1346, %v1340
    %v1647 = vpack.c.b16 %v1347, %v1341
    %v1648 = vpack.c.b16 %v1348, %v1342
    %v1649 = vpack.c.b16 %v1355, %v1349
    %v1650 = vpack.c.b16 %v1356, %v1350
    %v1651 = vpack.c.b16 %v1357, %v1351
    %v1652 = vpack.c.b16 %v1358, %v1352
    %v1653 = vpack.c.b16 %v1359, %v1353
    %v1654 = vpack.c.b16 %v1360, %v1354
    %v1655 = vpack.c.b16 %v1367, %v1361
    %v1656 = vpack.c.b16 %v1368, %v1362
    %v1657 = vpack.c.b16 %v1369, %v1363
    %v1658 = vpack.c.b16 %v1370, %v1364
    %v1659 = vpack.c.b16 %v1371, %v1365
    %v1660 = vpack.c.b16 %v1372, %v1366
    %1949 = vmatpush.bf16.msra.mxu0 %v1415
    %1950 = vmatpush.bf16.msra.mxu0 %v1409
    %1951 = vmatpush.bf16.msra.mxu0 %v1403
    %1952 = vmatpush.bf16.msra.mxu0 %v1397
    %1953 = vmatpush.bf16.msra.mxu0 %v1391
    %1954 = vmatpush.bf16.msra.mxu0 %v1385
    %1955 = vmatpush.bf16.msra.mxu0 %v1379
    %1956 = vmatpush.bf16.msra.mxu0 %v1373
    %1957 = vmatmul.bf16.gmra.mxu0 %v201
    %v1958 = vpop.f32.mrf.mxu0
    %v1959 = vadd.f32 %v497, %v1958
    %v1960 = vpop.f32.mrf.mxu0
    %1961 = vdwg.mxu0
    %1962 = vmatpush.bf16.msra.mxu0 %v1463
    %1963 = vmatpush.bf16.msra.mxu0 %v1457
    %1964 = vmatpush.bf16.msra.mxu0 %v1451
    %1965 = vmatpush.bf16.msra.mxu0 %v1445
    %1966 = vmatpush.bf16.msra.mxu0 %v1439
    %1967 = vmatpush.bf16.msra.mxu0 %v1433
    %1968 = vmatpush.bf16.msra.mxu0 %v1427
    %1969 = vmatpush.bf16.msra.mxu0 %v1421
    %1970 = vmatmul.bf16.gmra.mxu0 %v202
    %v1971 = vpop.f32.mrf.mxu0
    %v1972 = vadd.f32 %v1959, %v1971
    %v1973 = vpop.f32.mrf.mxu0
    %1974 = vdwg.mxu0
    %1975 = vmatpush.bf16.msra.mxu0 %v1511
    %1976 = vmatpush.bf16.msra.mxu0 %v1505
    %1977 = vmatpush.bf16.msra.mxu0 %v1499
    %1978 = vmatpush.bf16.msra.mxu0 %v1493
    %1979 = vmatpush.bf16.msra.mxu0 %v1487
    %1980 = vmatpush.bf16.msra.mxu0 %v1481
    %1981 = vmatpush.bf16.msra.mxu0 %v1475
    %1982 = vmatpush.bf16.msra.mxu0 %v1469
    %1983 = vmatmul.bf16.gmra.mxu0 %v203
    %v1984 = vpop.f32.mrf.mxu0
    %v1985 = vadd.f32 %v1972, %v1984
    %v1986 = vpop.f32.mrf.mxu0
    %1987 = vdwg.mxu0
    %1988 = vmatpush.bf16.msra.mxu0 %v1559
    %1989 = vmatpush.bf16.msra.mxu0 %v1553
    %1990 = vmatpush.bf16.msra.mxu0 %v1547
    %1991 = vmatpush.bf16.msra.mxu0 %v1541
    %1992 = vmatpush.bf16.msra.mxu0 %v1535
    %1993 = vmatpush.bf16.msra.mxu0 %v1529
    %1994 = vmatpush.bf16.msra.mxu0 %v1523
    %1995 = vmatpush.bf16.msra.mxu0 %v1517
    %1996 = vmatmul.bf16.gmra.mxu0 %v204
    %v1997 = vpop.f32.mrf.mxu0
    %v1998 = vadd.f32 %v1985, %v1997
    %v1999 = vpop.f32.mrf.mxu0
    %2000 = vdwg.mxu0
    %2001 = vmatpush.bf16.msra.mxu0 %v1607
    %2002 = vmatpush.bf16.msra.mxu0 %v1601
    %2003 = vmatpush.bf16.msra.mxu0 %v1595
    %2004 = vmatpush.bf16.msra.mxu0 %v1589
    %2005 = vmatpush.bf16.msra.mxu0 %v1583
    %2006 = vmatpush.bf16.msra.mxu0 %v1577
    %2007 = vmatpush.bf16.msra.mxu0 %v1571
    %2008 = vmatpush.bf16.msra.mxu0 %v1565
    %2009 = vmatmul.bf16.gmra.mxu0 %v205
    %v2010 = vpop.f32.mrf.mxu0
    %v2011 = vadd.f32 %v1998, %v2010
    %v2012 = vpop.f32.mrf.mxu0
    %2013 = vdwg.mxu0
    %2014 = vmatpush.bf16.msra.mxu0 %v1655
    %2015 = vmatpush.bf16.msra.mxu0 %v1649
    %2016 = vmatpush.bf16.msra.mxu0 %v1643
    %2017 = vmatpush.bf16.msra.mxu0 %v1637
    %2018 = vmatpush.bf16.msra.mxu0 %v1631
    %2019 = vmatpush.bf16.msra.mxu0 %v1625
    %2020 = vmatpush.bf16.msra.mxu0 %v1619
    %2021 = vmatpush.bf16.msra.mxu0 %v1613
    %2022 = vmatmul.bf16.gmra.mxu0 %v206
    %v2023 = vpop.f32.mrf.mxu0
    %v2024 = vadd.f32 %v2011, %v2023
    %v2025 = vpop.f32.mrf.mxu0
    %2026 = vdwg.mxu0
    %2027 = vmatpush.bf16.msra.mxu0 %v1416
    %2028 = vmatpush.bf16.msra.mxu0 %v1410
    %2029 = vmatpush.bf16.msra.mxu0 %v1404
    %2030 = vmatpush.bf16.msra.mxu0 %v1398
    %2031 = vmatpush.bf16.msra.mxu0 %v1392
    %2032 = vmatpush.bf16.msra.mxu0 %v1386
    %2033 = vmatpush.bf16.msra.mxu0 %v1380
    %2034 = vmatpush.bf16.msra.mxu0 %v1374
    %2035 = vmatmul.bf16.gmra.mxu0 %v201
    %v2036 = vpop.f32.mrf.mxu0
    %v2037 = vadd.f32 %v498, %v2036
    %v2038 = vpop.f32.mrf.mxu0
    %2039 = vdwg.mxu0
    %2040 = vmatpush.bf16.msra.mxu0 %v1464
    %2041 = vmatpush.bf16.msra.mxu0 %v1458
    %2042 = vmatpush.bf16.msra.mxu0 %v1452
    %2043 = vmatpush.bf16.msra.mxu0 %v1446
    %2044 = vmatpush.bf16.msra.mxu0 %v1440
    %2045 = vmatpush.bf16.msra.mxu0 %v1434
    %2046 = vmatpush.bf16.msra.mxu0 %v1428
    %2047 = vmatpush.bf16.msra.mxu0 %v1422
    %2048 = vmatmul.bf16.gmra.mxu0 %v202
    %v2049 = vpop.f32.mrf.mxu0
    %v2050 = vadd.f32 %v2037, %v2049
    %v2051 = vpop.f32.mrf.mxu0
    %2052 = vdwg.mxu0
    %2053 = vmatpush.bf16.msra.mxu0 %v1512
    %2054 = vmatpush.bf16.msra.mxu0 %v1506
    %2055 = vmatpush.bf16.msra.mxu0 %v1500
    %2056 = vmatpush.bf16.msra.mxu0 %v1494
    %2057 = vmatpush.bf16.msra.mxu0 %v1488
    %2058 = vmatpush.bf16.msra.mxu0 %v1482
    %2059 = vmatpush.bf16.msra.mxu0 %v1476
    %2060 = vmatpush.bf16.msra.mxu0 %v1470
    %2061 = vmatmul.bf16.gmra.mxu0 %v203
    %v2062 = vpop.f32.mrf.mxu0
    %v2063 = vadd.f32 %v2050, %v2062
    %v2064 = vpop.f32.mrf.mxu0
    %2065 = vdwg.mxu0
    %2066 = vmatpush.bf16.msra.mxu0 %v1560
    %2067 = vmatpush.bf16.msra.mxu0 %v1554
    %2068 = vmatpush.bf16.msra.mxu0 %v1548
    %2069 = vmatpush.bf16.msra.mxu0 %v1542
    %2070 = vmatpush.bf16.msra.mxu0 %v1536
    %2071 = vmatpush.bf16.msra.mxu0 %v1530
    %2072 = vmatpush.bf16.msra.mxu0 %v1524
    %2073 = vmatpush.bf16.msra.mxu0 %v1518
    %2074 = vmatmul.bf16.gmra.mxu0 %v204
    %v2075 = vpop.f32.mrf.mxu0
    %v2076 = vadd.f32 %v2063, %v2075
    %v2077 = vpop.f32.mrf.mxu0
    %2078 = vdwg.mxu0
    %2079 = vmatpush.bf16.msra.mxu0 %v1608
    %2080 = vmatpush.bf16.msra.mxu0 %v1602
    %2081 = vmatpush.bf16.msra.mxu0 %v1596
    %2082 = vmatpush.bf16.msra.mxu0 %v1590
    %2083 = vmatpush.bf16.msra.mxu0 %v1584
    %2084 = vmatpush.bf16.msra.mxu0 %v1578
    %2085 = vmatpush.bf16.msra.mxu0 %v1572
    %2086 = vmatpush.bf16.msra.mxu0 %v1566
    %2087 = vmatmul.bf16.gmra.mxu0 %v205
    %v2088 = vpop.f32.mrf.mxu0
    %v2089 = vadd.f32 %v2076, %v2088
    %v2090 = vpop.f32.mrf.mxu0
    %2091 = vdwg.mxu0
    %2092 = vmatpush.bf16.msra.mxu0 %v1656
    %2093 = vmatpush.bf16.msra.mxu0 %v1650
    %2094 = vmatpush.bf16.msra.mxu0 %v1644
    %2095 = vmatpush.bf16.msra.mxu0 %v1638
    %2096 = vmatpush.bf16.msra.mxu0 %v1632
    %2097 = vmatpush.bf16.msra.mxu0 %v1626
    %2098 = vmatpush.bf16.msra.mxu0 %v1620
    %2099 = vmatpush.bf16.msra.mxu0 %v1614
    %2100 = vmatmul.bf16.gmra.mxu0 %v206
    %v2101 = vpop.f32.mrf.mxu0
    %v2102 = vadd.f32 %v2089, %v2101
    %v2103 = vpop.f32.mrf.mxu0
    %2104 = vdwg.mxu0
    %2105 = vmatpush.bf16.msra.mxu0 %v1417
    %2106 = vmatpush.bf16.msra.mxu0 %v1411
    %2107 = vmatpush.bf16.msra.mxu0 %v1405
    %2108 = vmatpush.bf16.msra.mxu0 %v1399
    %2109 = vmatpush.bf16.msra.mxu0 %v1393
    %2110 = vmatpush.bf16.msra.mxu0 %v1387
    %2111 = vmatpush.bf16.msra.mxu0 %v1381
    %2112 = vmatpush.bf16.msra.mxu0 %v1375
    %2113 = vmatmul.bf16.gmra.mxu0 %v201
    %v2114 = vpop.f32.mrf.mxu0
    %v2115 = vadd.f32 %v499, %v2114
    %v2116 = vpop.f32.mrf.mxu0
    %2117 = vdwg.mxu0
    %2118 = vmatpush.bf16.msra.mxu0 %v1465
    %2119 = vmatpush.bf16.msra.mxu0 %v1459
    %2120 = vmatpush.bf16.msra.mxu0 %v1453
    %2121 = vmatpush.bf16.msra.mxu0 %v1447
    %2122 = vmatpush.bf16.msra.mxu0 %v1441
    %2123 = vmatpush.bf16.msra.mxu0 %v1435
    %2124 = vmatpush.bf16.msra.mxu0 %v1429
    %2125 = vmatpush.bf16.msra.mxu0 %v1423
    %2126 = vmatmul.bf16.gmra.mxu0 %v202
    %v2127 = vpop.f32.mrf.mxu0
    %v2128 = vadd.f32 %v2115, %v2127
    %v2129 = vpop.f32.mrf.mxu0
    %2130 = vdwg.mxu0
    %2131 = vmatpush.bf16.msra.mxu0 %v1513
    %2132 = vmatpush.bf16.msra.mxu0 %v1507
    %2133 = vmatpush.bf16.msra.mxu0 %v1501
    %2134 = vmatpush.bf16.msra.mxu0 %v1495
    %2135 = vmatpush.bf16.msra.mxu0 %v1489
    %2136 = vmatpush.bf16.msra.mxu0 %v1483
    %2137 = vmatpush.bf16.msra.mxu0 %v1477
    %2138 = vmatpush.bf16.msra.mxu0 %v1471
    %2139 = vmatmul.bf16.gmra.mxu0 %v203
    %v2140 = vpop.f32.mrf.mxu0
    %v2141 = vadd.f32 %v2128, %v2140
    %v2142 = vpop.f32.mrf.mxu0
    %2143 = vdwg.mxu0
    %2144 = vmatpush.bf16.msra.mxu0 %v1561
    %2145 = vmatpush.bf16.msra.mxu0 %v1555
    %2146 = vmatpush.bf16.msra.mxu0 %v1549
    %2147 = vmatpush.bf16.msra.mxu0 %v1543
    %2148 = vmatpush.bf16.msra.mxu0 %v1537
    %2149 = vmatpush.bf16.msra.mxu0 %v1531
    %2150 = vmatpush.bf16.msra.mxu0 %v1525
    %2151 = vmatpush.bf16.msra.mxu0 %v1519
    %2152 = vmatmul.bf16.gmra.mxu0 %v204
    %v2153 = vpop.f32.mrf.mxu0
    %v2154 = vadd.f32 %v2141, %v2153
    %v2155 = vpop.f32.mrf.mxu0
    %2156 = vdwg.mxu0
    %2157 = vmatpush.bf16.msra.mxu0 %v1609
    %2158 = vmatpush.bf16.msra.mxu0 %v1603
    %2159 = vmatpush.bf16.msra.mxu0 %v1597
    %2160 = vmatpush.bf16.msra.mxu0 %v1591
    %2161 = vmatpush.bf16.msra.mxu0 %v1585
    %2162 = vmatpush.bf16.msra.mxu0 %v1579
    %2163 = vmatpush.bf16.msra.mxu0 %v1573
    %2164 = vmatpush.bf16.msra.mxu0 %v1567
    %2165 = vmatmul.bf16.gmra.mxu0 %v205
    %v2166 = vpop.f32.mrf.mxu0
    %v2167 = vadd.f32 %v2154, %v2166
    %v2168 = vpop.f32.mrf.mxu0
    %2169 = vdwg.mxu0
    %2170 = vmatpush.bf16.msra.mxu0 %v1657
    %2171 = vmatpush.bf16.msra.mxu0 %v1651
    %2172 = vmatpush.bf16.msra.mxu0 %v1645
    %2173 = vmatpush.bf16.msra.mxu0 %v1639
    %2174 = vmatpush.bf16.msra.mxu0 %v1633
    %2175 = vmatpush.bf16.msra.mxu0 %v1627
    %2176 = vmatpush.bf16.msra.mxu0 %v1621
    %2177 = vmatpush.bf16.msra.mxu0 %v1615
    %2178 = vmatmul.bf16.gmra.mxu0 %v206
    %v2179 = vpop.f32.mrf.mxu0
    %v2180 = vadd.f32 %v2167, %v2179
    %v2181 = vpop.f32.mrf.mxu0
    %2182 = vdwg.mxu0
    %2183 = vmatpush.bf16.msra.mxu0 %v1418
    %2184 = vmatpush.bf16.msra.mxu0 %v1412
    %2185 = vmatpush.bf16.msra.mxu0 %v1406
    %2186 = vmatpush.bf16.msra.mxu0 %v1400
    %2187 = vmatpush.bf16.msra.mxu0 %v1394
    %2188 = vmatpush.bf16.msra.mxu0 %v1388
    %2189 = vmatpush.bf16.msra.mxu0 %v1382
    %2190 = vmatpush.bf16.msra.mxu0 %v1376
    %2191 = vmatmul.bf16.gmra.mxu0 %v201
    %v2192 = vpop.f32.mrf.mxu0
    %v2193 = vadd.f32 %v500, %v2192
    %v2194 = vpop.f32.mrf.mxu0
    %2195 = vdwg.mxu0
    %2196 = vmatpush.bf16.msra.mxu0 %v1466
    %2197 = vmatpush.bf16.msra.mxu0 %v1460
    %2198 = vmatpush.bf16.msra.mxu0 %v1454
    %2199 = vmatpush.bf16.msra.mxu0 %v1448
    %2200 = vmatpush.bf16.msra.mxu0 %v1442
    %2201 = vmatpush.bf16.msra.mxu0 %v1436
    %2202 = vmatpush.bf16.msra.mxu0 %v1430
    %2203 = vmatpush.bf16.msra.mxu0 %v1424
    %2204 = vmatmul.bf16.gmra.mxu0 %v202
    %v2205 = vpop.f32.mrf.mxu0
    %v2206 = vadd.f32 %v2193, %v2205
    %v2207 = vpop.f32.mrf.mxu0
    %2208 = vdwg.mxu0
    %2209 = vmatpush.bf16.msra.mxu0 %v1514
    %2210 = vmatpush.bf16.msra.mxu0 %v1508
    %2211 = vmatpush.bf16.msra.mxu0 %v1502
    %2212 = vmatpush.bf16.msra.mxu0 %v1496
    %2213 = vmatpush.bf16.msra.mxu0 %v1490
    %2214 = vmatpush.bf16.msra.mxu0 %v1484
    %2215 = vmatpush.bf16.msra.mxu0 %v1478
    %2216 = vmatpush.bf16.msra.mxu0 %v1472
    %2217 = vmatmul.bf16.gmra.mxu0 %v203
    %v2218 = vpop.f32.mrf.mxu0
    %v2219 = vadd.f32 %v2206, %v2218
    %v2220 = vpop.f32.mrf.mxu0
    %2221 = vdwg.mxu0
    %2222 = vmatpush.bf16.msra.mxu0 %v1562
    %2223 = vmatpush.bf16.msra.mxu0 %v1556
    %2224 = vmatpush.bf16.msra.mxu0 %v1550
    %2225 = vmatpush.bf16.msra.mxu0 %v1544
    %2226 = vmatpush.bf16.msra.mxu0 %v1538
    %2227 = vmatpush.bf16.msra.mxu0 %v1532
    %2228 = vmatpush.bf16.msra.mxu0 %v1526
    %2229 = vmatpush.bf16.msra.mxu0 %v1520
    %2230 = vmatmul.bf16.gmra.mxu0 %v204
    %v2231 = vpop.f32.mrf.mxu0
    %v2232 = vadd.f32 %v2219, %v2231
    %v2233 = vpop.f32.mrf.mxu0
    %2234 = vdwg.mxu0
    %2235 = vmatpush.bf16.msra.mxu0 %v1610
    %2236 = vmatpush.bf16.msra.mxu0 %v1604
    %2237 = vmatpush.bf16.msra.mxu0 %v1598
    %2238 = vmatpush.bf16.msra.mxu0 %v1592
    %2239 = vmatpush.bf16.msra.mxu0 %v1586
    %2240 = vmatpush.bf16.msra.mxu0 %v1580
    %2241 = vmatpush.bf16.msra.mxu0 %v1574
    %2242 = vmatpush.bf16.msra.mxu0 %v1568
    %2243 = vmatmul.bf16.gmra.mxu0 %v205
    %v2244 = vpop.f32.mrf.mxu0
    %v2245 = vadd.f32 %v2232, %v2244
    %v2246 = vpop.f32.mrf.mxu0
    %2247 = vdwg.mxu0
    %2248 = vmatpush.bf16.msra.mxu0 %v1658
    %2249 = vmatpush.bf16.msra.mxu0 %v1652
    %2250 = vmatpush.bf16.msra.mxu0 %v1646
    %2251 = vmatpush.bf16.msra.mxu0 %v1640
    %2252 = vmatpush.bf16.msra.mxu0 %v1634
    %2253 = vmatpush.bf16.msra.mxu0 %v1628
    %2254 = vmatpush.bf16.msra.mxu0 %v1622
    %2255 = vmatpush.bf16.msra.mxu0 %v1616
    %2256 = vmatmul.bf16.gmra.mxu0 %v206
    %v2257 = vpop.f32.mrf.mxu0
    %v2258 = vadd.f32 %v2245, %v2257
    %v2259 = vpop.f32.mrf.mxu0
    %2260 = vdwg.mxu0
    %2261 = vmatpush.bf16.msra.mxu0 %v1419
    %2262 = vmatpush.bf16.msra.mxu0 %v1413
    %2263 = vmatpush.bf16.msra.mxu0 %v1407
    %2264 = vmatpush.bf16.msra.mxu0 %v1401
    %2265 = vmatpush.bf16.msra.mxu0 %v1395
    %2266 = vmatpush.bf16.msra.mxu0 %v1389
    %2267 = vmatpush.bf16.msra.mxu0 %v1383
    %2268 = vmatpush.bf16.msra.mxu0 %v1377
    %2269 = vmatmul.bf16.gmra.mxu0 %v201
    %v2270 = vpop.f32.mrf.mxu0
    %v2271 = vadd.f32 %v501, %v2270
    %v2272 = vpop.f32.mrf.mxu0
    %2273 = vdwg.mxu0
    %2274 = vmatpush.bf16.msra.mxu0 %v1467
    %2275 = vmatpush.bf16.msra.mxu0 %v1461
    %2276 = vmatpush.bf16.msra.mxu0 %v1455
    %2277 = vmatpush.bf16.msra.mxu0 %v1449
    %2278 = vmatpush.bf16.msra.mxu0 %v1443
    %2279 = vmatpush.bf16.msra.mxu0 %v1437
    %2280 = vmatpush.bf16.msra.mxu0 %v1431
    %2281 = vmatpush.bf16.msra.mxu0 %v1425
    %2282 = vmatmul.bf16.gmra.mxu0 %v202
    %v2283 = vpop.f32.mrf.mxu0
    %v2284 = vadd.f32 %v2271, %v2283
    %v2285 = vpop.f32.mrf.mxu0
    %2286 = vdwg.mxu0
    %2287 = vmatpush.bf16.msra.mxu0 %v1515
    %2288 = vmatpush.bf16.msra.mxu0 %v1509
    %2289 = vmatpush.bf16.msra.mxu0 %v1503
    %2290 = vmatpush.bf16.msra.mxu0 %v1497
    %2291 = vmatpush.bf16.msra.mxu0 %v1491
    %2292 = vmatpush.bf16.msra.mxu0 %v1485
    %2293 = vmatpush.bf16.msra.mxu0 %v1479
    %2294 = vmatpush.bf16.msra.mxu0 %v1473
    %2295 = vmatmul.bf16.gmra.mxu0 %v203
    %v2296 = vpop.f32.mrf.mxu0
    %v2297 = vadd.f32 %v2284, %v2296
    %v2298 = vpop.f32.mrf.mxu0
    %2299 = vdwg.mxu0
    %2300 = vmatpush.bf16.msra.mxu0 %v1563
    %2301 = vmatpush.bf16.msra.mxu0 %v1557
    %2302 = vmatpush.bf16.msra.mxu0 %v1551
    %2303 = vmatpush.bf16.msra.mxu0 %v1545
    %2304 = vmatpush.bf16.msra.mxu0 %v1539
    %2305 = vmatpush.bf16.msra.mxu0 %v1533
    %2306 = vmatpush.bf16.msra.mxu0 %v1527
    %2307 = vmatpush.bf16.msra.mxu0 %v1521
    %2308 = vmatmul.bf16.gmra.mxu0 %v204
    %v2309 = vpop.f32.mrf.mxu0
    %v2310 = vadd.f32 %v2297, %v2309
    %v2311 = vpop.f32.mrf.mxu0
    %2312 = vdwg.mxu0
    %2313 = vmatpush.bf16.msra.mxu0 %v1611
    %2314 = vmatpush.bf16.msra.mxu0 %v1605
    %2315 = vmatpush.bf16.msra.mxu0 %v1599
    %2316 = vmatpush.bf16.msra.mxu0 %v1593
    %2317 = vmatpush.bf16.msra.mxu0 %v1587
    %2318 = vmatpush.bf16.msra.mxu0 %v1581
    %2319 = vmatpush.bf16.msra.mxu0 %v1575
    %2320 = vmatpush.bf16.msra.mxu0 %v1569
    %2321 = vmatmul.bf16.gmra.mxu0 %v205
    %v2322 = vpop.f32.mrf.mxu0
    %v2323 = vadd.f32 %v2310, %v2322
    %v2324 = vpop.f32.mrf.mxu0
    %2325 = vdwg.mxu0
    %2326 = vmatpush.bf16.msra.mxu0 %v1659
    %2327 = vmatpush.bf16.msra.mxu0 %v1653
    %2328 = vmatpush.bf16.msra.mxu0 %v1647
    %2329 = vmatpush.bf16.msra.mxu0 %v1641
    %2330 = vmatpush.bf16.msra.mxu0 %v1635
    %2331 = vmatpush.bf16.msra.mxu0 %v1629
    %2332 = vmatpush.bf16.msra.mxu0 %v1623
    %2333 = vmatpush.bf16.msra.mxu0 %v1617
    %2334 = vmatmul.bf16.gmra.mxu0 %v206
    %v2335 = vpop.f32.mrf.mxu0
    %v2336 = vadd.f32 %v2323, %v2335
    %v2337 = vpop.f32.mrf.mxu0
    %2338 = vdwg.mxu0
    %2339 = vmatpush.bf16.msra.mxu0 %v1420
    %2340 = vmatpush.bf16.msra.mxu0 %v1414
    %2341 = vmatpush.bf16.msra.mxu0 %v1408
    %2342 = vmatpush.bf16.msra.mxu0 %v1402
    %2343 = vmatpush.bf16.msra.mxu0 %v1396
    %2344 = vmatpush.bf16.msra.mxu0 %v1390
    %2345 = vmatpush.bf16.msra.mxu0 %v1384
    %2346 = vmatpush.bf16.msra.mxu0 %v1378
    %2347 = vmatmul.bf16.gmra.mxu0 %v201
    %v2348 = vpop.f32.mrf.mxu0
    %v2349 = vadd.f32 %v502, %v2348
    %v2350 = vpop.f32.mrf.mxu0
    %2351 = vdwg.mxu0
    %2352 = vmatpush.bf16.msra.mxu0 %v1468
    %2353 = vmatpush.bf16.msra.mxu0 %v1462
    %2354 = vmatpush.bf16.msra.mxu0 %v1456
    %2355 = vmatpush.bf16.msra.mxu0 %v1450
    %2356 = vmatpush.bf16.msra.mxu0 %v1444
    %2357 = vmatpush.bf16.msra.mxu0 %v1438
    %2358 = vmatpush.bf16.msra.mxu0 %v1432
    %2359 = vmatpush.bf16.msra.mxu0 %v1426
    %2360 = vmatmul.bf16.gmra.mxu0 %v202
    %v2361 = vpop.f32.mrf.mxu0
    %v2362 = vadd.f32 %v2349, %v2361
    %v2363 = vpop.f32.mrf.mxu0
    %2364 = vdwg.mxu0
    %2365 = vmatpush.bf16.msra.mxu0 %v1516
    %2366 = vmatpush.bf16.msra.mxu0 %v1510
    %2367 = vmatpush.bf16.msra.mxu0 %v1504
    %2368 = vmatpush.bf16.msra.mxu0 %v1498
    %2369 = vmatpush.bf16.msra.mxu0 %v1492
    %2370 = vmatpush.bf16.msra.mxu0 %v1486
    %2371 = vmatpush.bf16.msra.mxu0 %v1480
    %2372 = vmatpush.bf16.msra.mxu0 %v1474
    %2373 = vmatmul.bf16.gmra.mxu0 %v203
    %v2374 = vpop.f32.mrf.mxu0
    %v2375 = vadd.f32 %v2362, %v2374
    %v2376 = vpop.f32.mrf.mxu0
    %2377 = vdwg.mxu0
    %2378 = vmatpush.bf16.msra.mxu0 %v1564
    %2379 = vmatpush.bf16.msra.mxu0 %v1558
    %2380 = vmatpush.bf16.msra.mxu0 %v1552
    %2381 = vmatpush.bf16.msra.mxu0 %v1546
    %2382 = vmatpush.bf16.msra.mxu0 %v1540
    %2383 = vmatpush.bf16.msra.mxu0 %v1534
    %2384 = vmatpush.bf16.msra.mxu0 %v1528
    %2385 = vmatpush.bf16.msra.mxu0 %v1522
    %2386 = vmatmul.bf16.gmra.mxu0 %v204
    %v2387 = vpop.f32.mrf.mxu0
    %v2388 = vadd.f32 %v2375, %v2387
    %v2389 = vpop.f32.mrf.mxu0
    %2390 = vdwg.mxu0
    %2391 = vmatpush.bf16.msra.mxu0 %v1612
    %2392 = vmatpush.bf16.msra.mxu0 %v1606
    %2393 = vmatpush.bf16.msra.mxu0 %v1600
    %2394 = vmatpush.bf16.msra.mxu0 %v1594
    %2395 = vmatpush.bf16.msra.mxu0 %v1588
    %2396 = vmatpush.bf16.msra.mxu0 %v1582
    %2397 = vmatpush.bf16.msra.mxu0 %v1576
    %2398 = vmatpush.bf16.msra.mxu0 %v1570
    %2399 = vmatmul.bf16.gmra.mxu0 %v205
    %v2400 = vpop.f32.mrf.mxu0
    %v2401 = vadd.f32 %v2388, %v2400
    %v2402 = vpop.f32.mrf.mxu0
    %2403 = vdwg.mxu0
    %2404 = vmatpush.bf16.msra.mxu0 %v1660
    %2405 = vmatpush.bf16.msra.mxu0 %v1654
    %2406 = vmatpush.bf16.msra.mxu0 %v1648
    %2407 = vmatpush.bf16.msra.mxu0 %v1642
    %2408 = vmatpush.bf16.msra.mxu0 %v1636
    %2409 = vmatpush.bf16.msra.mxu0 %v1630
    %2410 = vmatpush.bf16.msra.mxu0 %v1624
    %2411 = vmatpush.bf16.msra.mxu0 %v1618
    %2412 = vmatmul.bf16.gmra.mxu0 %v206
    %v2413 = vpop.f32.mrf.mxu0
    %v2414 = vadd.f32 %v2401, %v2413
    %v2415 = vpop.f32.mrf.mxu0
    %2416 = vdwg.mxu0
    %v2417 = vtanh.pop %v2024
    %v2418 = vtanh.pop %v2102
    %v2419 = vtanh.pop %v2180
    %v2420 = vtanh.pop %v2258
    %v2421 = vtanh.pop %v2336
    %v2422 = vtanh.pop %v2414
    %2423 = vst [vmem:[#allocation20] sm:$0xff] %v2417
    %2424 = vst [vmem:[#allocation20 + $0x8] sm:$0xff] %v2418
    %2425 = vst [vmem:[#allocation20 + $0x10] sm:$0xff] %v2419
    %2426 = vst [vmem:[#allocation20 + $0x18] sm:$0xff] %v2420
    %2427 = vst [vmem:[#allocation20 + $0x20] sm:$0xff] %v2421
    %2428 = vst [vmem:[#allocation20 + $0x28] sm:$0xff] %v2422
    %v2429 = vpack.c.bf16 %v2417, %v2417
    %v2430 = vpack.c.bf16 %v2418, %v2418
    %v2431 = vpack.c.bf16 %v2419, %v2419
    %v2432 = vpack.c.bf16 %v2420, %v2420
    %v2433 = vpack.c.bf16 %v2421, %v2421
    %v2434 = vpack.c.bf16 %v2422, %v2422
    %v2435 = vld [vmem:[#allocation12] sm:$0xff]
    %v2436 = vld [vmem:[#allocation12 + $0x8] sm:$0xff]
    %v2437 = vld [vmem:[#allocation12 + $0x10] sm:$0xff]
    %v2438 = vld [vmem:[#allocation12 + $0x18] sm:$0xff]
    %v2439 = vld [vmem:[#allocation12 + $0x20] sm:$0xff]
    %v2440 = vld [vmem:[#allocation12 + $0x28] sm:$0xff]
    %v2441 = vld [vmem:[#allocation12 + $0x30] sm:$0xff]
    %v2442 = vld [vmem:[#allocation12 + $0x38] sm:$0xff]
    %v2443 = vld [vmem:[#allocation12 + $0x40] sm:$0xff]
    %v2444 = vld [vmem:[#allocation12 + $0x48] sm:$0xff]
    %v2445 = vld [vmem:[#allocation12 + $0x50] sm:$0xff]
    %v2446 = vld [vmem:[#allocation12 + $0x58] sm:$0xff]
    %v2447 = vld [vmem:[#allocation12 + $0x60] sm:$0xff]
    %v2448 = vld [vmem:[#allocation12 + $0x68] sm:$0xff]
    %v2449 = vld [vmem:[#allocation12 + $0x70] sm:$0xff]
    %v2450 = vld [vmem:[#allocation12 + $0x78] sm:$0xff]
    %v2451 = vld [vmem:[#allocation12 + $0x80] sm:$0xff]
    %v2452 = vld [vmem:[#allocation12 + $0x88] sm:$0xff]
    %v2453 = vld [vmem:[#allocation12 + $0x90] sm:$0xff]
    %v2454 = vld [vmem:[#allocation12 + $0x98] sm:$0xff]
    %v2455 = vld [vmem:[#allocation12 + $0xa0] sm:$0xff]
    %v2456 = vld [vmem:[#allocation12 + $0xa8] sm:$0xff]
    %v2457 = vld [vmem:[#allocation12 + $0xb0] sm:$0xff]
    %v2458 = vld [vmem:[#allocation12 + $0xb8] sm:$0xff]
    %v2459 = vld [vmem:[#allocation12 + $0xc0] sm:$0xff]
    %v2460 = vld [vmem:[#allocation12 + $0xc8] sm:$0xff]
    %v2461 = vld [vmem:[#allocation12 + $0xd0] sm:$0xff]
    %v2462 = vld [vmem:[#allocation12 + $0xd8] sm:$0xff]
    %v2463 = vld [vmem:[#allocation12 + $0xe0] sm:$0xff]
    %v2464 = vld [vmem:[#allocation12 + $0xe8] sm:$0xff]
    %v2465 = vld [vmem:[#allocation12 + $0xf0] sm:$0xff]
    %v2466 = vld [vmem:[#allocation12 + $0xf8] sm:$0xff]
    %v2467 = vld [vmem:[#allocation12 + $0x100] sm:$0xff]
    %v2468 = vld [vmem:[#allocation12 + $0x108] sm:$0xff]
    %v2469 = vld [vmem:[#allocation12 + $0x110] sm:$0xff]
    %v2470 = vld [vmem:[#allocation12 + $0x118] sm:$0xff]
    %v2471 = vld [vmem:[#allocation12 + $0x120] sm:$0xff]
    %v2472 = vld [vmem:[#allocation12 + $0x128] sm:$0xff]
    %v2473 = vld [vmem:[#allocation12 + $0x130] sm:$0xff]
    %v2474 = vld [vmem:[#allocation12 + $0x138] sm:$0xff]
    %v2475 = vld [vmem:[#allocation12 + $0x140] sm:$0xff]
    %v2476 = vld [vmem:[#allocation12 + $0x148] sm:$0xff]
    %v2477 = vld [vmem:[#allocation12 + $0x150] sm:$0xff]
    %v2478 = vld [vmem:[#allocation12 + $0x158] sm:$0xff]
    %v2479 = vld [vmem:[#allocation12 + $0x160] sm:$0xff]
    %v2480 = vld [vmem:[#allocation12 + $0x168] sm:$0xff]
    %v2481 = vld [vmem:[#allocation12 + $0x170] sm:$0xff]
    %v2482 = vld [vmem:[#allocation12 + $0x178] sm:$0xff]
    %v2483 = vld [vmem:[#allocation12 + $0x180] sm:$0xff]
    %v2484 = vld [vmem:[#allocation12 + $0x188] sm:$0xff]
    %v2485 = vld [vmem:[#allocation12 + $0x190] sm:$0xff]
    %v2486 = vld [vmem:[#allocation12 + $0x198] sm:$0xff]
    %v2487 = vld [vmem:[#allocation12 + $0x1a0] sm:$0xff]
    %v2488 = vld [vmem:[#allocation12 + $0x1a8] sm:$0xff]
    %v2489 = vld [vmem:[#allocation12 + $0x1b0] sm:$0xff]
    %v2490 = vld [vmem:[#allocation12 + $0x1b8] sm:$0xff]
    %v2491 = vld [vmem:[#allocation12 + $0x1c0] sm:$0xff]
    %v2492 = vld [vmem:[#allocation12 + $0x1c8] sm:$0xff]
    %v2493 = vld [vmem:[#allocation12 + $0x1d0] sm:$0xff]
    %v2494 = vld [vmem:[#allocation12 + $0x1d8] sm:$0xff]
    %v2495 = vld [vmem:[#allocation12 + $0x1e0] sm:$0xff]
    %v2496 = vld [vmem:[#allocation12 + $0x1e8] sm:$0xff]
    %v2497 = vld [vmem:[#allocation12 + $0x1f0] sm:$0xff]
    %v2498 = vld [vmem:[#allocation12 + $0x1f8] sm:$0xff]
    %v2499 = vld [vmem:[#allocation12 + $0x200] sm:$0xff]
    %v2500 = vld [vmem:[#allocation12 + $0x208] sm:$0xff]
    %v2501 = vld [vmem:[#allocation12 + $0x210] sm:$0xff]
    %v2502 = vld [vmem:[#allocation12 + $0x218] sm:$0xff]
    %v2503 = vld [vmem:[#allocation12 + $0x220] sm:$0xff]
    %v2504 = vld [vmem:[#allocation12 + $0x228] sm:$0xff]
    %v2505 = vld [vmem:[#allocation12 + $0x230] sm:$0xff]
    %v2506 = vld [vmem:[#allocation12 + $0x238] sm:$0xff]
    %v2507 = vld [vmem:[#allocation12 + $0x240] sm:$0xff]
    %v2508 = vld [vmem:[#allocation12 + $0x248] sm:$0xff]
    %v2509 = vld [vmem:[#allocation12 + $0x250] sm:$0xff]
    %v2510 = vld [vmem:[#allocation12 + $0x258] sm:$0xff]
    %v2511 = vld [vmem:[#allocation12 + $0x260] sm:$0xff]
    %v2512 = vld [vmem:[#allocation12 + $0x268] sm:$0xff]
    %v2513 = vld [vmem:[#allocation12 + $0x270] sm:$0xff]
    %v2514 = vld [vmem:[#allocation12 + $0x278] sm:$0xff]
    %v2515 = vld [vmem:[#allocation12 + $0x280] sm:$0xff]
    %v2516 = vld [vmem:[#allocation12 + $0x288] sm:$0xff]
    %v2517 = vld [vmem:[#allocation12 + $0x290] sm:$0xff]
    %v2518 = vld [vmem:[#allocation12 + $0x298] sm:$0xff]
    %v2519 = vld [vmem:[#allocation12 + $0x2a0] sm:$0xff]
    %v2520 = vld [vmem:[#allocation12 + $0x2a8] sm:$0xff]
    %v2521 = vld [vmem:[#allocation12 + $0x2b0] sm:$0xff]
    %v2522 = vld [vmem:[#allocation12 + $0x2b8] sm:$0xff]
    %v2523 = vld [vmem:[#allocation12 + $0x2c0] sm:$0xff]
    %v2524 = vld [vmem:[#allocation12 + $0x2c8] sm:$0xff]
    %v2525 = vld [vmem:[#allocation12 + $0x2d0] sm:$0xff]
    %v2526 = vld [vmem:[#allocation12 + $0x2d8] sm:$0xff]
    %v2527 = vld [vmem:[#allocation12 + $0x2e0] sm:$0xff]
    %v2528 = vld [vmem:[#allocation12 + $0x2e8] sm:$0xff]
    %v2529 = vld [vmem:[#allocation12 + $0x2f0] sm:$0xff]
    %v2530 = vld [vmem:[#allocation12 + $0x2f8] sm:$0xff]
    %v2531 = vld [vmem:[#allocation12 + $0x300] sm:$0xff]
    %v2532 = vld [vmem:[#allocation12 + $0x308] sm:$0xff]
    %v2533 = vld [vmem:[#allocation12 + $0x310] sm:$0xff]
    %v2534 = vld [vmem:[#allocation12 + $0x318] sm:$0xff]
    %v2535 = vld [vmem:[#allocation12 + $0x320] sm:$0xff]
    %v2536 = vld [vmem:[#allocation12 + $0x328] sm:$0xff]
    %v2537 = vld [vmem:[#allocation12 + $0x330] sm:$0xff]
    %v2538 = vld [vmem:[#allocation12 + $0x338] sm:$0xff]
    %v2539 = vld [vmem:[#allocation12 + $0x340] sm:$0xff]
    %v2540 = vld [vmem:[#allocation12 + $0x348] sm:$0xff]
    %v2541 = vld [vmem:[#allocation12 + $0x350] sm:$0xff]
    %v2542 = vld [vmem:[#allocation12 + $0x358] sm:$0xff]
    %v2543 = vld [vmem:[#allocation12 + $0x360] sm:$0xff]
    %v2544 = vld [vmem:[#allocation12 + $0x368] sm:$0xff]
    %v2545 = vld [vmem:[#allocation12 + $0x370] sm:$0xff]
    %v2546 = vld [vmem:[#allocation12 + $0x378] sm:$0xff]
    %v2547 = vld [vmem:[#allocation12 + $0x380] sm:$0xff]
    %v2548 = vld [vmem:[#allocation12 + $0x388] sm:$0xff]
    %v2549 = vld [vmem:[#allocation12 + $0x390] sm:$0xff]
    %v2550 = vld [vmem:[#allocation12 + $0x398] sm:$0xff]
    %v2551 = vld [vmem:[#allocation12 + $0x3a0] sm:$0xff]
    %v2552 = vld [vmem:[#allocation12 + $0x3a8] sm:$0xff]
    %v2553 = vld [vmem:[#allocation12 + $0x3b0] sm:$0xff]
    %v2554 = vld [vmem:[#allocation12 + $0x3b8] sm:$0xff]
    %v2555 = vld [vmem:[#allocation12 + $0x3c0] sm:$0xff]
    %v2556 = vld [vmem:[#allocation12 + $0x3c8] sm:$0xff]
    %v2557 = vld [vmem:[#allocation12 + $0x3d0] sm:$0xff]
    %v2558 = vld [vmem:[#allocation12 + $0x3d8] sm:$0xff]
    %v2559 = vld [vmem:[#allocation12 + $0x3e0] sm:$0xff]
    %v2560 = vld [vmem:[#allocation12 + $0x3e8] sm:$0xff]
    %v2561 = vld [vmem:[#allocation12 + $0x3f0] sm:$0xff]
    %v2562 = vld [vmem:[#allocation12 + $0x3f8] sm:$0xff]
    %v2563 = vld [vmem:[#allocation12 + $0x400] sm:$0xff]
    %v2564 = vld [vmem:[#allocation12 + $0x408] sm:$0xff]
    %v2565 = vld [vmem:[#allocation12 + $0x410] sm:$0xff]
    %v2566 = vld [vmem:[#allocation12 + $0x418] sm:$0xff]
    %v2567 = vld [vmem:[#allocation12 + $0x420] sm:$0xff]
    %v2568 = vld [vmem:[#allocation12 + $0x428] sm:$0xff]
    %v2569 = vld [vmem:[#allocation12 + $0x430] sm:$0xff]
    %v2570 = vld [vmem:[#allocation12 + $0x438] sm:$0xff]
    %v2571 = vld [vmem:[#allocation12 + $0x440] sm:$0xff]
    %v2572 = vld [vmem:[#allocation12 + $0x448] sm:$0xff]
    %v2573 = vld [vmem:[#allocation12 + $0x450] sm:$0xff]
    %v2574 = vld [vmem:[#allocation12 + $0x458] sm:$0xff]
    %v2575 = vld [vmem:[#allocation12 + $0x460] sm:$0xff]
    %v2576 = vld [vmem:[#allocation12 + $0x468] sm:$0xff]
    %v2577 = vld [vmem:[#allocation12 + $0x470] sm:$0xff]
    %v2578 = vld [vmem:[#allocation12 + $0x478] sm:$0xff]
    %v2579 = vld [vmem:[#allocation12 + $0x480] sm:$0xff]
    %v2580 = vld [vmem:[#allocation12 + $0x488] sm:$0xff]
    %v2581 = vld [vmem:[#allocation12 + $0x490] sm:$0xff]
    %v2582 = vld [vmem:[#allocation12 + $0x498] sm:$0xff]
    %v2583 = vld [vmem:[#allocation12 + $0x4a0] sm:$0xff]
    %v2584 = vld [vmem:[#allocation12 + $0x4a8] sm:$0xff]
    %v2585 = vld [vmem:[#allocation12 + $0x4b0] sm:$0xff]
    %v2586 = vld [vmem:[#allocation12 + $0x4b8] sm:$0xff]
    %v2587 = vld [vmem:[#allocation12 + $0x4c0] sm:$0xff]
    %v2588 = vld [vmem:[#allocation12 + $0x4c8] sm:$0xff]
    %v2589 = vld [vmem:[#allocation12 + $0x4d0] sm:$0xff]
    %v2590 = vld [vmem:[#allocation12 + $0x4d8] sm:$0xff]
    %v2591 = vld [vmem:[#allocation12 + $0x4e0] sm:$0xff]
    %v2592 = vld [vmem:[#allocation12 + $0x4e8] sm:$0xff]
    %v2593 = vld [vmem:[#allocation12 + $0x4f0] sm:$0xff]
    %v2594 = vld [vmem:[#allocation12 + $0x4f8] sm:$0xff]
    %v2595 = vld [vmem:[#allocation12 + $0x500] sm:$0xff]
    %v2596 = vld [vmem:[#allocation12 + $0x508] sm:$0xff]
    %v2597 = vld [vmem:[#allocation12 + $0x510] sm:$0xff]
    %v2598 = vld [vmem:[#allocation12 + $0x518] sm:$0xff]
    %v2599 = vld [vmem:[#allocation12 + $0x520] sm:$0xff]
    %v2600 = vld [vmem:[#allocation12 + $0x528] sm:$0xff]
    %v2601 = vld [vmem:[#allocation12 + $0x530] sm:$0xff]
    %v2602 = vld [vmem:[#allocation12 + $0x538] sm:$0xff]
    %v2603 = vld [vmem:[#allocation12 + $0x540] sm:$0xff]
    %v2604 = vld [vmem:[#allocation12 + $0x548] sm:$0xff]
    %v2605 = vld [vmem:[#allocation12 + $0x550] sm:$0xff]
    %v2606 = vld [vmem:[#allocation12 + $0x558] sm:$0xff]
    %v2607 = vld [vmem:[#allocation12 + $0x560] sm:$0xff]
    %v2608 = vld [vmem:[#allocation12 + $0x568] sm:$0xff]
    %v2609 = vld [vmem:[#allocation12 + $0x570] sm:$0xff]
    %v2610 = vld [vmem:[#allocation12 + $0x578] sm:$0xff]
    %v2611 = vld [vmem:[#allocation12 + $0x580] sm:$0xff]
    %v2612 = vld [vmem:[#allocation12 + $0x588] sm:$0xff]
    %v2613 = vld [vmem:[#allocation12 + $0x590] sm:$0xff]
    %v2614 = vld [vmem:[#allocation12 + $0x598] sm:$0xff]
    %v2615 = vld [vmem:[#allocation12 + $0x5a0] sm:$0xff]
    %v2616 = vld [vmem:[#allocation12 + $0x5a8] sm:$0xff]
    %v2617 = vld [vmem:[#allocation12 + $0x5b0] sm:$0xff]
    %v2618 = vld [vmem:[#allocation12 + $0x5b8] sm:$0xff]
    %v2619 = vld [vmem:[#allocation12 + $0x5c0] sm:$0xff]
    %v2620 = vld [vmem:[#allocation12 + $0x5c8] sm:$0xff]
    %v2621 = vld [vmem:[#allocation12 + $0x5d0] sm:$0xff]
    %v2622 = vld [vmem:[#allocation12 + $0x5d8] sm:$0xff]
    %v2623 = vld [vmem:[#allocation12 + $0x5e0] sm:$0xff]
    %v2624 = vld [vmem:[#allocation12 + $0x5e8] sm:$0xff]
    %v2625 = vld [vmem:[#allocation12 + $0x5f0] sm:$0xff]
    %v2626 = vld [vmem:[#allocation12 + $0x5f8] sm:$0xff]
    %v2627 = vld [vmem:[#allocation12 + $0x600] sm:$0xff]
    %v2628 = vld [vmem:[#allocation12 + $0x608] sm:$0xff]
    %v2629 = vld [vmem:[#allocation12 + $0x610] sm:$0xff]
    %v2630 = vld [vmem:[#allocation12 + $0x618] sm:$0xff]
    %v2631 = vld [vmem:[#allocation12 + $0x620] sm:$0xff]
    %v2632 = vld [vmem:[#allocation12 + $0x628] sm:$0xff]
    %v2633 = vld [vmem:[#allocation12 + $0x630] sm:$0xff]
    %v2634 = vld [vmem:[#allocation12 + $0x638] sm:$0xff]
    %v2635 = vld [vmem:[#allocation12 + $0x640] sm:$0xff]
    %v2636 = vld [vmem:[#allocation12 + $0x648] sm:$0xff]
    %v2637 = vld [vmem:[#allocation12 + $0x650] sm:$0xff]
    %v2638 = vld [vmem:[#allocation12 + $0x658] sm:$0xff]
    %v2639 = vld [vmem:[#allocation12 + $0x660] sm:$0xff]
    %v2640 = vld [vmem:[#allocation12 + $0x668] sm:$0xff]
    %v2641 = vld [vmem:[#allocation12 + $0x670] sm:$0xff]
    %v2642 = vld [vmem:[#allocation12 + $0x678] sm:$0xff]
    %v2643 = vld [vmem:[#allocation12 + $0x680] sm:$0xff]
    %v2644 = vld [vmem:[#allocation12 + $0x688] sm:$0xff]
    %v2645 = vld [vmem:[#allocation12 + $0x690] sm:$0xff]
    %v2646 = vld [vmem:[#allocation12 + $0x698] sm:$0xff]
    %v2647 = vld [vmem:[#allocation12 + $0x6a0] sm:$0xff]
    %v2648 = vld [vmem:[#allocation12 + $0x6a8] sm:$0xff]
    %v2649 = vld [vmem:[#allocation12 + $0x6b0] sm:$0xff]
    %v2650 = vld [vmem:[#allocation12 + $0x6b8] sm:$0xff]
    %v2651 = vld [vmem:[#allocation12 + $0x6c0] sm:$0xff]
    %v2652 = vld [vmem:[#allocation12 + $0x6c8] sm:$0xff]
    %v2653 = vld [vmem:[#allocation12 + $0x6d0] sm:$0xff]
    %v2654 = vld [vmem:[#allocation12 + $0x6d8] sm:$0xff]
    %v2655 = vld [vmem:[#allocation12 + $0x6e0] sm:$0xff]
    %v2656 = vld [vmem:[#allocation12 + $0x6e8] sm:$0xff]
    %v2657 = vld [vmem:[#allocation12 + $0x6f0] sm:$0xff]
    %v2658 = vld [vmem:[#allocation12 + $0x6f8] sm:$0xff]
    %v2659 = vld [vmem:[#allocation12 + $0x700] sm:$0xff]
    %v2660 = vld [vmem:[#allocation12 + $0x708] sm:$0xff]
    %v2661 = vld [vmem:[#allocation12 + $0x710] sm:$0xff]
    %v2662 = vld [vmem:[#allocation12 + $0x718] sm:$0xff]
    %v2663 = vld [vmem:[#allocation12 + $0x720] sm:$0xff]
    %v2664 = vld [vmem:[#allocation12 + $0x728] sm:$0xff]
    %v2665 = vld [vmem:[#allocation12 + $0x730] sm:$0xff]
    %v2666 = vld [vmem:[#allocation12 + $0x738] sm:$0xff]
    %v2667 = vld [vmem:[#allocation12 + $0x740] sm:$0xff]
    %v2668 = vld [vmem:[#allocation12 + $0x748] sm:$0xff]
    %v2669 = vld [vmem:[#allocation12 + $0x750] sm:$0xff]
    %v2670 = vld [vmem:[#allocation12 + $0x758] sm:$0xff]
    %v2671 = vld [vmem:[#allocation12 + $0x760] sm:$0xff]
    %v2672 = vld [vmem:[#allocation12 + $0x768] sm:$0xff]
    %v2673 = vld [vmem:[#allocation12 + $0x770] sm:$0xff]
    %v2674 = vld [vmem:[#allocation12 + $0x778] sm:$0xff]
    %v2675 = vld [vmem:[#allocation12 + $0x780] sm:$0xff]
    %v2676 = vld [vmem:[#allocation12 + $0x788] sm:$0xff]
    %v2677 = vld [vmem:[#allocation12 + $0x790] sm:$0xff]
    %v2678 = vld [vmem:[#allocation12 + $0x798] sm:$0xff]
    %v2679 = vld [vmem:[#allocation12 + $0x7a0] sm:$0xff]
    %v2680 = vld [vmem:[#allocation12 + $0x7a8] sm:$0xff]
    %v2681 = vld [vmem:[#allocation12 + $0x7b0] sm:$0xff]
    %v2682 = vld [vmem:[#allocation12 + $0x7b8] sm:$0xff]
    %v2683 = vld [vmem:[#allocation12 + $0x7c0] sm:$0xff]
    %v2684 = vld [vmem:[#allocation12 + $0x7c8] sm:$0xff]
    %v2685 = vld [vmem:[#allocation12 + $0x7d0] sm:$0xff]
    %v2686 = vld [vmem:[#allocation12 + $0x7d8] sm:$0xff]
    %v2687 = vld [vmem:[#allocation12 + $0x7e0] sm:$0xff]
    %v2688 = vld [vmem:[#allocation12 + $0x7e8] sm:$0xff]
    %v2689 = vld [vmem:[#allocation12 + $0x7f0] sm:$0xff]
    %v2690 = vld [vmem:[#allocation12 + $0x7f8] sm:$0xff]
    %v2691 = vld [vmem:[#allocation12 + $0x800] sm:$0xff]
    %v2692 = vld [vmem:[#allocation12 + $0x808] sm:$0xff]
    %v2693 = vld [vmem:[#allocation12 + $0x810] sm:$0xff]
    %v2694 = vld [vmem:[#allocation12 + $0x818] sm:$0xff]
    %v2695 = vld [vmem:[#allocation12 + $0x820] sm:$0xff]
    %v2696 = vld [vmem:[#allocation12 + $0x828] sm:$0xff]
    %v2697 = vld [vmem:[#allocation12 + $0x830] sm:$0xff]
    %v2698 = vld [vmem:[#allocation12 + $0x838] sm:$0xff]
    %v2699 = vld [vmem:[#allocation12 + $0x840] sm:$0xff]
    %v2700 = vld [vmem:[#allocation12 + $0x848] sm:$0xff]
    %v2701 = vld [vmem:[#allocation12 + $0x850] sm:$0xff]
    %v2702 = vld [vmem:[#allocation12 + $0x858] sm:$0xff]
    %v2703 = vld [vmem:[#allocation12 + $0x860] sm:$0xff]
    %v2704 = vld [vmem:[#allocation12 + $0x868] sm:$0xff]
    %v2705 = vld [vmem:[#allocation12 + $0x870] sm:$0xff]
    %v2706 = vld [vmem:[#allocation12 + $0x878] sm:$0xff]
    %v2707 = vld [vmem:[#allocation12 + $0x880] sm:$0xff]
    %v2708 = vld [vmem:[#allocation12 + $0x888] sm:$0xff]
    %v2709 = vld [vmem:[#allocation12 + $0x890] sm:$0xff]
    %v2710 = vld [vmem:[#allocation12 + $0x898] sm:$0xff]
    %v2711 = vld [vmem:[#allocation12 + $0x8a0] sm:$0xff]
    %v2712 = vld [vmem:[#allocation12 + $0x8a8] sm:$0xff]
    %v2713 = vld [vmem:[#allocation12 + $0x8b0] sm:$0xff]
    %v2714 = vld [vmem:[#allocation12 + $0x8b8] sm:$0xff]
    %v2715 = vld [vmem:[#allocation12 + $0x8c0] sm:$0xff]
    %v2716 = vld [vmem:[#allocation12 + $0x8c8] sm:$0xff]
    %v2717 = vld [vmem:[#allocation12 + $0x8d0] sm:$0xff]
    %v2718 = vld [vmem:[#allocation12 + $0x8d8] sm:$0xff]
    %v2719 = vld [vmem:[#allocation12 + $0x8e0] sm:$0xff]
    %v2720 = vld [vmem:[#allocation12 + $0x8e8] sm:$0xff]
    %v2721 = vld [vmem:[#allocation12 + $0x8f0] sm:$0xff]
    %v2722 = vld [vmem:[#allocation12 + $0x8f8] sm:$0xff]
    %v2723 = vld [vmem:[#allocation6] sm:$0xff]
    %v2724 = vpack.c.bf16 %v2723, %v2723
    %v2725 = vld [vmem:[#allocation14] sm:$0xff]
    %v2726 = vld [vmem:[#allocation14 + $0x8] sm:$0xff]
    %v2727 = vld [vmem:[#allocation14 + $0x10] sm:$0xff]
    %v2728 = vld [vmem:[#allocation14 + $0x18] sm:$0xff]
    %v2729 = vld [vmem:[#allocation14 + $0x20] sm:$0xff]
    %v2730 = vld [vmem:[#allocation14 + $0x28] sm:$0xff]
    %v2731 = vld [vmem:[#allocation14 + $0x30] sm:$0xff]
    %v2732 = vld [vmem:[#allocation14 + $0x38] sm:$0xff]
    %v2733 = vld [vmem:[#allocation14 + $0x40] sm:$0xff]
    %v2734 = vld [vmem:[#allocation14 + $0x48] sm:$0xff]
    %v2735 = vld [vmem:[#allocation14 + $0x50] sm:$0xff]
    %v2736 = vld [vmem:[#allocation14 + $0x58] sm:$0xff]
    %v2749 = vunpack.c.l.b16 %v2725
    %v2750 = vunpack.c.h.b16 %v2725
    %v2751 = vunpack.c.l.b16 %v2726
    %v2752 = vunpack.c.h.b16 %v2726
    %v2753 = vunpack.c.l.b16 %v2727
    %v2754 = vunpack.c.h.b16 %v2727
    %v2755 = vunpack.c.l.b16 %v2728
    %v2756 = vunpack.c.h.b16 %v2728
    %v2757 = vunpack.c.l.b16 %v2729
    %v2758 = vunpack.c.h.b16 %v2729
    %v2759 = vunpack.c.l.b16 %v2730
    %v2760 = vunpack.c.h.b16 %v2730
    %v2761 = vunpack.c.l.b16 %v2731
    %v2762 = vunpack.c.h.b16 %v2731
    %v2763 = vunpack.c.l.b16 %v2732
    %v2764 = vunpack.c.h.b16 %v2732
    %v2765 = vunpack.c.l.b16 %v2733
    %v2766 = vunpack.c.h.b16 %v2733
    %v2767 = vunpack.c.l.b16 %v2734
    %v2768 = vunpack.c.h.b16 %v2734
    %v2769 = vunpack.c.l.b16 %v2735
    %v2770 = vunpack.c.h.b16 %v2735
    %v2771 = vunpack.c.l.b16 %v2736
    %v2772 = vunpack.c.h.b16 %v2736
    %v2773 = vpack.c.b16 %v2755, %v2749
    %v2774 = vpack.c.b16 %v2756, %v2750
    %v2775 = vpack.c.b16 %v2757, %v2751
    %v2776 = vpack.c.b16 %v2758, %v2752
    %v2777 = vpack.c.b16 %v2759, %v2753
    %v2778 = vpack.c.b16 %v2760, %v2754
    %v2779 = vpack.c.b16 %v2767, %v2761
    %v2780 = vpack.c.b16 %v2768, %v2762
    %v2781 = vpack.c.b16 %v2769, %v2763
    %v2782 = vpack.c.b16 %v2770, %v2764
    %v2783 = vpack.c.b16 %v2771, %v2765
    %v2784 = vpack.c.b16 %v2772, %v2766
    %vm2797 = vcmask 261120
    %v2799 = vsel %vm2797, %v2724, 0
    %2801 = vmatpush.bf16.msra.mxu0 0
    %2802 = vmatpush.bf16.msra.mxu0 0
    %2803 = vmatpush.bf16.msra.mxu0 0
    %2804 = vmatpush.bf16.msra.mxu0 0
    %2805 = vmatpush.bf16.msra.mxu0 0
    %2806 = vmatpush.bf16.msra.mxu0 0
    %2807 = vmatpush.bf16.msra.mxu0 %v2779
    %2808 = vmatpush.bf16.msra.mxu0 %v2773
    %2809 = vmatmul.bf16.gmra.mxu0 %v2799
    %v2810 = vpop.f32.mrf.mxu0
    %v2811 = vadd.f32 0.0, %v2810
    %v2812 = vpop.f32.mrf.mxu0
    %2813 = vdwg.mxu0
    %2814 = vmatpush.bf16.msra.mxu0 0
    %2815 = vmatpush.bf16.msra.mxu0 0
    %2816 = vmatpush.bf16.msra.mxu0 0
    %2817 = vmatpush.bf16.msra.mxu0 0
    %2818 = vmatpush.bf16.msra.mxu0 0
    %2819 = vmatpush.bf16.msra.mxu0 0
    %2820 = vmatpush.bf16.msra.mxu0 %v2780
    %2821 = vmatpush.bf16.msra.mxu0 %v2774
    %2822 = vmatmul.bf16.gmra.mxu0 %v2799
    %v2823 = vpop.f32.mrf.mxu0
    %v2824 = vadd.f32 0.0, %v2823
    %v2825 = vpop.f32.mrf.mxu0
    %2826 = vdwg.mxu0
    %2827 = vmatpush.bf16.msra.mxu0 0
    %2828 = vmatpush.bf16.msra.mxu0 0
    %2829 = vmatpush.bf16.msra.mxu0 0
    %2830 = vmatpush.bf16.msra.mxu0 0
    %2831 = vmatpush.bf16.msra.mxu0 0
    %2832 = vmatpush.bf16.msra.mxu0 0
    %2833 = vmatpush.bf16.msra.mxu0 %v2781
    %2834 = vmatpush.bf16.msra.mxu0 %v2775
    %2835 = vmatmul.bf16.gmra.mxu0 %v2799
    %v2836 = vpop.f32.mrf.mxu0
    %v2837 = vadd.f32 0.0, %v2836
    %v2838 = vpop.f32.mrf.mxu0
    %2839 = vdwg.mxu0
    %2840 = vmatpush.bf16.msra.mxu0 0
    %2841 = vmatpush.bf16.msra.mxu0 0
    %2842 = vmatpush.bf16.msra.mxu0 0
    %2843 = vmatpush.bf16.msra.mxu0 0
    %2844 = vmatpush.bf16.msra.mxu0 0
    %2845 = vmatpush.bf16.msra.mxu0 0
    %2846 = vmatpush.bf16.msra.mxu0 %v2782
    %2847 = vmatpush.bf16.msra.mxu0 %v2776
    %2848 = vmatmul.bf16.gmra.mxu0 %v2799
    %v2849 = vpop.f32.mrf.mxu0
    %v2850 = vadd.f32 0.0, %v2849
    %v2851 = vpop.f32.mrf.mxu0
    %2852 = vdwg.mxu0
    %2853 = vmatpush.bf16.msra.mxu0 0
    %2854 = vmatpush.bf16.msra.mxu0 0
    %2855 = vmatpush.bf16.msra.mxu0 0
    %2856 = vmatpush.bf16.msra.mxu0 0
    %2857 = vmatpush.bf16.msra.mxu0 0
    %2858 = vmatpush.bf16.msra.mxu0 0
    %2859 = vmatpush.bf16.msra.mxu0 %v2783
    %2860 = vmatpush.bf16.msra.mxu0 %v2777
    %2861 = vmatmul.bf16.gmra.mxu0 %v2799
    %v2862 = vpop.f32.mrf.mxu0
    %v2863 = vadd.f32 0.0, %v2862
    %v2864 = vpop.f32.mrf.mxu0
    %2865 = vdwg.mxu0
    %2866 = vmatpush.bf16.msra.mxu0 0
    %2867 = vmatpush.bf16.msra.mxu0 0
    %2868 = vmatpush.bf16.msra.mxu0 0
    %2869 = vmatpush.bf16.msra.mxu0 0
    %2870 = vmatpush.bf16.msra.mxu0 0
    %2871 = vmatpush.bf16.msra.mxu0 0
    %2872 = vmatpush.bf16.msra.mxu0 %v2784
    %2873 = vmatpush.bf16.msra.mxu0 %v2778
    %2874 = vmatmul.bf16.gmra.mxu0 %v2799
    %v2875 = vpop.f32.mrf.mxu0
    %v2876 = vadd.f32 0.0, %v2875
    %v2877 = vpop.f32.mrf.mxu0
    %2878 = vdwg.mxu0
    %v3167 = vunpack.c.l.b16 %v2435
    %v3168 = vunpack.c.h.b16 %v2435
    %v3169 = vunpack.c.l.b16 %v2436
    %v3170 = vunpack.c.h.b16 %v2436
    %v3171 = vunpack.c.l.b16 %v2437
    %v3172 = vunpack.c.h.b16 %v2437
    %v3173 = vunpack.c.l.b16 %v2438
    %v3174 = vunpack.c.h.b16 %v2438
    %v3175 = vunpack.c.l.b16 %v2439
    %v3176 = vunpack.c.h.b16 %v2439
    %v3177 = vunpack.c.l.b16 %v2440
    %v3178 = vunpack.c.h.b16 %v2440
    %v3179 = vunpack.c.l.b16 %v2441
    %v3180 = vunpack.c.h.b16 %v2441
    %v3181 = vunpack.c.l.b16 %v2442
    %v3182 = vunpack.c.h.b16 %v2442
    %v3183 = vunpack.c.l.b16 %v2443
    %v3184 = vunpack.c.h.b16 %v2443
    %v3185 = vunpack.c.l.b16 %v2444
    %v3186 = vunpack.c.h.b16 %v2444
    %v3187 = vunpack.c.l.b16 %v2445
    %v3188 = vunpack.c.h.b16 %v2445
    %v3189 = vunpack.c.l.b16 %v2446
    %v3190 = vunpack.c.h.b16 %v2446
    %v3191 = vunpack.c.l.b16 %v2447
    %v3192 = vunpack.c.h.b16 %v2447
    %v3193 = vunpack.c.l.b16 %v2448
    %v3194 = vunpack.c.h.b16 %v2448
    %v3195 = vunpack.c.l.b16 %v2449
    %v3196 = vunpack.c.h.b16 %v2449
    %v3197 = vunpack.c.l.b16 %v2450
    %v3198 = vunpack.c.h.b16 %v2450
    %v3199 = vunpack.c.l.b16 %v2451
    %v3200 = vunpack.c.h.b16 %v2451
    %v3201 = vunpack.c.l.b16 %v2452
    %v3202 = vunpack.c.h.b16 %v2452
    %v3203 = vunpack.c.l.b16 %v2453
    %v3204 = vunpack.c.h.b16 %v2453
    %v3205 = vunpack.c.l.b16 %v2454
    %v3206 = vunpack.c.h.b16 %v2454
    %v3207 = vunpack.c.l.b16 %v2455
    %v3208 = vunpack.c.h.b16 %v2455
    %v3209 = vunpack.c.l.b16 %v2456
    %v3210 = vunpack.c.h.b16 %v2456
    %v3211 = vunpack.c.l.b16 %v2457
    %v3212 = vunpack.c.h.b16 %v2457
    %v3213 = vunpack.c.l.b16 %v2458
    %v3214 = vunpack.c.h.b16 %v2458
    %v3215 = vunpack.c.l.b16 %v2459
    %v3216 = vunpack.c.h.b16 %v2459
    %v3217 = vunpack.c.l.b16 %v2460
    %v3218 = vunpack.c.h.b16 %v2460
    %v3219 = vunpack.c.l.b16 %v2461
    %v3220 = vunpack.c.h.b16 %v2461
    %v3221 = vunpack.c.l.b16 %v2462
    %v3222 = vunpack.c.h.b16 %v2462
    %v3223 = vunpack.c.l.b16 %v2463
    %v3224 = vunpack.c.h.b16 %v2463
    %v3225 = vunpack.c.l.b16 %v2464
    %v3226 = vunpack.c.h.b16 %v2464
    %v3227 = vunpack.c.l.b16 %v2465
    %v3228 = vunpack.c.h.b16 %v2465
    %v3229 = vunpack.c.l.b16 %v2466
    %v3230 = vunpack.c.h.b16 %v2466
    %v3231 = vunpack.c.l.b16 %v2467
    %v3232 = vunpack.c.h.b16 %v2467
    %v3233 = vunpack.c.l.b16 %v2468
    %v3234 = vunpack.c.h.b16 %v2468
    %v3235 = vunpack.c.l.b16 %v2469
    %v3236 = vunpack.c.h.b16 %v2469
    %v3237 = vunpack.c.l.b16 %v2470
    %v3238 = vunpack.c.h.b16 %v2470
    %v3239 = vunpack.c.l.b16 %v2471
    %v3240 = vunpack.c.h.b16 %v2471
    %v3241 = vunpack.c.l.b16 %v2472
    %v3242 = vunpack.c.h.b16 %v2472
    %v3243 = vunpack.c.l.b16 %v2473
    %v3244 = vunpack.c.h.b16 %v2473
    %v3245 = vunpack.c.l.b16 %v2474
    %v3246 = vunpack.c.h.b16 %v2474
    %v3247 = vunpack.c.l.b16 %v2475
    %v3248 = vunpack.c.h.b16 %v2475
    %v3249 = vunpack.c.l.b16 %v2476
    %v3250 = vunpack.c.h.b16 %v2476
    %v3251 = vunpack.c.l.b16 %v2477
    %v3252 = vunpack.c.h.b16 %v2477
    %v3253 = vunpack.c.l.b16 %v2478
    %v3254 = vunpack.c.h.b16 %v2478
    %v3255 = vunpack.c.l.b16 %v2479
    %v3256 = vunpack.c.h.b16 %v2479
    %v3257 = vunpack.c.l.b16 %v2480
    %v3258 = vunpack.c.h.b16 %v2480
    %v3259 = vunpack.c.l.b16 %v2481
    %v3260 = vunpack.c.h.b16 %v2481
    %v3261 = vunpack.c.l.b16 %v2482
    %v3262 = vunpack.c.h.b16 %v2482
    %v3263 = vunpack.c.l.b16 %v2483
    %v3264 = vunpack.c.h.b16 %v2483
    %v3265 = vunpack.c.l.b16 %v2484
    %v3266 = vunpack.c.h.b16 %v2484
    %v3267 = vunpack.c.l.b16 %v2485
    %v3268 = vunpack.c.h.b16 %v2485
    %v3269 = vunpack.c.l.b16 %v2486
    %v3270 = vunpack.c.h.b16 %v2486
    %v3271 = vunpack.c.l.b16 %v2487
    %v3272 = vunpack.c.h.b16 %v2487
    %v3273 = vunpack.c.l.b16 %v2488
    %v3274 = vunpack.c.h.b16 %v2488
    %v3275 = vunpack.c.l.b16 %v2489
    %v3276 = vunpack.c.h.b16 %v2489
    %v3277 = vunpack.c.l.b16 %v2490
    %v3278 = vunpack.c.h.b16 %v2490
    %v3279 = vunpack.c.l.b16 %v2491
    %v3280 = vunpack.c.h.b16 %v2491
    %v3281 = vunpack.c.l.b16 %v2492
    %v3282 = vunpack.c.h.b16 %v2492
    %v3283 = vunpack.c.l.b16 %v2493
    %v3284 = vunpack.c.h.b16 %v2493
    %v3285 = vunpack.c.l.b16 %v2494
    %v3286 = vunpack.c.h.b16 %v2494
    %v3287 = vunpack.c.l.b16 %v2495
    %v3288 = vunpack.c.h.b16 %v2495
    %v3289 = vunpack.c.l.b16 %v2496
    %v3290 = vunpack.c.h.b16 %v2496
    %v3291 = vunpack.c.l.b16 %v2497
    %v3292 = vunpack.c.h.b16 %v2497
    %v3293 = vunpack.c.l.b16 %v2498
    %v3294 = vunpack.c.h.b16 %v2498
    %v3295 = vunpack.c.l.b16 %v2499
    %v3296 = vunpack.c.h.b16 %v2499
    %v3297 = vunpack.c.l.b16 %v2500
    %v3298 = vunpack.c.h.b16 %v2500
    %v3299 = vunpack.c.l.b16 %v2501
    %v3300 = vunpack.c.h.b16 %v2501
    %v3301 = vunpack.c.l.b16 %v2502
    %v3302 = vunpack.c.h.b16 %v2502
    %v3303 = vunpack.c.l.b16 %v2503
    %v3304 = vunpack.c.h.b16 %v2503
    %v3305 = vunpack.c.l.b16 %v2504
    %v3306 = vunpack.c.h.b16 %v2504
    %v3307 = vunpack.c.l.b16 %v2505
    %v3308 = vunpack.c.h.b16 %v2505
    %v3309 = vunpack.c.l.b16 %v2506
    %v3310 = vunpack.c.h.b16 %v2506
    %v3311 = vunpack.c.l.b16 %v2507
    %v3312 = vunpack.c.h.b16 %v2507
    %v3313 = vunpack.c.l.b16 %v2508
    %v3314 = vunpack.c.h.b16 %v2508
    %v3315 = vunpack.c.l.b16 %v2509
    %v3316 = vunpack.c.h.b16 %v2509
    %v3317 = vunpack.c.l.b16 %v2510
    %v3318 = vunpack.c.h.b16 %v2510
    %v3319 = vunpack.c.l.b16 %v2511
    %v3320 = vunpack.c.h.b16 %v2511
    %v3321 = vunpack.c.l.b16 %v2512
    %v3322 = vunpack.c.h.b16 %v2512
    %v3323 = vunpack.c.l.b16 %v2513
    %v3324 = vunpack.c.h.b16 %v2513
    %v3325 = vunpack.c.l.b16 %v2514
    %v3326 = vunpack.c.h.b16 %v2514
    %v3327 = vunpack.c.l.b16 %v2515
    %v3328 = vunpack.c.h.b16 %v2515
    %v3329 = vunpack.c.l.b16 %v2516
    %v3330 = vunpack.c.h.b16 %v2516
    %v3331 = vunpack.c.l.b16 %v2517
    %v3332 = vunpack.c.h.b16 %v2517
    %v3333 = vunpack.c.l.b16 %v2518
    %v3334 = vunpack.c.h.b16 %v2518
    %v3335 = vunpack.c.l.b16 %v2519
    %v3336 = vunpack.c.h.b16 %v2519
    %v3337 = vunpack.c.l.b16 %v2520
    %v3338 = vunpack.c.h.b16 %v2520
    %v3339 = vunpack.c.l.b16 %v2521
    %v3340 = vunpack.c.h.b16 %v2521
    %v3341 = vunpack.c.l.b16 %v2522
    %v3342 = vunpack.c.h.b16 %v2522
    %v3343 = vunpack.c.l.b16 %v2523
    %v3344 = vunpack.c.h.b16 %v2523
    %v3345 = vunpack.c.l.b16 %v2524
    %v3346 = vunpack.c.h.b16 %v2524
    %v3347 = vunpack.c.l.b16 %v2525
    %v3348 = vunpack.c.h.b16 %v2525
    %v3349 = vunpack.c.l.b16 %v2526
    %v3350 = vunpack.c.h.b16 %v2526
    %v3351 = vunpack.c.l.b16 %v2527
    %v3352 = vunpack.c.h.b16 %v2527
    %v3353 = vunpack.c.l.b16 %v2528
    %v3354 = vunpack.c.h.b16 %v2528
    %v3355 = vunpack.c.l.b16 %v2529
    %v3356 = vunpack.c.h.b16 %v2529
    %v3357 = vunpack.c.l.b16 %v2530
    %v3358 = vunpack.c.h.b16 %v2530
    %v3359 = vunpack.c.l.b16 %v2531
    %v3360 = vunpack.c.h.b16 %v2531
    %v3361 = vunpack.c.l.b16 %v2532
    %v3362 = vunpack.c.h.b16 %v2532
    %v3363 = vunpack.c.l.b16 %v2533
    %v3364 = vunpack.c.h.b16 %v2533
    %v3365 = vunpack.c.l.b16 %v2534
    %v3366 = vunpack.c.h.b16 %v2534
    %v3367 = vunpack.c.l.b16 %v2535
    %v3368 = vunpack.c.h.b16 %v2535
    %v3369 = vunpack.c.l.b16 %v2536
    %v3370 = vunpack.c.h.b16 %v2536
    %v3371 = vunpack.c.l.b16 %v2537
    %v3372 = vunpack.c.h.b16 %v2537
    %v3373 = vunpack.c.l.b16 %v2538
    %v3374 = vunpack.c.h.b16 %v2538
    %v3375 = vunpack.c.l.b16 %v2539
    %v3376 = vunpack.c.h.b16 %v2539
    %v3377 = vunpack.c.l.b16 %v2540
    %v3378 = vunpack.c.h.b16 %v2540
    %v3379 = vunpack.c.l.b16 %v2541
    %v3380 = vunpack.c.h.b16 %v2541
    %v3381 = vunpack.c.l.b16 %v2542
    %v3382 = vunpack.c.h.b16 %v2542
    %v3383 = vunpack.c.l.b16 %v2543
    %v3384 = vunpack.c.h.b16 %v2543
    %v3385 = vunpack.c.l.b16 %v2544
    %v3386 = vunpack.c.h.b16 %v2544
    %v3387 = vunpack.c.l.b16 %v2545
    %v3388 = vunpack.c.h.b16 %v2545
    %v3389 = vunpack.c.l.b16 %v2546
    %v3390 = vunpack.c.h.b16 %v2546
    %v3391 = vunpack.c.l.b16 %v2547
    %v3392 = vunpack.c.h.b16 %v2547
    %v3393 = vunpack.c.l.b16 %v2548
    %v3394 = vunpack.c.h.b16 %v2548
    %v3395 = vunpack.c.l.b16 %v2549
    %v3396 = vunpack.c.h.b16 %v2549
    %v3397 = vunpack.c.l.b16 %v2550
    %v3398 = vunpack.c.h.b16 %v2550
    %v3399 = vunpack.c.l.b16 %v2551
    %v3400 = vunpack.c.h.b16 %v2551
    %v3401 = vunpack.c.l.b16 %v2552
    %v3402 = vunpack.c.h.b16 %v2552
    %v3403 = vunpack.c.l.b16 %v2553
    %v3404 = vunpack.c.h.b16 %v2553
    %v3405 = vunpack.c.l.b16 %v2554
    %v3406 = vunpack.c.h.b16 %v2554
    %v3407 = vunpack.c.l.b16 %v2555
    %v3408 = vunpack.c.h.b16 %v2555
    %v3409 = vunpack.c.l.b16 %v2556
    %v3410 = vunpack.c.h.b16 %v2556
    %v3411 = vunpack.c.l.b16 %v2557
    %v3412 = vunpack.c.h.b16 %v2557
    %v3413 = vunpack.c.l.b16 %v2558
    %v3414 = vunpack.c.h.b16 %v2558
    %v3415 = vunpack.c.l.b16 %v2559
    %v3416 = vunpack.c.h.b16 %v2559
    %v3417 = vunpack.c.l.b16 %v2560
    %v3418 = vunpack.c.h.b16 %v2560
    %v3419 = vunpack.c.l.b16 %v2561
    %v3420 = vunpack.c.h.b16 %v2561
    %v3421 = vunpack.c.l.b16 %v2562
    %v3422 = vunpack.c.h.b16 %v2562
    %v3423 = vunpack.c.l.b16 %v2563
    %v3424 = vunpack.c.h.b16 %v2563
    %v3425 = vunpack.c.l.b16 %v2564
    %v3426 = vunpack.c.h.b16 %v2564
    %v3427 = vunpack.c.l.b16 %v2565
    %v3428 = vunpack.c.h.b16 %v2565
    %v3429 = vunpack.c.l.b16 %v2566
    %v3430 = vunpack.c.h.b16 %v2566
    %v3431 = vunpack.c.l.b16 %v2567
    %v3432 = vunpack.c.h.b16 %v2567
    %v3433 = vunpack.c.l.b16 %v2568
    %v3434 = vunpack.c.h.b16 %v2568
    %v3435 = vunpack.c.l.b16 %v2569
    %v3436 = vunpack.c.h.b16 %v2569
    %v3437 = vunpack.c.l.b16 %v2570
    %v3438 = vunpack.c.h.b16 %v2570
    %v3439 = vunpack.c.l.b16 %v2571
    %v3440 = vunpack.c.h.b16 %v2571
    %v3441 = vunpack.c.l.b16 %v2572
    %v3442 = vunpack.c.h.b16 %v2572
    %v3443 = vunpack.c.l.b16 %v2573
    %v3444 = vunpack.c.h.b16 %v2573
    %v3445 = vunpack.c.l.b16 %v2574
    %v3446 = vunpack.c.h.b16 %v2574
    %v3447 = vunpack.c.l.b16 %v2575
    %v3448 = vunpack.c.h.b16 %v2575
    %v3449 = vunpack.c.l.b16 %v2576
    %v3450 = vunpack.c.h.b16 %v2576
    %v3451 = vunpack.c.l.b16 %v2577
    %v3452 = vunpack.c.h.b16 %v2577
    %v3453 = vunpack.c.l.b16 %v2578
    %v3454 = vunpack.c.h.b16 %v2578
    %v3455 = vunpack.c.l.b16 %v2579
    %v3456 = vunpack.c.h.b16 %v2579
    %v3457 = vunpack.c.l.b16 %v2580
    %v3458 = vunpack.c.h.b16 %v2580
    %v3459 = vunpack.c.l.b16 %v2581
    %v3460 = vunpack.c.h.b16 %v2581
    %v3461 = vunpack.c.l.b16 %v2582
    %v3462 = vunpack.c.h.b16 %v2582
    %v3463 = vunpack.c.l.b16 %v2583
    %v3464 = vunpack.c.h.b16 %v2583
    %v3465 = vunpack.c.l.b16 %v2584
    %v3466 = vunpack.c.h.b16 %v2584
    %v3467 = vunpack.c.l.b16 %v2585
    %v3468 = vunpack.c.h.b16 %v2585
    %v3469 = vunpack.c.l.b16 %v2586
    %v3470 = vunpack.c.h.b16 %v2586
    %v3471 = vunpack.c.l.b16 %v2587
    %v3472 = vunpack.c.h.b16 %v2587
    %v3473 = vunpack.c.l.b16 %v2588
    %v3474 = vunpack.c.h.b16 %v2588
    %v3475 = vunpack.c.l.b16 %v2589
    %v3476 = vunpack.c.h.b16 %v2589
    %v3477 = vunpack.c.l.b16 %v2590
    %v3478 = vunpack.c.h.b16 %v2590
    %v3479 = vunpack.c.l.b16 %v2591
    %v3480 = vunpack.c.h.b16 %v2591
    %v3481 = vunpack.c.l.b16 %v2592
    %v3482 = vunpack.c.h.b16 %v2592
    %v3483 = vunpack.c.l.b16 %v2593
    %v3484 = vunpack.c.h.b16 %v2593
    %v3485 = vunpack.c.l.b16 %v2594
    %v3486 = vunpack.c.h.b16 %v2594
    %v3487 = vunpack.c.l.b16 %v2595
    %v3488 = vunpack.c.h.b16 %v2595
    %v3489 = vunpack.c.l.b16 %v2596
    %v3490 = vunpack.c.h.b16 %v2596
    %v3491 = vunpack.c.l.b16 %v2597
    %v3492 = vunpack.c.h.b16 %v2597
    %v3493 = vunpack.c.l.b16 %v2598
    %v3494 = vunpack.c.h.b16 %v2598
    %v3495 = vunpack.c.l.b16 %v2599
    %v3496 = vunpack.c.h.b16 %v2599
    %v3497 = vunpack.c.l.b16 %v2600
    %v3498 = vunpack.c.h.b16 %v2600
    %v3499 = vunpack.c.l.b16 %v2601
    %v3500 = vunpack.c.h.b16 %v2601
    %v3501 = vunpack.c.l.b16 %v2602
    %v3502 = vunpack.c.h.b16 %v2602
    %v3503 = vunpack.c.l.b16 %v2603
    %v3504 = vunpack.c.h.b16 %v2603
    %v3505 = vunpack.c.l.b16 %v2604
    %v3506 = vunpack.c.h.b16 %v2604
    %v3507 = vunpack.c.l.b16 %v2605
    %v3508 = vunpack.c.h.b16 %v2605
    %v3509 = vunpack.c.l.b16 %v2606
    %v3510 = vunpack.c.h.b16 %v2606
    %v3511 = vunpack.c.l.b16 %v2607
    %v3512 = vunpack.c.h.b16 %v2607
    %v3513 = vunpack.c.l.b16 %v2608
    %v3514 = vunpack.c.h.b16 %v2608
    %v3515 = vunpack.c.l.b16 %v2609
    %v3516 = vunpack.c.h.b16 %v2609
    %v3517 = vunpack.c.l.b16 %v2610
    %v3518 = vunpack.c.h.b16 %v2610
    %v3519 = vunpack.c.l.b16 %v2611
    %v3520 = vunpack.c.h.b16 %v2611
    %v3521 = vunpack.c.l.b16 %v2612
    %v3522 = vunpack.c.h.b16 %v2612
    %v3523 = vunpack.c.l.b16 %v2613
    %v3524 = vunpack.c.h.b16 %v2613
    %v3525 = vunpack.c.l.b16 %v2614
    %v3526 = vunpack.c.h.b16 %v2614
    %v3527 = vunpack.c.l.b16 %v2615
    %v3528 = vunpack.c.h.b16 %v2615
    %v3529 = vunpack.c.l.b16 %v2616
    %v3530 = vunpack.c.h.b16 %v2616
    %v3531 = vunpack.c.l.b16 %v2617
    %v3532 = vunpack.c.h.b16 %v2617
    %v3533 = vunpack.c.l.b16 %v2618
    %v3534 = vunpack.c.h.b16 %v2618
    %v3535 = vunpack.c.l.b16 %v2619
    %v3536 = vunpack.c.h.b16 %v2619
    %v3537 = vunpack.c.l.b16 %v2620
    %v3538 = vunpack.c.h.b16 %v2620
    %v3539 = vunpack.c.l.b16 %v2621
    %v3540 = vunpack.c.h.b16 %v2621
    %v3541 = vunpack.c.l.b16 %v2622
    %v3542 = vunpack.c.h.b16 %v2622
    %v3543 = vunpack.c.l.b16 %v2623
    %v3544 = vunpack.c.h.b16 %v2623
    %v3545 = vunpack.c.l.b16 %v2624
    %v3546 = vunpack.c.h.b16 %v2624
    %v3547 = vunpack.c.l.b16 %v2625
    %v3548 = vunpack.c.h.b16 %v2625
    %v3549 = vunpack.c.l.b16 %v2626
    %v3550 = vunpack.c.h.b16 %v2626
    %v3551 = vunpack.c.l.b16 %v2627
    %v3552 = vunpack.c.h.b16 %v2627
    %v3553 = vunpack.c.l.b16 %v2628
    %v3554 = vunpack.c.h.b16 %v2628
    %v3555 = vunpack.c.l.b16 %v2629
    %v3556 = vunpack.c.h.b16 %v2629
    %v3557 = vunpack.c.l.b16 %v2630
    %v3558 = vunpack.c.h.b16 %v2630
    %v3559 = vunpack.c.l.b16 %v2631
    %v3560 = vunpack.c.h.b16 %v2631
    %v3561 = vunpack.c.l.b16 %v2632
    %v3562 = vunpack.c.h.b16 %v2632
    %v3563 = vunpack.c.l.b16 %v2633
    %v3564 = vunpack.c.h.b16 %v2633
    %v3565 = vunpack.c.l.b16 %v2634
    %v3566 = vunpack.c.h.b16 %v2634
    %v3567 = vunpack.c.l.b16 %v2635
    %v3568 = vunpack.c.h.b16 %v2635
    %v3569 = vunpack.c.l.b16 %v2636
    %v3570 = vunpack.c.h.b16 %v2636
    %v3571 = vunpack.c.l.b16 %v2637
    %v3572 = vunpack.c.h.b16 %v2637
    %v3573 = vunpack.c.l.b16 %v2638
    %v3574 = vunpack.c.h.b16 %v2638
    %v3575 = vunpack.c.l.b16 %v2639
    %v3576 = vunpack.c.h.b16 %v2639
    %v3577 = vunpack.c.l.b16 %v2640
    %v3578 = vunpack.c.h.b16 %v2640
    %v3579 = vunpack.c.l.b16 %v2641
    %v3580 = vunpack.c.h.b16 %v2641
    %v3581 = vunpack.c.l.b16 %v2642
    %v3582 = vunpack.c.h.b16 %v2642
    %v3583 = vunpack.c.l.b16 %v2643
    %v3584 = vunpack.c.h.b16 %v2643
    %v3585 = vunpack.c.l.b16 %v2644
    %v3586 = vunpack.c.h.b16 %v2644
    %v3587 = vunpack.c.l.b16 %v2645
    %v3588 = vunpack.c.h.b16 %v2645
    %v3589 = vunpack.c.l.b16 %v2646
    %v3590 = vunpack.c.h.b16 %v2646
    %v3591 = vunpack.c.l.b16 %v2647
    %v3592 = vunpack.c.h.b16 %v2647
    %v3593 = vunpack.c.l.b16 %v2648
    %v3594 = vunpack.c.h.b16 %v2648
    %v3595 = vunpack.c.l.b16 %v2649
    %v3596 = vunpack.c.h.b16 %v2649
    %v3597 = vunpack.c.l.b16 %v2650
    %v3598 = vunpack.c.h.b16 %v2650
    %v3599 = vunpack.c.l.b16 %v2651
    %v3600 = vunpack.c.h.b16 %v2651
    %v3601 = vunpack.c.l.b16 %v2652
    %v3602 = vunpack.c.h.b16 %v2652
    %v3603 = vunpack.c.l.b16 %v2653
    %v3604 = vunpack.c.h.b16 %v2653
    %v3605 = vunpack.c.l.b16 %v2654
    %v3606 = vunpack.c.h.b16 %v2654
    %v3607 = vunpack.c.l.b16 %v2655
    %v3608 = vunpack.c.h.b16 %v2655
    %v3609 = vunpack.c.l.b16 %v2656
    %v3610 = vunpack.c.h.b16 %v2656
    %v3611 = vunpack.c.l.b16 %v2657
    %v3612 = vunpack.c.h.b16 %v2657
    %v3613 = vunpack.c.l.b16 %v2658
    %v3614 = vunpack.c.h.b16 %v2658
    %v3615 = vunpack.c.l.b16 %v2659
    %v3616 = vunpack.c.h.b16 %v2659
    %v3617 = vunpack.c.l.b16 %v2660
    %v3618 = vunpack.c.h.b16 %v2660
    %v3619 = vunpack.c.l.b16 %v2661
    %v3620 = vunpack.c.h.b16 %v2661
    %v3621 = vunpack.c.l.b16 %v2662
    %v3622 = vunpack.c.h.b16 %v2662
    %v3623 = vunpack.c.l.b16 %v2663
    %v3624 = vunpack.c.h.b16 %v2663
    %v3625 = vunpack.c.l.b16 %v2664
    %v3626 = vunpack.c.h.b16 %v2664
    %v3627 = vunpack.c.l.b16 %v2665
    %v3628 = vunpack.c.h.b16 %v2665
    %v3629 = vunpack.c.l.b16 %v2666
    %v3630 = vunpack.c.h.b16 %v2666
    %v3631 = vunpack.c.l.b16 %v2667
    %v3632 = vunpack.c.h.b16 %v2667
    %v3633 = vunpack.c.l.b16 %v2668
    %v3634 = vunpack.c.h.b16 %v2668
    %v3635 = vunpack.c.l.b16 %v2669
    %v3636 = vunpack.c.h.b16 %v2669
    %v3637 = vunpack.c.l.b16 %v2670
    %v3638 = vunpack.c.h.b16 %v2670
    %v3639 = vunpack.c.l.b16 %v2671
    %v3640 = vunpack.c.h.b16 %v2671
    %v3641 = vunpack.c.l.b16 %v2672
    %v3642 = vunpack.c.h.b16 %v2672
    %v3643 = vunpack.c.l.b16 %v2673
    %v3644 = vunpack.c.h.b16 %v2673
    %v3645 = vunpack.c.l.b16 %v2674
    %v3646 = vunpack.c.h.b16 %v2674
    %v3647 = vunpack.c.l.b16 %v2675
    %v3648 = vunpack.c.h.b16 %v2675
    %v3649 = vunpack.c.l.b16 %v2676
    %v3650 = vunpack.c.h.b16 %v2676
    %v3651 = vunpack.c.l.b16 %v2677
    %v3652 = vunpack.c.h.b16 %v2677
    %v3653 = vunpack.c.l.b16 %v2678
    %v3654 = vunpack.c.h.b16 %v2678
    %v3655 = vunpack.c.l.b16 %v2679
    %v3656 = vunpack.c.h.b16 %v2679
    %v3657 = vunpack.c.l.b16 %v2680
    %v3658 = vunpack.c.h.b16 %v2680
    %v3659 = vunpack.c.l.b16 %v2681
    %v3660 = vunpack.c.h.b16 %v2681
    %v3661 = vunpack.c.l.b16 %v2682
    %v3662 = vunpack.c.h.b16 %v2682
    %v3663 = vunpack.c.l.b16 %v2683
    %v3664 = vunpack.c.h.b16 %v2683
    %v3665 = vunpack.c.l.b16 %v2684
    %v3666 = vunpack.c.h.b16 %v2684
    %v3667 = vunpack.c.l.b16 %v2685
    %v3668 = vunpack.c.h.b16 %v2685
    %v3669 = vunpack.c.l.b16 %v2686
    %v3670 = vunpack.c.h.b16 %v2686
    %v3671 = vunpack.c.l.b16 %v2687
    %v3672 = vunpack.c.h.b16 %v2687
    %v3673 = vunpack.c.l.b16 %v2688
    %v3674 = vunpack.c.h.b16 %v2688
    %v3675 = vunpack.c.l.b16 %v2689
    %v3676 = vunpack.c.h.b16 %v2689
    %v3677 = vunpack.c.l.b16 %v2690
    %v3678 = vunpack.c.h.b16 %v2690
    %v3679 = vunpack.c.l.b16 %v2691
    %v3680 = vunpack.c.h.b16 %v2691
    %v3681 = vunpack.c.l.b16 %v2692
    %v3682 = vunpack.c.h.b16 %v2692
    %v3683 = vunpack.c.l.b16 %v2693
    %v3684 = vunpack.c.h.b16 %v2693
    %v3685 = vunpack.c.l.b16 %v2694
    %v3686 = vunpack.c.h.b16 %v2694
    %v3687 = vunpack.c.l.b16 %v2695
    %v3688 = vunpack.c.h.b16 %v2695
    %v3689 = vunpack.c.l.b16 %v2696
    %v3690 = vunpack.c.h.b16 %v2696
    %v3691 = vunpack.c.l.b16 %v2697
    %v3692 = vunpack.c.h.b16 %v2697
    %v3693 = vunpack.c.l.b16 %v2698
    %v3694 = vunpack.c.h.b16 %v2698
    %v3695 = vunpack.c.l.b16 %v2699
    %v3696 = vunpack.c.h.b16 %v2699
    %v3697 = vunpack.c.l.b16 %v2700
    %v3698 = vunpack.c.h.b16 %v2700
    %v3699 = vunpack.c.l.b16 %v2701
    %v3700 = vunpack.c.h.b16 %v2701
    %v3701 = vunpack.c.l.b16 %v2702
    %v3702 = vunpack.c.h.b16 %v2702
    %v3703 = vunpack.c.l.b16 %v2703
    %v3704 = vunpack.c.h.b16 %v2703
    %v3705 = vunpack.c.l.b16 %v2704
    %v3706 = vunpack.c.h.b16 %v2704
    %v3707 = vunpack.c.l.b16 %v2705
    %v3708 = vunpack.c.h.b16 %v2705
    %v3709 = vunpack.c.l.b16 %v2706
    %v3710 = vunpack.c.h.b16 %v2706
    %v3711 = vunpack.c.l.b16 %v2707
    %v3712 = vunpack.c.h.b16 %v2707
    %v3713 = vunpack.c.l.b16 %v2708
    %v3714 = vunpack.c.h.b16 %v2708
    %v3715 = vunpack.c.l.b16 %v2709
    %v3716 = vunpack.c.h.b16 %v2709
    %v3717 = vunpack.c.l.b16 %v2710
    %v3718 = vunpack.c.h.b16 %v2710
    %v3719 = vunpack.c.l.b16 %v2711
    %v3720 = vunpack.c.h.b16 %v2711
    %v3721 = vunpack.c.l.b16 %v2712
    %v3722 = vunpack.c.h.b16 %v2712
    %v3723 = vunpack.c.l.b16 %v2713
    %v3724 = vunpack.c.h.b16 %v2713
    %v3725 = vunpack.c.l.b16 %v2714
    %v3726 = vunpack.c.h.b16 %v2714
    %v3727 = vunpack.c.l.b16 %v2715
    %v3728 = vunpack.c.h.b16 %v2715
    %v3729 = vunpack.c.l.b16 %v2716
    %v3730 = vunpack.c.h.b16 %v2716
    %v3731 = vunpack.c.l.b16 %v2717
    %v3732 = vunpack.c.h.b16 %v2717
    %v3733 = vunpack.c.l.b16 %v2718
    %v3734 = vunpack.c.h.b16 %v2718
    %v3735 = vunpack.c.l.b16 %v2719
    %v3736 = vunpack.c.h.b16 %v2719
    %v3737 = vunpack.c.l.b16 %v2720
    %v3738 = vunpack.c.h.b16 %v2720
    %v3739 = vunpack.c.l.b16 %v2721
    %v3740 = vunpack.c.h.b16 %v2721
    %v3741 = vunpack.c.l.b16 %v2722
    %v3742 = vunpack.c.h.b16 %v2722
    %v3743 = vpack.c.b16 %v3173, %v3167
    %v3744 = vpack.c.b16 %v3174, %v3168
    %v3745 = vpack.c.b16 %v3175, %v3169
    %v3746 = vpack.c.b16 %v3176, %v3170
    %v3747 = vpack.c.b16 %v3177, %v3171
    %v3748 = vpack.c.b16 %v3178, %v3172
    %v3749 = vpack.c.b16 %v3185, %v3179
    %v3750 = vpack.c.b16 %v3186, %v3180
    %v3751 = vpack.c.b16 %v3187, %v3181
    %v3752 = vpack.c.b16 %v3188, %v3182
    %v3753 = vpack.c.b16 %v3189, %v3183
    %v3754 = vpack.c.b16 %v3190, %v3184
    %v3755 = vpack.c.b16 %v3197, %v3191
    %v3756 = vpack.c.b16 %v3198, %v3192
    %v3757 = vpack.c.b16 %v3199, %v3193
    %v3758 = vpack.c.b16 %v3200, %v3194
    %v3759 = vpack.c.b16 %v3201, %v3195
    %v3760 = vpack.c.b16 %v3202, %v3196
    %v3761 = vpack.c.b16 %v3209, %v3203
    %v3762 = vpack.c.b16 %v3210, %v3204
    %v3763 = vpack.c.b16 %v3211, %v3205
    %v3764 = vpack.c.b16 %v3212, %v3206
    %v3765 = vpack.c.b16 %v3213, %v3207
    %v3766 = vpack.c.b16 %v3214, %v3208
    %v3767 = vpack.c.b16 %v3221, %v3215
    %v3768 = vpack.c.b16 %v3222, %v3216
    %v3769 = vpack.c.b16 %v3223, %v3217
    %v3770 = vpack.c.b16 %v3224, %v3218
    %v3771 = vpack.c.b16 %v3225, %v3219
    %v3772 = vpack.c.b16 %v3226, %v3220
    %v3773 = vpack.c.b16 %v3233, %v3227
    %v3774 = vpack.c.b16 %v3234, %v3228
    %v3775 = vpack.c.b16 %v3235, %v3229
    %v3776 = vpack.c.b16 %v3236, %v3230
    %v3777 = vpack.c.b16 %v3237, %v3231
    %v3778 = vpack.c.b16 %v3238, %v3232
    %v3779 = vpack.c.b16 %v3245, %v3239
    %v3780 = vpack.c.b16 %v3246, %v3240
    %v3781 = vpack.c.b16 %v3247, %v3241
    %v3782 = vpack.c.b16 %v3248, %v3242
    %v3783 = vpack.c.b16 %v3249, %v3243
    %v3784 = vpack.c.b16 %v3250, %v3244
    %v3785 = vpack.c.b16 %v3257, %v3251
    %v3786 = vpack.c.b16 %v3258, %v3252
    %v3787 = vpack.c.b16 %v3259, %v3253
    %v3788 = vpack.c.b16 %v3260, %v3254
    %v3789 = vpack.c.b16 %v3261, %v3255
    %v3790 = vpack.c.b16 %v3262, %v3256
    %v3791 = vpack.c.b16 %v3269, %v3263
    %v3792 = vpack.c.b16 %v3270, %v3264
    %v3793 = vpack.c.b16 %v3271, %v3265
    %v3794 = vpack.c.b16 %v3272, %v3266
    %v3795 = vpack.c.b16 %v3273, %v3267
    %v3796 = vpack.c.b16 %v3274, %v3268
    %v3797 = vpack.c.b16 %v3281, %v3275
    %v3798 = vpack.c.b16 %v3282, %v3276
    %v3799 = vpack.c.b16 %v3283, %v3277
    %v3800 = vpack.c.b16 %v3284, %v3278
    %v3801 = vpack.c.b16 %v3285, %v3279
    %v3802 = vpack.c.b16 %v3286, %v3280
    %v3803 = vpack.c.b16 %v3293, %v3287
    %v3804 = vpack.c.b16 %v3294, %v3288
    %v3805 = vpack.c.b16 %v3295, %v3289
    %v3806 = vpack.c.b16 %v3296, %v3290
    %v3807 = vpack.c.b16 %v3297, %v3291
    %v3808 = vpack.c.b16 %v3298, %v3292
    %v3809 = vpack.c.b16 %v3305, %v3299
    %v3810 = vpack.c.b16 %v3306, %v3300
    %v3811 = vpack.c.b16 %v3307, %v3301
    %v3812 = vpack.c.b16 %v3308, %v3302
    %v3813 = vpack.c.b16 %v3309, %v3303
    %v3814 = vpack.c.b16 %v3310, %v3304
    %v3815 = vpack.c.b16 %v3317, %v3311
    %v3816 = vpack.c.b16 %v3318, %v3312
    %v3817 = vpack.c.b16 %v3319, %v3313
    %v3818 = vpack.c.b16 %v3320, %v3314
    %v3819 = vpack.c.b16 %v3321, %v3315
    %v3820 = vpack.c.b16 %v3322, %v3316
    %v3821 = vpack.c.b16 %v3329, %v3323
    %v3822 = vpack.c.b16 %v3330, %v3324
    %v3823 = vpack.c.b16 %v3331, %v3325
    %v3824 = vpack.c.b16 %v3332, %v3326
    %v3825 = vpack.c.b16 %v3333, %v3327
    %v3826 = vpack.c.b16 %v3334, %v3328
    %v3827 = vpack.c.b16 %v3341, %v3335
    %v3828 = vpack.c.b16 %v3342, %v3336
    %v3829 = vpack.c.b16 %v3343, %v3337
    %v3830 = vpack.c.b16 %v3344, %v3338
    %v3831 = vpack.c.b16 %v3345, %v3339
    %v3832 = vpack.c.b16 %v3346, %v3340
    %v3833 = vpack.c.b16 %v3353, %v3347
    %v3834 = vpack.c.b16 %v3354, %v3348
    %v3835 = vpack.c.b16 %v3355, %v3349
    %v3836 = vpack.c.b16 %v3356, %v3350
    %v3837 = vpack.c.b16 %v3357, %v3351
    %v3838 = vpack.c.b16 %v3358, %v3352
    %v3839 = vpack.c.b16 %v3365, %v3359
    %v3840 = vpack.c.b16 %v3366, %v3360
    %v3841 = vpack.c.b16 %v3367, %v3361
    %v3842 = vpack.c.b16 %v3368, %v3362
    %v3843 = vpack.c.b16 %v3369, %v3363
    %v3844 = vpack.c.b16 %v3370, %v3364
    %v3845 = vpack.c.b16 %v3377, %v3371
    %v3846 = vpack.c.b16 %v3378, %v3372
    %v3847 = vpack.c.b16 %v3379, %v3373
    %v3848 = vpack.c.b16 %v3380, %v3374
    %v3849 = vpack.c.b16 %v3381, %v3375
    %v3850 = vpack.c.b16 %v3382, %v3376
    %v3851 = vpack.c.b16 %v3389, %v3383
    %v3852 = vpack.c.b16 %v3390, %v3384
    %v3853 = vpack.c.b16 %v3391, %v3385
    %v3854 = vpack.c.b16 %v3392, %v3386
    %v3855 = vpack.c.b16 %v3393, %v3387
    %v3856 = vpack.c.b16 %v3394, %v3388
    %v3857 = vpack.c.b16 %v3401, %v3395
    %v3858 = vpack.c.b16 %v3402, %v3396
    %v3859 = vpack.c.b16 %v3403, %v3397
    %v3860 = vpack.c.b16 %v3404, %v3398
    %v3861 = vpack.c.b16 %v3405, %v3399
    %v3862 = vpack.c.b16 %v3406, %v3400
    %v3863 = vpack.c.b16 %v3413, %v3407
    %v3864 = vpack.c.b16 %v3414, %v3408
    %v3865 = vpack.c.b16 %v3415, %v3409
    %v3866 = vpack.c.b16 %v3416, %v3410
    %v3867 = vpack.c.b16 %v3417, %v3411
    %v3868 = vpack.c.b16 %v3418, %v3412
    %v3869 = vpack.c.b16 %v3425, %v3419
    %v3870 = vpack.c.b16 %v3426, %v3420
    %v3871 = vpack.c.b16 %v3427, %v3421
    %v3872 = vpack.c.b16 %v3428, %v3422
    %v3873 = vpack.c.b16 %v3429, %v3423
    %v3874 = vpack.c.b16 %v3430, %v3424
    %v3875 = vpack.c.b16 %v3437, %v3431
    %v3876 = vpack.c.b16 %v3438, %v3432
    %v3877 = vpack.c.b16 %v3439, %v3433
    %v3878 = vpack.c.b16 %v3440, %v3434
    %v3879 = vpack.c.b16 %v3441, %v3435
    %v3880 = vpack.c.b16 %v3442, %v3436
    %v3881 = vpack.c.b16 %v3449, %v3443
    %v3882 = vpack.c.b16 %v3450, %v3444
    %v3883 = vpack.c.b16 %v3451, %v3445
    %v3884 = vpack.c.b16 %v3452, %v3446
    %v3885 = vpack.c.b16 %v3453, %v3447
    %v3886 = vpack.c.b16 %v3454, %v3448
    %v3887 = vpack.c.b16 %v3461, %v3455
    %v3888 = vpack.c.b16 %v3462, %v3456
    %v3889 = vpack.c.b16 %v3463, %v3457
    %v3890 = vpack.c.b16 %v3464, %v3458
    %v3891 = vpack.c.b16 %v3465, %v3459
    %v3892 = vpack.c.b16 %v3466, %v3460
    %v3893 = vpack.c.b16 %v3473, %v3467
    %v3894 = vpack.c.b16 %v3474, %v3468
    %v3895 = vpack.c.b16 %v3475, %v3469
    %v3896 = vpack.c.b16 %v3476, %v3470
    %v3897 = vpack.c.b16 %v3477, %v3471
    %v3898 = vpack.c.b16 %v3478, %v3472
    %v3899 = vpack.c.b16 %v3485, %v3479
    %v3900 = vpack.c.b16 %v3486, %v3480
    %v3901 = vpack.c.b16 %v3487, %v3481
    %v3902 = vpack.c.b16 %v3488, %v3482
    %v3903 = vpack.c.b16 %v3489, %v3483
    %v3904 = vpack.c.b16 %v3490, %v3484
    %v3905 = vpack.c.b16 %v3497, %v3491
    %v3906 = vpack.c.b16 %v3498, %v3492
    %v3907 = vpack.c.b16 %v3499, %v3493
    %v3908 = vpack.c.b16 %v3500, %v3494
    %v3909 = vpack.c.b16 %v3501, %v3495
    %v3910 = vpack.c.b16 %v3502, %v3496
    %v3911 = vpack.c.b16 %v3509, %v3503
    %v3912 = vpack.c.b16 %v3510, %v3504
    %v3913 = vpack.c.b16 %v3511, %v3505
    %v3914 = vpack.c.b16 %v3512, %v3506
    %v3915 = vpack.c.b16 %v3513, %v3507
    %v3916 = vpack.c.b16 %v3514, %v3508
    %v3917 = vpack.c.b16 %v3521, %v3515
    %v3918 = vpack.c.b16 %v3522, %v3516
    %v3919 = vpack.c.b16 %v3523, %v3517
    %v3920 = vpack.c.b16 %v3524, %v3518
    %v3921 = vpack.c.b16 %v3525, %v3519
    %v3922 = vpack.c.b16 %v3526, %v3520
    %v3923 = vpack.c.b16 %v3533, %v3527
    %v3924 = vpack.c.b16 %v3534, %v3528
    %v3925 = vpack.c.b16 %v3535, %v3529
    %v3926 = vpack.c.b16 %v3536, %v3530
    %v3927 = vpack.c.b16 %v3537, %v3531
    %v3928 = vpack.c.b16 %v3538, %v3532
    %v3929 = vpack.c.b16 %v3545, %v3539
    %v3930 = vpack.c.b16 %v3546, %v3540
    %v3931 = vpack.c.b16 %v3547, %v3541
    %v3932 = vpack.c.b16 %v3548, %v3542
    %v3933 = vpack.c.b16 %v3549, %v3543
    %v3934 = vpack.c.b16 %v3550, %v3544
    %v3935 = vpack.c.b16 %v3557, %v3551
    %v3936 = vpack.c.b16 %v3558, %v3552
    %v3937 = vpack.c.b16 %v3559, %v3553
    %v3938 = vpack.c.b16 %v3560, %v3554
    %v3939 = vpack.c.b16 %v3561, %v3555
    %v3940 = vpack.c.b16 %v3562, %v3556
    %v3941 = vpack.c.b16 %v3569, %v3563
    %v3942 = vpack.c.b16 %v3570, %v3564
    %v3943 = vpack.c.b16 %v3571, %v3565
    %v3944 = vpack.c.b16 %v3572, %v3566
    %v3945 = vpack.c.b16 %v3573, %v3567
    %v3946 = vpack.c.b16 %v3574, %v3568
    %v3947 = vpack.c.b16 %v3581, %v3575
    %v3948 = vpack.c.b16 %v3582, %v3576
    %v3949 = vpack.c.b16 %v3583, %v3577
    %v3950 = vpack.c.b16 %v3584, %v3578
    %v3951 = vpack.c.b16 %v3585, %v3579
    %v3952 = vpack.c.b16 %v3586, %v3580
    %v3953 = vpack.c.b16 %v3593, %v3587
    %v3954 = vpack.c.b16 %v3594, %v3588
    %v3955 = vpack.c.b16 %v3595, %v3589
    %v3956 = vpack.c.b16 %v3596, %v3590
    %v3957 = vpack.c.b16 %v3597, %v3591
    %v3958 = vpack.c.b16 %v3598, %v3592
    %v3959 = vpack.c.b16 %v3605, %v3599
    %v3960 = vpack.c.b16 %v3606, %v3600
    %v3961 = vpack.c.b16 %v3607, %v3601
    %v3962 = vpack.c.b16 %v3608, %v3602
    %v3963 = vpack.c.b16 %v3609, %v3603
    %v3964 = vpack.c.b16 %v3610, %v3604
    %v3965 = vpack.c.b16 %v3617, %v3611
    %v3966 = vpack.c.b16 %v3618, %v3612
    %v3967 = vpack.c.b16 %v3619, %v3613
    %v3968 = vpack.c.b16 %v3620, %v3614
    %v3969 = vpack.c.b16 %v3621, %v3615
    %v3970 = vpack.c.b16 %v3622, %v3616
    %v3971 = vpack.c.b16 %v3629, %v3623
    %v3972 = vpack.c.b16 %v3630, %v3624
    %v3973 = vpack.c.b16 %v3631, %v3625
    %v3974 = vpack.c.b16 %v3632, %v3626
    %v3975 = vpack.c.b16 %v3633, %v3627
    %v3976 = vpack.c.b16 %v3634, %v3628
    %v3977 = vpack.c.b16 %v3641, %v3635
    %v3978 = vpack.c.b16 %v3642, %v3636
    %v3979 = vpack.c.b16 %v3643, %v3637
    %v3980 = vpack.c.b16 %v3644, %v3638
    %v3981 = vpack.c.b16 %v3645, %v3639
    %v3982 = vpack.c.b16 %v3646, %v3640
    %v3983 = vpack.c.b16 %v3653, %v3647
    %v3984 = vpack.c.b16 %v3654, %v3648
    %v3985 = vpack.c.b16 %v3655, %v3649
    %v3986 = vpack.c.b16 %v3656, %v3650
    %v3987 = vpack.c.b16 %v3657, %v3651
    %v3988 = vpack.c.b16 %v3658, %v3652
    %v3989 = vpack.c.b16 %v3665, %v3659
    %v3990 = vpack.c.b16 %v3666, %v3660
    %v3991 = vpack.c.b16 %v3667, %v3661
    %v3992 = vpack.c.b16 %v3668, %v3662
    %v3993 = vpack.c.b16 %v3669, %v3663
    %v3994 = vpack.c.b16 %v3670, %v3664
    %v3995 = vpack.c.b16 %v3677, %v3671
    %v3996 = vpack.c.b16 %v3678, %v3672
    %v3997 = vpack.c.b16 %v3679, %v3673
    %v3998 = vpack.c.b16 %v3680, %v3674
    %v3999 = vpack.c.b16 %v3681, %v3675
    %v4000 = vpack.c.b16 %v3682, %v3676
    %v4001 = vpack.c.b16 %v3689, %v3683
    %v4002 = vpack.c.b16 %v3690, %v3684
    %v4003 = vpack.c.b16 %v3691, %v3685
    %v4004 = vpack.c.b16 %v3692, %v3686
    %v4005 = vpack.c.b16 %v3693, %v3687
    %v4006 = vpack.c.b16 %v3694, %v3688
    %v4007 = vpack.c.b16 %v3701, %v3695
    %v4008 = vpack.c.b16 %v3702, %v3696
    %v4009 = vpack.c.b16 %v3703, %v3697
    %v4010 = vpack.c.b16 %v3704, %v3698
    %v4011 = vpack.c.b16 %v3705, %v3699
    %v4012 = vpack.c.b16 %v3706, %v3700
    %v4013 = vpack.c.b16 %v3713, %v3707
    %v4014 = vpack.c.b16 %v3714, %v3708
    %v4015 = vpack.c.b16 %v3715, %v3709
    %v4016 = vpack.c.b16 %v3716, %v3710
    %v4017 = vpack.c.b16 %v3717, %v3711
    %v4018 = vpack.c.b16 %v3718, %v3712
    %v4019 = vpack.c.b16 %v3725, %v3719
    %v4020 = vpack.c.b16 %v3726, %v3720
    %v4021 = vpack.c.b16 %v3727, %v3721
    %v4022 = vpack.c.b16 %v3728, %v3722
    %v4023 = vpack.c.b16 %v3729, %v3723
    %v4024 = vpack.c.b16 %v3730, %v3724
    %v4025 = vpack.c.b16 %v3737, %v3731
    %v4026 = vpack.c.b16 %v3738, %v3732
    %v4027 = vpack.c.b16 %v3739, %v3733
    %v4028 = vpack.c.b16 %v3740, %v3734
    %v4029 = vpack.c.b16 %v3741, %v3735
    %v4030 = vpack.c.b16 %v3742, %v3736
    %4319 = vmatpush.bf16.msra.mxu0 %v3785
    %4320 = vmatpush.bf16.msra.mxu0 %v3779
    %4321 = vmatpush.bf16.msra.mxu0 %v3773
    %4322 = vmatpush.bf16.msra.mxu0 %v3767
    %4323 = vmatpush.bf16.msra.mxu0 %v3761
    %4324 = vmatpush.bf16.msra.mxu0 %v3755
    %4325 = vmatpush.bf16.msra.mxu0 %v3749
    %4326 = vmatpush.bf16.msra.mxu0 %v3743
    %4327 = vmatmul.bf16.gmra.mxu0 %v2429
    %v4328 = vpop.f32.mrf.mxu0
    %v4329 = vadd.f32 %v2811, %v4328
    %v4330 = vpop.f32.mrf.mxu0
    %4331 = vdwg.mxu0
    %4332 = vmatpush.bf16.msra.mxu0 %v3833
    %4333 = vmatpush.bf16.msra.mxu0 %v3827
    %4334 = vmatpush.bf16.msra.mxu0 %v3821
    %4335 = vmatpush.bf16.msra.mxu0 %v3815
    %4336 = vmatpush.bf16.msra.mxu0 %v3809
    %4337 = vmatpush.bf16.msra.mxu0 %v3803
    %4338 = vmatpush.bf16.msra.mxu0 %v3797
    %4339 = vmatpush.bf16.msra.mxu0 %v3791
    %4340 = vmatmul.bf16.gmra.mxu0 %v2430
    %v4341 = vpop.f32.mrf.mxu0
    %v4342 = vadd.f32 %v4329, %v4341
    %v4343 = vpop.f32.mrf.mxu0
    %4344 = vdwg.mxu0
    %4345 = vmatpush.bf16.msra.mxu0 %v3881
    %4346 = vmatpush.bf16.msra.mxu0 %v3875
    %4347 = vmatpush.bf16.msra.mxu0 %v3869
    %4348 = vmatpush.bf16.msra.mxu0 %v3863
    %4349 = vmatpush.bf16.msra.mxu0 %v3857
    %4350 = vmatpush.bf16.msra.mxu0 %v3851
    %4351 = vmatpush.bf16.msra.mxu0 %v3845
    %4352 = vmatpush.bf16.msra.mxu0 %v3839
    %4353 = vmatmul.bf16.gmra.mxu0 %v2431
    %v4354 = vpop.f32.mrf.mxu0
    %v4355 = vadd.f32 %v4342, %v4354
    %v4356 = vpop.f32.mrf.mxu0
    %4357 = vdwg.mxu0
    %4358 = vmatpush.bf16.msra.mxu0 %v3929
    %4359 = vmatpush.bf16.msra.mxu0 %v3923
    %4360 = vmatpush.bf16.msra.mxu0 %v3917
    %4361 = vmatpush.bf16.msra.mxu0 %v3911
    %4362 = vmatpush.bf16.msra.mxu0 %v3905
    %4363 = vmatpush.bf16.msra.mxu0 %v3899
    %4364 = vmatpush.bf16.msra.mxu0 %v3893
    %4365 = vmatpush.bf16.msra.mxu0 %v3887
    %4366 = vmatmul.bf16.gmra.mxu0 %v2432
    %v4367 = vpop.f32.mrf.mxu0
    %v4368 = vadd.f32 %v4355, %v4367
    %v4369 = vpop.f32.mrf.mxu0
    %4370 = vdwg.mxu0
    %4371 = vmatpush.bf16.msra.mxu0 %v3977
    %4372 = vmatpush.bf16.msra.mxu0 %v3971
    %4373 = vmatpush.bf16.msra.mxu0 %v3965
    %4374 = vmatpush.bf16.msra.mxu0 %v3959
    %4375 = vmatpush.bf16.msra.mxu0 %v3953
    %4376 = vmatpush.bf16.msra.mxu0 %v3947
    %4377 = vmatpush.bf16.msra.mxu0 %v3941
    %4378 = vmatpush.bf16.msra.mxu0 %v3935
    %4379 = vmatmul.bf16.gmra.mxu0 %v2433
    %v4380 = vpop.f32.mrf.mxu0
    %v4381 = vadd.f32 %v4368, %v4380
    %v4382 = vpop.f32.mrf.mxu0
    %4383 = vdwg.mxu0
    %4384 = vmatpush.bf16.msra.mxu0 %v4025
    %4385 = vmatpush.bf16.msra.mxu0 %v4019
    %4386 = vmatpush.bf16.msra.mxu0 %v4013
    %4387 = vmatpush.bf16.msra.mxu0 %v4007
    %4388 = vmatpush.bf16.msra.mxu0 %v4001
    %4389 = vmatpush.bf16.msra.mxu0 %v3995
    %4390 = vmatpush.bf16.msra.mxu0 %v3989
    %4391 = vmatpush.bf16.msra.mxu0 %v3983
    %4392 = vmatmul.bf16.gmra.mxu0 %v2434
    %v4393 = vpop.f32.mrf.mxu0
    %v4394 = vadd.f32 %v4381, %v4393
    %v4395 = vpop.f32.mrf.mxu0
    %4396 = vdwg.mxu0
    %4397 = vmatpush.bf16.msra.mxu0 %v3786
    %4398 = vmatpush.bf16.msra.mxu0 %v3780
    %4399 = vmatpush.bf16.msra.mxu0 %v3774
    %4400 = vmatpush.bf16.msra.mxu0 %v3768
    %4401 = vmatpush.bf16.msra.mxu0 %v3762
    %4402 = vmatpush.bf16.msra.mxu0 %v3756
    %4403 = vmatpush.bf16.msra.mxu0 %v3750
    %4404 = vmatpush.bf16.msra.mxu0 %v3744
    %4405 = vmatmul.bf16.gmra.mxu0 %v2429
    %v4406 = vpop.f32.mrf.mxu0
    %v4407 = vadd.f32 %v2824, %v4406
    %v4408 = vpop.f32.mrf.mxu0
    %4409 = vdwg.mxu0
    %4410 = vmatpush.bf16.msra.mxu0 %v3834
    %4411 = vmatpush.bf16.msra.mxu0 %v3828
    %4412 = vmatpush.bf16.msra.mxu0 %v3822
    %4413 = vmatpush.bf16.msra.mxu0 %v3816
    %4414 = vmatpush.bf16.msra.mxu0 %v3810
    %4415 = vmatpush.bf16.msra.mxu0 %v3804
    %4416 = vmatpush.bf16.msra.mxu0 %v3798
    %4417 = vmatpush.bf16.msra.mxu0 %v3792
    %4418 = vmatmul.bf16.gmra.mxu0 %v2430
    %v4419 = vpop.f32.mrf.mxu0
    %v4420 = vadd.f32 %v4407, %v4419
    %v4421 = vpop.f32.mrf.mxu0
    %4422 = vdwg.mxu0
    %4423 = vmatpush.bf16.msra.mxu0 %v3882
    %4424 = vmatpush.bf16.msra.mxu0 %v3876
    %4425 = vmatpush.bf16.msra.mxu0 %v3870
    %4426 = vmatpush.bf16.msra.mxu0 %v3864
    %4427 = vmatpush.bf16.msra.mxu0 %v3858
    %4428 = vmatpush.bf16.msra.mxu0 %v3852
    %4429 = vmatpush.bf16.msra.mxu0 %v3846
    %4430 = vmatpush.bf16.msra.mxu0 %v3840
    %4431 = vmatmul.bf16.gmra.mxu0 %v2431
    %v4432 = vpop.f32.mrf.mxu0
    %v4433 = vadd.f32 %v4420, %v4432
    %v4434 = vpop.f32.mrf.mxu0
    %4435 = vdwg.mxu0
    %4436 = vmatpush.bf16.msra.mxu0 %v3930
    %4437 = vmatpush.bf16.msra.mxu0 %v3924
    %4438 = vmatpush.bf16.msra.mxu0 %v3918
    %4439 = vmatpush.bf16.msra.mxu0 %v3912
    %4440 = vmatpush.bf16.msra.mxu0 %v3906
    %4441 = vmatpush.bf16.msra.mxu0 %v3900
    %4442 = vmatpush.bf16.msra.mxu0 %v3894
    %4443 = vmatpush.bf16.msra.mxu0 %v3888
    %4444 = vmatmul.bf16.gmra.mxu0 %v2432
    %v4445 = vpop.f32.mrf.mxu0
    %v4446 = vadd.f32 %v4433, %v4445
    %v4447 = vpop.f32.mrf.mxu0
    %4448 = vdwg.mxu0
    %4449 = vmatpush.bf16.msra.mxu0 %v3978
    %4450 = vmatpush.bf16.msra.mxu0 %v3972
    %4451 = vmatpush.bf16.msra.mxu0 %v3966
    %4452 = vmatpush.bf16.msra.mxu0 %v3960
    %4453 = vmatpush.bf16.msra.mxu0 %v3954
    %4454 = vmatpush.bf16.msra.mxu0 %v3948
    %4455 = vmatpush.bf16.msra.mxu0 %v3942
    %4456 = vmatpush.bf16.msra.mxu0 %v3936
    %4457 = vmatmul.bf16.gmra.mxu0 %v2433
    %v4458 = vpop.f32.mrf.mxu0
    %v4459 = vadd.f32 %v4446, %v4458
    %v4460 = vpop.f32.mrf.mxu0
    %4461 = vdwg.mxu0
    %4462 = vmatpush.bf16.msra.mxu0 %v4026
    %4463 = vmatpush.bf16.msra.mxu0 %v4020
    %4464 = vmatpush.bf16.msra.mxu0 %v4014
    %4465 = vmatpush.bf16.msra.mxu0 %v4008
    %4466 = vmatpush.bf16.msra.mxu0 %v4002
    %4467 = vmatpush.bf16.msra.mxu0 %v3996
    %4468 = vmatpush.bf16.msra.mxu0 %v3990
    %4469 = vmatpush.bf16.msra.mxu0 %v3984
    %4470 = vmatmul.bf16.gmra.mxu0 %v2434
    %v4471 = vpop.f32.mrf.mxu0
    %v4472 = vadd.f32 %v4459, %v4471
    %v4473 = vpop.f32.mrf.mxu0
    %4474 = vdwg.mxu0
    %4475 = vmatpush.bf16.msra.mxu0 %v3787
    %4476 = vmatpush.bf16.msra.mxu0 %v3781
    %4477 = vmatpush.bf16.msra.mxu0 %v3775
    %4478 = vmatpush.bf16.msra.mxu0 %v3769
    %4479 = vmatpush.bf16.msra.mxu0 %v3763
    %4480 = vmatpush.bf16.msra.mxu0 %v3757
    %4481 = vmatpush.bf16.msra.mxu0 %v3751
    %4482 = vmatpush.bf16.msra.mxu0 %v3745
    %4483 = vmatmul.bf16.gmra.mxu0 %v2429
    %v4484 = vpop.f32.mrf.mxu0
    %v4485 = vadd.f32 %v2837, %v4484
    %v4486 = vpop.f32.mrf.mxu0
    %4487 = vdwg.mxu0
    %4488 = vmatpush.bf16.msra.mxu0 %v3835
    %4489 = vmatpush.bf16.msra.mxu0 %v3829
    %4490 = vmatpush.bf16.msra.mxu0 %v3823
    %4491 = vmatpush.bf16.msra.mxu0 %v3817
    %4492 = vmatpush.bf16.msra.mxu0 %v3811
    %4493 = vmatpush.bf16.msra.mxu0 %v3805
    %4494 = vmatpush.bf16.msra.mxu0 %v3799
    %4495 = vmatpush.bf16.msra.mxu0 %v3793
    %4496 = vmatmul.bf16.gmra.mxu0 %v2430
    %v4497 = vpop.f32.mrf.mxu0
    %v4498 = vadd.f32 %v4485, %v4497
    %v4499 = vpop.f32.mrf.mxu0
    %4500 = vdwg.mxu0
    %4501 = vmatpush.bf16.msra.mxu0 %v3883
    %4502 = vmatpush.bf16.msra.mxu0 %v3877
    %4503 = vmatpush.bf16.msra.mxu0 %v3871
    %4504 = vmatpush.bf16.msra.mxu0 %v3865
    %4505 = vmatpush.bf16.msra.mxu0 %v3859
    %4506 = vmatpush.bf16.msra.mxu0 %v3853
    %4507 = vmatpush.bf16.msra.mxu0 %v3847
    %4508 = vmatpush.bf16.msra.mxu0 %v3841
    %4509 = vmatmul.bf16.gmra.mxu0 %v2431
    %v4510 = vpop.f32.mrf.mxu0
    %v4511 = vadd.f32 %v4498, %v4510
    %v4512 = vpop.f32.mrf.mxu0
    %4513 = vdwg.mxu0
    %4514 = vmatpush.bf16.msra.mxu0 %v3931
    %4515 = vmatpush.bf16.msra.mxu0 %v3925
    %4516 = vmatpush.bf16.msra.mxu0 %v3919
    %4517 = vmatpush.bf16.msra.mxu0 %v3913
    %4518 = vmatpush.bf16.msra.mxu0 %v3907
    %4519 = vmatpush.bf16.msra.mxu0 %v3901
    %4520 = vmatpush.bf16.msra.mxu0 %v3895
    %4521 = vmatpush.bf16.msra.mxu0 %v3889
    %4522 = vmatmul.bf16.gmra.mxu0 %v2432
    %v4523 = vpop.f32.mrf.mxu0
    %v4524 = vadd.f32 %v4511, %v4523
    %v4525 = vpop.f32.mrf.mxu0
    %4526 = vdwg.mxu0
    %4527 = vmatpush.bf16.msra.mxu0 %v3979
    %4528 = vmatpush.bf16.msra.mxu0 %v3973
    %4529 = vmatpush.bf16.msra.mxu0 %v3967
    %4530 = vmatpush.bf16.msra.mxu0 %v3961
    %4531 = vmatpush.bf16.msra.mxu0 %v3955
    %4532 = vmatpush.bf16.msra.mxu0 %v3949
    %4533 = vmatpush.bf16.msra.mxu0 %v3943
    %4534 = vmatpush.bf16.msra.mxu0 %v3937
    %4535 = vmatmul.bf16.gmra.mxu0 %v2433
    %v4536 = vpop.f32.mrf.mxu0
    %v4537 = vadd.f32 %v4524, %v4536
    %v4538 = vpop.f32.mrf.mxu0
    %4539 = vdwg.mxu0
    %4540 = vmatpush.bf16.msra.mxu0 %v4027
    %4541 = vmatpush.bf16.msra.mxu0 %v4021
    %4542 = vmatpush.bf16.msra.mxu0 %v4015
    %4543 = vmatpush.bf16.msra.mxu0 %v4009
    %4544 = vmatpush.bf16.msra.mxu0 %v4003
    %4545 = vmatpush.bf16.msra.mxu0 %v3997
    %4546 = vmatpush.bf16.msra.mxu0 %v3991
    %4547 = vmatpush.bf16.msra.mxu0 %v3985
    %4548 = vmatmul.bf16.gmra.mxu0 %v2434
    %v4549 = vpop.f32.mrf.mxu0
    %v4550 = vadd.f32 %v4537, %v4549
    %v4551 = vpop.f32.mrf.mxu0
    %4552 = vdwg.mxu0
    %4553 = vmatpush.bf16.msra.mxu0 %v3788
    %4554 = vmatpush.bf16.msra.mxu0 %v3782
    %4555 = vmatpush.bf16.msra.mxu0 %v3776
    %4556 = vmatpush.bf16.msra.mxu0 %v3770
    %4557 = vmatpush.bf16.msra.mxu0 %v3764
    %4558 = vmatpush.bf16.msra.mxu0 %v3758
    %4559 = vmatpush.bf16.msra.mxu0 %v3752
    %4560 = vmatpush.bf16.msra.mxu0 %v3746
    %4561 = vmatmul.bf16.gmra.mxu0 %v2429
    %v4562 = vpop.f32.mrf.mxu0
    %v4563 = vadd.f32 %v2850, %v4562
    %v4564 = vpop.f32.mrf.mxu0
    %4565 = vdwg.mxu0
    %4566 = vmatpush.bf16.msra.mxu0 %v3836
    %4567 = vmatpush.bf16.msra.mxu0 %v3830
    %4568 = vmatpush.bf16.msra.mxu0 %v3824
    %4569 = vmatpush.bf16.msra.mxu0 %v3818
    %4570 = vmatpush.bf16.msra.mxu0 %v3812
    %4571 = vmatpush.bf16.msra.mxu0 %v3806
    %4572 = vmatpush.bf16.msra.mxu0 %v3800
    %4573 = vmatpush.bf16.msra.mxu0 %v3794
    %4574 = vmatmul.bf16.gmra.mxu0 %v2430
    %v4575 = vpop.f32.mrf.mxu0
    %v4576 = vadd.f32 %v4563, %v4575
    %v4577 = vpop.f32.mrf.mxu0
    %4578 = vdwg.mxu0
    %4579 = vmatpush.bf16.msra.mxu0 %v3884
    %4580 = vmatpush.bf16.msra.mxu0 %v3878
    %4581 = vmatpush.bf16.msra.mxu0 %v3872
    %4582 = vmatpush.bf16.msra.mxu0 %v3866
    %4583 = vmatpush.bf16.msra.mxu0 %v3860
    %4584 = vmatpush.bf16.msra.mxu0 %v3854
    %4585 = vmatpush.bf16.msra.mxu0 %v3848
    %4586 = vmatpush.bf16.msra.mxu0 %v3842
    %4587 = vmatmul.bf16.gmra.mxu0 %v2431
    %v4588 = vpop.f32.mrf.mxu0
    %v4589 = vadd.f32 %v4576, %v4588
    %v4590 = vpop.f32.mrf.mxu0
    %4591 = vdwg.mxu0
    %4592 = vmatpush.bf16.msra.mxu0 %v3932
    %4593 = vmatpush.bf16.msra.mxu0 %v3926
    %4594 = vmatpush.bf16.msra.mxu0 %v3920
    %4595 = vmatpush.bf16.msra.mxu0 %v3914
    %4596 = vmatpush.bf16.msra.mxu0 %v3908
    %4597 = vmatpush.bf16.msra.mxu0 %v3902
    %4598 = vmatpush.bf16.msra.mxu0 %v3896
    %4599 = vmatpush.bf16.msra.mxu0 %v3890
    %4600 = vmatmul.bf16.gmra.mxu0 %v2432
    %v4601 = vpop.f32.mrf.mxu0
    %v4602 = vadd.f32 %v4589, %v4601
    %v4603 = vpop.f32.mrf.mxu0
    %4604 = vdwg.mxu0
    %4605 = vmatpush.bf16.msra.mxu0 %v3980
    %4606 = vmatpush.bf16.msra.mxu0 %v3974
    %4607 = vmatpush.bf16.msra.mxu0 %v3968
    %4608 = vmatpush.bf16.msra.mxu0 %v3962
    %4609 = vmatpush.bf16.msra.mxu0 %v3956
    %4610 = vmatpush.bf16.msra.mxu0 %v3950
    %4611 = vmatpush.bf16.msra.mxu0 %v3944
    %4612 = vmatpush.bf16.msra.mxu0 %v3938
    %4613 = vmatmul.bf16.gmra.mxu0 %v2433
    %v4614 = vpop.f32.mrf.mxu0
    %v4615 = vadd.f32 %v4602, %v4614
    %v4616 = vpop.f32.mrf.mxu0
    %4617 = vdwg.mxu0
    %4618 = vmatpush.bf16.msra.mxu0 %v4028
    %4619 = vmatpush.bf16.msra.mxu0 %v4022
    %4620 = vmatpush.bf16.msra.mxu0 %v4016
    %4621 = vmatpush.bf16.msra.mxu0 %v4010
    %4622 = vmatpush.bf16.msra.mxu0 %v4004
    %4623 = vmatpush.bf16.msra.mxu0 %v3998
    %4624 = vmatpush.bf16.msra.mxu0 %v3992
    %4625 = vmatpush.bf16.msra.mxu0 %v3986
    %4626 = vmatmul.bf16.gmra.mxu0 %v2434
    %v4627 = vpop.f32.mrf.mxu0
    %v4628 = vadd.f32 %v4615, %v4627
    %v4629 = vpop.f32.mrf.mxu0
    %4630 = vdwg.mxu0
    %4631 = vmatpush.bf16.msra.mxu0 %v3789
    %4632 = vmatpush.bf16.msra.mxu0 %v3783
    %4633 = vmatpush.bf16.msra.mxu0 %v3777
    %4634 = vmatpush.bf16.msra.mxu0 %v3771
    %4635 = vmatpush.bf16.msra.mxu0 %v3765
    %4636 = vmatpush.bf16.msra.mxu0 %v3759
    %4637 = vmatpush.bf16.msra.mxu0 %v3753
    %4638 = vmatpush.bf16.msra.mxu0 %v3747
    %4639 = vmatmul.bf16.gmra.mxu0 %v2429
    %v4640 = vpop.f32.mrf.mxu0
    %v4641 = vadd.f32 %v2863, %v4640
    %v4642 = vpop.f32.mrf.mxu0
    %4643 = vdwg.mxu0
    %4644 = vmatpush.bf16.msra.mxu0 %v3837
    %4645 = vmatpush.bf16.msra.mxu0 %v3831
    %4646 = vmatpush.bf16.msra.mxu0 %v3825
    %4647 = vmatpush.bf16.msra.mxu0 %v3819
    %4648 = vmatpush.bf16.msra.mxu0 %v3813
    %4649 = vmatpush.bf16.msra.mxu0 %v3807
    %4650 = vmatpush.bf16.msra.mxu0 %v3801
    %4651 = vmatpush.bf16.msra.mxu0 %v3795
    %4652 = vmatmul.bf16.gmra.mxu0 %v2430
    %v4653 = vpop.f32.mrf.mxu0
    %v4654 = vadd.f32 %v4641, %v4653
    %v4655 = vpop.f32.mrf.mxu0
    %4656 = vdwg.mxu0
    %4657 = vmatpush.bf16.msra.mxu0 %v3885
    %4658 = vmatpush.bf16.msra.mxu0 %v3879
    %4659 = vmatpush.bf16.msra.mxu0 %v3873
    %4660 = vmatpush.bf16.msra.mxu0 %v3867
    %4661 = vmatpush.bf16.msra.mxu0 %v3861
    %4662 = vmatpush.bf16.msra.mxu0 %v3855
    %4663 = vmatpush.bf16.msra.mxu0 %v3849
    %4664 = vmatpush.bf16.msra.mxu0 %v3843
    %4665 = vmatmul.bf16.gmra.mxu0 %v2431
    %v4666 = vpop.f32.mrf.mxu0
    %v4667 = vadd.f32 %v4654, %v4666
    %v4668 = vpop.f32.mrf.mxu0
    %4669 = vdwg.mxu0
    %4670 = vmatpush.bf16.msra.mxu0 %v3933
    %4671 = vmatpush.bf16.msra.mxu0 %v3927
    %4672 = vmatpush.bf16.msra.mxu0 %v3921
    %4673 = vmatpush.bf16.msra.mxu0 %v3915
    %4674 = vmatpush.bf16.msra.mxu0 %v3909
    %4675 = vmatpush.bf16.msra.mxu0 %v3903
    %4676 = vmatpush.bf16.msra.mxu0 %v3897
    %4677 = vmatpush.bf16.msra.mxu0 %v3891
    %4678 = vmatmul.bf16.gmra.mxu0 %v2432
    %v4679 = vpop.f32.mrf.mxu0
    %v4680 = vadd.f32 %v4667, %v4679
    %v4681 = vpop.f32.mrf.mxu0
    %4682 = vdwg.mxu0
    %4683 = vmatpush.bf16.msra.mxu0 %v3981
    %4684 = vmatpush.bf16.msra.mxu0 %v3975
    %4685 = vmatpush.bf16.msra.mxu0 %v3969
    %4686 = vmatpush.bf16.msra.mxu0 %v3963
    %4687 = vmatpush.bf16.msra.mxu0 %v3957
    %4688 = vmatpush.bf16.msra.mxu0 %v3951
    %4689 = vmatpush.bf16.msra.mxu0 %v3945
    %4690 = vmatpush.bf16.msra.mxu0 %v3939
    %4691 = vmatmul.bf16.gmra.mxu0 %v2433
    %v4692 = vpop.f32.mrf.mxu0
    %v4693 = vadd.f32 %v4680, %v4692
    %v4694 = vpop.f32.mrf.mxu0
    %4695 = vdwg.mxu0
    %4696 = vmatpush.bf16.msra.mxu0 %v4029
    %4697 = vmatpush.bf16.msra.mxu0 %v4023
    %4698 = vmatpush.bf16.msra.mxu0 %v4017
    %4699 = vmatpush.bf16.msra.mxu0 %v4011
    %4700 = vmatpush.bf16.msra.mxu0 %v4005
    %4701 = vmatpush.bf16.msra.mxu0 %v3999
    %4702 = vmatpush.bf16.msra.mxu0 %v3993
    %4703 = vmatpush.bf16.msra.mxu0 %v3987
    %4704 = vmatmul.bf16.gmra.mxu0 %v2434
    %v4705 = vpop.f32.mrf.mxu0
    %v4706 = vadd.f32 %v4693, %v4705
    %v4707 = vpop.f32.mrf.mxu0
    %4708 = vdwg.mxu0
    %4709 = vmatpush.bf16.msra.mxu0 %v3790
    %4710 = vmatpush.bf16.msra.mxu0 %v3784
    %4711 = vmatpush.bf16.msra.mxu0 %v3778
    %4712 = vmatpush.bf16.msra.mxu0 %v3772
    %4713 = vmatpush.bf16.msra.mxu0 %v3766
    %4714 = vmatpush.bf16.msra.mxu0 %v3760
    %4715 = vmatpush.bf16.msra.mxu0 %v3754
    %4716 = vmatpush.bf16.msra.mxu0 %v3748
    %4717 = vmatmul.bf16.gmra.mxu0 %v2429
    %v4718 = vpop.f32.mrf.mxu0
    %v4719 = vadd.f32 %v2876, %v4718
    %v4720 = vpop.f32.mrf.mxu0
    %4721 = vdwg.mxu0
    %4722 = vmatpush.bf16.msra.mxu0 %v3838
    %4723 = vmatpush.bf16.msra.mxu0 %v3832
    %4724 = vmatpush.bf16.msra.mxu0 %v3826
    %4725 = vmatpush.bf16.msra.mxu0 %v3820
    %4726 = vmatpush.bf16.msra.mxu0 %v3814
    %4727 = vmatpush.bf16.msra.mxu0 %v3808
    %4728 = vmatpush.bf16.msra.mxu0 %v3802
    %4729 = vmatpush.bf16.msra.mxu0 %v3796
    %4730 = vmatmul.bf16.gmra.mxu0 %v2430
    %v4731 = vpop.f32.mrf.mxu0
    %v4732 = vadd.f32 %v4719, %v4731
    %v4733 = vpop.f32.mrf.mxu0
    %4734 = vdwg.mxu0
    %4735 = vmatpush.bf16.msra.mxu0 %v3886
    %4736 = vmatpush.bf16.msra.mxu0 %v3880
    %4737 = vmatpush.bf16.msra.mxu0 %v3874
    %4738 = vmatpush.bf16.msra.mxu0 %v3868
    %4739 = vmatpush.bf16.msra.mxu0 %v3862
    %4740 = vmatpush.bf16.msra.mxu0 %v3856
    %4741 = vmatpush.bf16.msra.mxu0 %v3850
    %4742 = vmatpush.bf16.msra.mxu0 %v3844
    %4743 = vmatmul.bf16.gmra.mxu0 %v2431
    %v4744 = vpop.f32.mrf.mxu0
    %v4745 = vadd.f32 %v4732, %v4744
    %v4746 = vpop.f32.mrf.mxu0
    %4747 = vdwg.mxu0
    %4748 = vmatpush.bf16.msra.mxu0 %v3934
    %4749 = vmatpush.bf16.msra.mxu0 %v3928
    %4750 = vmatpush.bf16.msra.mxu0 %v3922
    %4751 = vmatpush.bf16.msra.mxu0 %v3916
    %4752 = vmatpush.bf16.msra.mxu0 %v3910
    %4753 = vmatpush.bf16.msra.mxu0 %v3904
    %4754 = vmatpush.bf16.msra.mxu0 %v3898
    %4755 = vmatpush.bf16.msra.mxu0 %v3892
    %4756 = vmatmul.bf16.gmra.mxu0 %v2432
    %v4757 = vpop.f32.mrf.mxu0
    %v4758 = vadd.f32 %v4745, %v4757
    %v4759 = vpop.f32.mrf.mxu0
    %4760 = vdwg.mxu0
    %4761 = vmatpush.bf16.msra.mxu0 %v3982
    %4762 = vmatpush.bf16.msra.mxu0 %v3976
    %4763 = vmatpush.bf16.msra.mxu0 %v3970
    %4764 = vmatpush.bf16.msra.mxu0 %v3964
    %4765 = vmatpush.bf16.msra.mxu0 %v3958
    %4766 = vmatpush.bf16.msra.mxu0 %v3952
    %4767 = vmatpush.bf16.msra.mxu0 %v3946
    %4768 = vmatpush.bf16.msra.mxu0 %v3940
    %4769 = vmatmul.bf16.gmra.mxu0 %v2433
    %v4770 = vpop.f32.mrf.mxu0
    %v4771 = vadd.f32 %v4758, %v4770
    %v4772 = vpop.f32.mrf.mxu0
    %4773 = vdwg.mxu0
    %4774 = vmatpush.bf16.msra.mxu0 %v4030
    %4775 = vmatpush.bf16.msra.mxu0 %v4024
    %4776 = vmatpush.bf16.msra.mxu0 %v4018
    %4777 = vmatpush.bf16.msra.mxu0 %v4012
    %4778 = vmatpush.bf16.msra.mxu0 %v4006
    %4779 = vmatpush.bf16.msra.mxu0 %v4000
    %4780 = vmatpush.bf16.msra.mxu0 %v3994
    %4781 = vmatpush.bf16.msra.mxu0 %v3988
    %4782 = vmatmul.bf16.gmra.mxu0 %v2434
    %v4783 = vpop.f32.mrf.mxu0
    %v4784 = vadd.f32 %v4771, %v4783
    %v4785 = vpop.f32.mrf.mxu0
    %4786 = vdwg.mxu0
    %v4787 = vld [vmem:[#allocation15] sm:$0x3f]
    %v4789 = vperm.slane %v4787, 0
    %v4790 = vperm.slane %v4787, 1
    %v4791 = vperm.slane %v4787, 2
    %v4792 = vperm.slane %v4787, 3
    %v4793 = vperm.slane %v4787, 4
    %v4794 = vperm.slane %v4787, 5
    %v4801 = vadd.f32 %v4394, %v4789
    %v4802 = vadd.f32 %v4472, %v4790
    %v4803 = vadd.f32 %v4550, %v4791
    %v4804 = vadd.f32 %v4628, %v4792
    %v4805 = vadd.f32 %v4706, %v4793
    %v4806 = vadd.f32 %v4784, %v4794
    %v4807 = vmax.f32 %v4801, 0.0
    %v4808 = vmax.f32 %v4802, 0.0
    %v4809 = vmax.f32 %v4803, 0.0
    %v4810 = vmax.f32 %v4804, 0.0
    %v4811 = vmax.f32 %v4805, 0.0
    %v4812 = vmax.f32 %v4806, 0.0
    %v4813 = vpack.c.bf16 %v4807, %v4807
    %v4814 = vpack.c.bf16 %v4808, %v4808
    %v4815 = vpack.c.bf16 %v4809, %v4809
    %v4816 = vpack.c.bf16 %v4810, %v4810
    %v4817 = vpack.c.bf16 %v4811, %v4811
    %v4818 = vpack.c.bf16 %v4812, %v4812
    %v4819 = vld [vmem:[#allocation17] sm:$0xf]
    %v4820 = vld [vmem:[#allocation17 + $0x4] sm:$0xf]
    %v4821 = vld [vmem:[#allocation17 + $0x8] sm:$0xf]
    %v4822 = vld [vmem:[#allocation17 + $0xc] sm:$0xf]
    %v4823 = vld [vmem:[#allocation17 + $0x10] sm:$0xf]
    %v4824 = vld [vmem:[#allocation17 + $0x14] sm:$0xf]
    %v4825 = vld [vmem:[#allocation17 + $0x18] sm:$0xf]
    %v4826 = vld [vmem:[#allocation17 + $0x1c] sm:$0xf]
    %v4827 = vld [vmem:[#allocation17 + $0x20] sm:$0xf]
    %v4828 = vld [vmem:[#allocation17 + $0x24] sm:$0xf]
    %v4829 = vld [vmem:[#allocation17 + $0x28] sm:$0xf]
    %v4830 = vld [vmem:[#allocation17 + $0x2c] sm:$0xf]
    %v4831 = vld [vmem:[#allocation17 + $0x30] sm:$0xf]
    %v4832 = vld [vmem:[#allocation17 + $0x34] sm:$0xf]
    %v4833 = vld [vmem:[#allocation17 + $0x38] sm:$0xf]
    %v4834 = vld [vmem:[#allocation17 + $0x3c] sm:$0xf]
    %v4835 = vld [vmem:[#allocation17 + $0x40] sm:$0xf]
    %v4836 = vld [vmem:[#allocation17 + $0x44] sm:$0xf]
    %v4837 = vld [vmem:[#allocation17 + $0x48] sm:$0xf]
    %v4838 = vld [vmem:[#allocation17 + $0x4c] sm:$0xf]
    %v4839 = vld [vmem:[#allocation17 + $0x50] sm:$0xf]
    %v4840 = vld [vmem:[#allocation17 + $0x54] sm:$0xf]
    %v4841 = vld [vmem:[#allocation17 + $0x58] sm:$0xf]
    %v4842 = vld [vmem:[#allocation17 + $0x5c] sm:$0xf]
    %v4843 = vld [vmem:[#allocation17 + $0x60] sm:$0xf]
    %v4844 = vld [vmem:[#allocation17 + $0x64] sm:$0xf]
    %v4845 = vld [vmem:[#allocation17 + $0x68] sm:$0xf]
    %v4846 = vld [vmem:[#allocation17 + $0x6c] sm:$0xf]
    %v4847 = vld [vmem:[#allocation17 + $0x70] sm:$0xf]
    %v4848 = vld [vmem:[#allocation17 + $0x74] sm:$0xf]
    %v4849 = vld [vmem:[#allocation17 + $0x78] sm:$0xf]
    %v4850 = vld [vmem:[#allocation17 + $0x7c] sm:$0xf]
    %v4851 = vld [vmem:[#allocation17 + $0x80] sm:$0xf]
    %v4852 = vld [vmem:[#allocation17 + $0x84] sm:$0xf]
    %v4853 = vld [vmem:[#allocation17 + $0x88] sm:$0xf]
    %v4854 = vld [vmem:[#allocation17 + $0x8c] sm:$0xf]
    %v4855 = vld [vmem:[#allocation17 + $0x90] sm:$0xf]
    %v4856 = vld [vmem:[#allocation17 + $0x94] sm:$0xf]
    %v4857 = vld [vmem:[#allocation17 + $0x98] sm:$0xf]
    %v4858 = vld [vmem:[#allocation17 + $0x9c] sm:$0xf]
    %v4859 = vld [vmem:[#allocation17 + $0xa0] sm:$0xf]
    %v4860 = vld [vmem:[#allocation17 + $0xa4] sm:$0xf]
    %v4861 = vld [vmem:[#allocation17 + $0xa8] sm:$0xf]
    %v4862 = vld [vmem:[#allocation17 + $0xac] sm:$0xf]
    %v4863 = vld [vmem:[#allocation17 + $0xb0] sm:$0xf]
    %v4864 = vld [vmem:[#allocation17 + $0xb4] sm:$0xf]
    %v4865 = vld [vmem:[#allocation17 + $0xb8] sm:$0xf]
    %v4866 = vld [vmem:[#allocation17 + $0xbc] sm:$0xf]
    %v4867 = vld [vmem:[#allocation17 + $0xc0] sm:$0xf]
    %v4868 = vld [vmem:[#allocation17 + $0xc4] sm:$0xf]
    %v4869 = vld [vmem:[#allocation17 + $0xc8] sm:$0xf]
    %v4870 = vld [vmem:[#allocation17 + $0xcc] sm:$0xf]
    %v4871 = vld [vmem:[#allocation17 + $0xd0] sm:$0xf]
    %v4872 = vld [vmem:[#allocation17 + $0xd4] sm:$0xf]
    %v4873 = vld [vmem:[#allocation17 + $0xd8] sm:$0xf]
    %v4874 = vld [vmem:[#allocation17 + $0xdc] sm:$0xf]
    %v4875 = vld [vmem:[#allocation17 + $0xe0] sm:$0xf]
    %v4876 = vld [vmem:[#allocation17 + $0xe4] sm:$0xf]
    %v4877 = vld [vmem:[#allocation17 + $0xe8] sm:$0xf]
    %v4878 = vld [vmem:[#allocation17 + $0xec] sm:$0xf]
    %v4879 = vld [vmem:[#allocation17 + $0xf0] sm:$0xf]
    %v4880 = vld [vmem:[#allocation17 + $0xf4] sm:$0xf]
    %v4881 = vld [vmem:[#allocation17 + $0xf8] sm:$0xf]
    %v4882 = vld [vmem:[#allocation17 + $0xfc] sm:$0xf]
    %v4883 = vld [vmem:[#allocation17 + $0x100] sm:$0xf]
    %v4884 = vld [vmem:[#allocation17 + $0x104] sm:$0xf]
    %v4885 = vld [vmem:[#allocation17 + $0x108] sm:$0xf]
    %v4886 = vld [vmem:[#allocation17 + $0x10c] sm:$0xf]
    %v4887 = vld [vmem:[#allocation17 + $0x110] sm:$0xf]
    %v4888 = vld [vmem:[#allocation17 + $0x114] sm:$0xf]
    %v4889 = vld [vmem:[#allocation17 + $0x118] sm:$0xf]
    %v4890 = vld [vmem:[#allocation17 + $0x11c] sm:$0xf]
    %v4891 = vld [vmem:[#allocation17 + $0x120] sm:$0xf]
    %v4892 = vld [vmem:[#allocation17 + $0x124] sm:$0xf]
    %v4893 = vld [vmem:[#allocation17 + $0x128] sm:$0xf]
    %v4894 = vld [vmem:[#allocation17 + $0x12c] sm:$0xf]
    %v4895 = vld [vmem:[#allocation17 + $0x130] sm:$0xf]
    %v4896 = vld [vmem:[#allocation17 + $0x134] sm:$0xf]
    %v4897 = vld [vmem:[#allocation17 + $0x138] sm:$0xf]
    %v4898 = vld [vmem:[#allocation17 + $0x13c] sm:$0xf]
    %v4899 = vld [vmem:[#allocation17 + $0x140] sm:$0xf]
    %v4900 = vld [vmem:[#allocation17 + $0x144] sm:$0xf]
    %v4901 = vld [vmem:[#allocation17 + $0x148] sm:$0xf]
    %v4902 = vld [vmem:[#allocation17 + $0x14c] sm:$0xf]
    %v4903 = vld [vmem:[#allocation17 + $0x150] sm:$0xf]
    %v4904 = vld [vmem:[#allocation17 + $0x154] sm:$0xf]
    %v4905 = vld [vmem:[#allocation17 + $0x158] sm:$0xf]
    %v4906 = vld [vmem:[#allocation17 + $0x15c] sm:$0xf]
    %v4907 = vld [vmem:[#allocation17 + $0x160] sm:$0xf]
    %v4908 = vld [vmem:[#allocation17 + $0x164] sm:$0xf]
    %v4909 = vld [vmem:[#allocation17 + $0x168] sm:$0xf]
    %v4910 = vld [vmem:[#allocation17 + $0x16c] sm:$0xf]
    %v4911 = vld [vmem:[#allocation17 + $0x170] sm:$0xf]
    %v4912 = vld [vmem:[#allocation17 + $0x174] sm:$0xf]
    %v4913 = vld [vmem:[#allocation17 + $0x178] sm:$0xf]
    %v4914 = vld [vmem:[#allocation17 + $0x17c] sm:$0xf]
    %v4915 = vld [vmem:[#allocation18] sm:$0x1]
    %v4917 = vperm.slane %v4915, 0
    %v5015 = vunpack.c.l.b16 %v4819
    %v5016 = vunpack.c.l.b16 %v4820
    %v5017 = vunpack.c.l.b16 %v4821
    %v5018 = vunpack.c.l.b16 %v4822
    %v5019 = vunpack.c.l.b16 %v4823
    %v5020 = vunpack.c.l.b16 %v4824
    %v5021 = vunpack.c.l.b16 %v4825
    %v5022 = vunpack.c.l.b16 %v4826
    %v5023 = vunpack.c.l.b16 %v4827
    %v5024 = vunpack.c.l.b16 %v4828
    %v5025 = vunpack.c.l.b16 %v4829
    %v5026 = vunpack.c.l.b16 %v4830
    %v5027 = vunpack.c.l.b16 %v4831
    %v5028 = vunpack.c.l.b16 %v4832
    %v5029 = vunpack.c.l.b16 %v4833
    %v5030 = vunpack.c.l.b16 %v4834
    %v5031 = vunpack.c.l.b16 %v4835
    %v5032 = vunpack.c.l.b16 %v4836
    %v5033 = vunpack.c.l.b16 %v4837
    %v5034 = vunpack.c.l.b16 %v4838
    %v5035 = vunpack.c.l.b16 %v4839
    %v5036 = vunpack.c.l.b16 %v4840
    %v5037 = vunpack.c.l.b16 %v4841
    %v5038 = vunpack.c.l.b16 %v4842
    %v5039 = vunpack.c.l.b16 %v4843
    %v5040 = vunpack.c.l.b16 %v4844
    %v5041 = vunpack.c.l.b16 %v4845
    %v5042 = vunpack.c.l.b16 %v4846
    %v5043 = vunpack.c.l.b16 %v4847
    %v5044 = vunpack.c.l.b16 %v4848
    %v5045 = vunpack.c.l.b16 %v4849
    %v5046 = vunpack.c.l.b16 %v4850
    %v5047 = vunpack.c.l.b16 %v4851
    %v5048 = vunpack.c.l.b16 %v4852
    %v5049 = vunpack.c.l.b16 %v4853
    %v5050 = vunpack.c.l.b16 %v4854
    %v5051 = vunpack.c.l.b16 %v4855
    %v5052 = vunpack.c.l.b16 %v4856
    %v5053 = vunpack.c.l.b16 %v4857
    %v5054 = vunpack.c.l.b16 %v4858
    %v5055 = vunpack.c.l.b16 %v4859
    %v5056 = vunpack.c.l.b16 %v4860
    %v5057 = vunpack.c.l.b16 %v4861
    %v5058 = vunpack.c.l.b16 %v4862
    %v5059 = vunpack.c.l.b16 %v4863
    %v5060 = vunpack.c.l.b16 %v4864
    %v5061 = vunpack.c.l.b16 %v4865
    %v5062 = vunpack.c.l.b16 %v4866
    %v5063 = vunpack.c.l.b16 %v4867
    %v5064 = vunpack.c.l.b16 %v4868
    %v5065 = vunpack.c.l.b16 %v4869
    %v5066 = vunpack.c.l.b16 %v4870
    %v5067 = vunpack.c.l.b16 %v4871
    %v5068 = vunpack.c.l.b16 %v4872
    %v5069 = vunpack.c.l.b16 %v4873
    %v5070 = vunpack.c.l.b16 %v4874
    %v5071 = vunpack.c.l.b16 %v4875
    %v5072 = vunpack.c.l.b16 %v4876
    %v5073 = vunpack.c.l.b16 %v4877
    %v5074 = vunpack.c.l.b16 %v4878
    %v5075 = vunpack.c.l.b16 %v4879
    %v5076 = vunpack.c.l.b16 %v4880
    %v5077 = vunpack.c.l.b16 %v4881
    %v5078 = vunpack.c.l.b16 %v4882
    %v5079 = vunpack.c.l.b16 %v4883
    %v5080 = vunpack.c.l.b16 %v4884
    %v5081 = vunpack.c.l.b16 %v4885
    %v5082 = vunpack.c.l.b16 %v4886
    %v5083 = vunpack.c.l.b16 %v4887
    %v5084 = vunpack.c.l.b16 %v4888
    %v5085 = vunpack.c.l.b16 %v4889
    %v5086 = vunpack.c.l.b16 %v4890
    %v5087 = vunpack.c.l.b16 %v4891
    %v5088 = vunpack.c.l.b16 %v4892
    %v5089 = vunpack.c.l.b16 %v4893
    %v5090 = vunpack.c.l.b16 %v4894
    %v5091 = vunpack.c.l.b16 %v4895
    %v5092 = vunpack.c.l.b16 %v4896
    %v5093 = vunpack.c.l.b16 %v4897
    %v5094 = vunpack.c.l.b16 %v4898
    %v5095 = vunpack.c.l.b16 %v4899
    %v5096 = vunpack.c.l.b16 %v4900
    %v5097 = vunpack.c.l.b16 %v4901
    %v5098 = vunpack.c.l.b16 %v4902
    %v5099 = vunpack.c.l.b16 %v4903
    %v5100 = vunpack.c.l.b16 %v4904
    %v5101 = vunpack.c.l.b16 %v4905
    %v5102 = vunpack.c.l.b16 %v4906
    %v5103 = vunpack.c.l.b16 %v4907
    %v5104 = vunpack.c.l.b16 %v4908
    %v5105 = vunpack.c.l.b16 %v4909
    %v5106 = vunpack.c.l.b16 %v4910
    %v5107 = vunpack.c.l.b16 %v4911
    %v5108 = vunpack.c.l.b16 %v4912
    %v5109 = vunpack.c.l.b16 %v4913
    %v5110 = vunpack.c.l.b16 %v4914
    %v5111 = vpack.c.b16 %v5016, %v5015
    %v5112 = vpack.c.b16 %v5018, %v5017
    %v5113 = vpack.c.b16 %v5020, %v5019
    %v5114 = vpack.c.b16 %v5022, %v5021
    %v5115 = vpack.c.b16 %v5024, %v5023
    %v5116 = vpack.c.b16 %v5026, %v5025
    %v5117 = vpack.c.b16 %v5028, %v5027
    %v5118 = vpack.c.b16 %v5030, %v5029
    %v5119 = vpack.c.b16 %v5032, %v5031
    %v5120 = vpack.c.b16 %v5034, %v5033
    %v5121 = vpack.c.b16 %v5036, %v5035
    %v5122 = vpack.c.b16 %v5038, %v5037
    %v5123 = vpack.c.b16 %v5040, %v5039
    %v5124 = vpack.c.b16 %v5042, %v5041
    %v5125 = vpack.c.b16 %v5044, %v5043
    %v5126 = vpack.c.b16 %v5046, %v5045
    %v5127 = vpack.c.b16 %v5048, %v5047
    %v5128 = vpack.c.b16 %v5050, %v5049
    %v5129 = vpack.c.b16 %v5052, %v5051
    %v5130 = vpack.c.b16 %v5054, %v5053
    %v5131 = vpack.c.b16 %v5056, %v5055
    %v5132 = vpack.c.b16 %v5058, %v5057
    %v5133 = vpack.c.b16 %v5060, %v5059
    %v5134 = vpack.c.b16 %v5062, %v5061
    %v5135 = vpack.c.b16 %v5064, %v5063
    %v5136 = vpack.c.b16 %v5066, %v5065
    %v5137 = vpack.c.b16 %v5068, %v5067
    %v5138 = vpack.c.b16 %v5070, %v5069
    %v5139 = vpack.c.b16 %v5072, %v5071
    %v5140 = vpack.c.b16 %v5074, %v5073
    %v5141 = vpack.c.b16 %v5076, %v5075
    %v5142 = vpack.c.b16 %v5078, %v5077
    %v5143 = vpack.c.b16 %v5080, %v5079
    %v5144 = vpack.c.b16 %v5082, %v5081
    %v5145 = vpack.c.b16 %v5084, %v5083
    %v5146 = vpack.c.b16 %v5086, %v5085
    %v5147 = vpack.c.b16 %v5088, %v5087
    %v5148 = vpack.c.b16 %v5090, %v5089
    %v5149 = vpack.c.b16 %v5092, %v5091
    %v5150 = vpack.c.b16 %v5094, %v5093
    %v5151 = vpack.c.b16 %v5096, %v5095
    %v5152 = vpack.c.b16 %v5098, %v5097
    %v5153 = vpack.c.b16 %v5100, %v5099
    %v5154 = vpack.c.b16 %v5102, %v5101
    %v5155 = vpack.c.b16 %v5104, %v5103
    %v5156 = vpack.c.b16 %v5106, %v5105
    %v5157 = vpack.c.b16 %v5108, %v5107
    %v5158 = vpack.c.b16 %v5110, %v5109
    %5207 = vmatpush.bf16.msra.mxu0 %v5118
    %5208 = vmatpush.bf16.msra.mxu0 %v5117
    %5209 = vmatpush.bf16.msra.mxu0 %v5116
    %5210 = vmatpush.bf16.msra.mxu0 %v5115
    %5211 = vmatpush.bf16.msra.mxu0 %v5114
    %5212 = vmatpush.bf16.msra.mxu0 %v5113
    %5213 = vmatpush.bf16.msra.mxu0 %v5112
    %5214 = vmatpush.bf16.msra.mxu0 %v5111
    %5215 = vmatmul.bf16.gmra.mxu0 %v4813
    %v5216 = vpop.f32.mrf.mxu0
    %v5217 = vadd.f32 %v4917, %v5216
    %v5218 = vpop.f32.mrf.mxu0
    %5219 = vdwg.mxu0
    %5220 = vmatpush.bf16.msra.mxu0 %v5126
    %5221 = vmatpush.bf16.msra.mxu0 %v5125
    %5222 = vmatpush.bf16.msra.mxu0 %v5124
    %5223 = vmatpush.bf16.msra.mxu0 %v5123
    %5224 = vmatpush.bf16.msra.mxu0 %v5122
    %5225 = vmatpush.bf16.msra.mxu0 %v5121
    %5226 = vmatpush.bf16.msra.mxu0 %v5120
    %5227 = vmatpush.bf16.msra.mxu0 %v5119
    %5228 = vmatmul.bf16.gmra.mxu0 %v4814
    %v5229 = vpop.f32.mrf.mxu0
    %v5230 = vadd.f32 %v5217, %v5229
    %v5231 = vpop.f32.mrf.mxu0
    %5232 = vdwg.mxu0
    %5233 = vmatpush.bf16.msra.mxu0 %v5134
    %5234 = vmatpush.bf16.msra.mxu0 %v5133
    %5235 = vmatpush.bf16.msra.mxu0 %v5132
    %5236 = vmatpush.bf16.msra.mxu0 %v5131
    %5237 = vmatpush.bf16.msra.mxu0 %v5130
    %5238 = vmatpush.bf16.msra.mxu0 %v5129
    %5239 = vmatpush.bf16.msra.mxu0 %v5128
    %5240 = vmatpush.bf16.msra.mxu0 %v5127
    %5241 = vmatmul.bf16.gmra.mxu0 %v4815
    %v5242 = vpop.f32.mrf.mxu0
    %v5243 = vadd.f32 %v5230, %v5242
    %v5244 = vpop.f32.mrf.mxu0
    %5245 = vdwg.mxu0
    %5246 = vmatpush.bf16.msra.mxu0 %v5142
    %5247 = vmatpush.bf16.msra.mxu0 %v5141
    %5248 = vmatpush.bf16.msra.mxu0 %v5140
    %5249 = vmatpush.bf16.msra.mxu0 %v5139
    %5250 = vmatpush.bf16.msra.mxu0 %v5138
    %5251 = vmatpush.bf16.msra.mxu0 %v5137
    %5252 = vmatpush.bf16.msra.mxu0 %v5136
    %5253 = vmatpush.bf16.msra.mxu0 %v5135
    %5254 = vmatmul.bf16.gmra.mxu0 %v4816
    %v5255 = vpop.f32.mrf.mxu0
    %v5256 = vadd.f32 %v5243, %v5255
    %v5257 = vpop.f32.mrf.mxu0
    %5258 = vdwg.mxu0
    %5259 = vmatpush.bf16.msra.mxu0 %v5150
    %5260 = vmatpush.bf16.msra.mxu0 %v5149
    %5261 = vmatpush.bf16.msra.mxu0 %v5148
    %5262 = vmatpush.bf16.msra.mxu0 %v5147
    %5263 = vmatpush.bf16.msra.mxu0 %v5146
    %5264 = vmatpush.bf16.msra.mxu0 %v5145
    %5265 = vmatpush.bf16.msra.mxu0 %v5144
    %5266 = vmatpush.bf16.msra.mxu0 %v5143
    %5267 = vmatmul.bf16.gmra.mxu0 %v4817
    %v5268 = vpop.f32.mrf.mxu0
    %v5269 = vadd.f32 %v5256, %v5268
    %v5270 = vpop.f32.mrf.mxu0
    %5271 = vdwg.mxu0
    %5272 = vmatpush.bf16.msra.mxu0 %v5158
    %5273 = vmatpush.bf16.msra.mxu0 %v5157
    %5274 = vmatpush.bf16.msra.mxu0 %v5156
    %5275 = vmatpush.bf16.msra.mxu0 %v5155
    %5276 = vmatpush.bf16.msra.mxu0 %v5154
    %5277 = vmatpush.bf16.msra.mxu0 %v5153
    %5278 = vmatpush.bf16.msra.mxu0 %v5152
    %5279 = vmatpush.bf16.msra.mxu0 %v5151
    %5280 = vmatmul.bf16.gmra.mxu0 %v4818
    %v5281 = vpop.f32.mrf.mxu0
    %v5282 = vadd.f32 %v5269, %v5281
    %v5283 = vpop.f32.mrf.mxu0
    %5284 = vdwg.mxu0
    %vm5285 = vcmask 31744
    %5286 = vst.msk [vmem:[%s11] sm:$0xff] %vm5285, %v5282
    // Predicated region
    $region80: #{essay_model_forward.1} parent=1 // pred_check
      _
    $region81: #{essay_model_forward.1} parent=1 // pred_check_branch
      %5288 = sbr.rel (0) target = $region83
    $region82: #{essay_model_forward.1} parent=1 // pred_region
      %5290 = vsyncadd [#allocation8], 0
      %s5292 = sshll.u32 [#allocation20], 4
      %s5293 = int_to_ptr.vmem [resolvable:$true] %s5292
      %s5294 = sshll.u32 %s10, 4
      %s5295 = int_to_ptr.hbm [resolvable:$true] %s5294
      %5297 = dma.vmem_to_hbm [thread:$0]  %s5293, 768, %s5295, [#allocation8]
    $region83: #{essay_model_forward.1} parent=1 // pred_fallthru
      _
    // Predicated region
    $region84: #{essay_model_forward.1} parent=1 // pred_check
      _
    $region85: #{essay_model_forward.1} parent=1 // pred_check_branch
      %5299 = sbr.rel (0) target = $region87
    $region86: #{essay_model_forward.1} parent=1 // pred_region
      _
    $region87: #{essay_model_forward.1} parent=1 // pred_fallthru
      _
    // Predicated region
    $region88: #{essay_model_forward.1} parent=1 // pred_check
      _
    $region89: #{essay_model_forward.1} parent=1 // pred_check_branch
      %5301 = sbr.rel (0) target = $region91
    $region90: #{essay_model_forward.1} parent=1 // pred_region
      %5303 = dma.done [#allocation8], 768
    $region91: #{essay_model_forward.1} parent=1 // pred_fallthru
      _
    // Predicated region
    $region92: #{essay_model_forward.1} parent=1 // pred_check
      _
    $region93: #{essay_model_forward.1} parent=1 // pred_check_branch
      %5305 = sbr.rel (0) target = $region95
    $region94: #{essay_model_forward.1} parent=1 // pred_region
      _
    $region95: #{essay_model_forward.1} parent=1 // pred_fallthru
      _
    %5306 = vsyncpa [#allocation7], 1
    %5307 = vsyncpa [#allocation10], 1
    %5308 = vsyncpa [#allocation13], 1
    %5309 = vsyncpa [#allocation16], 1
    %5310 = vsyncpa [#allocation19], 1
    %5311 = vsyncpa [#allocation8], 1
  %5312 = vsyncmov [#allocation3]
  %s5313 = vpop.sfrf %5312
  %p5314 = scmp.eq.s32.totalorder %s5313, 0
  %p5315 = pneg %p5314
  %5317 = shalt.err (%p5315)

</llo_original>
